<compile_context>
chip_gen: v6e
topology: v6e:2x2x1
jax: 0.10.0
libtpu: 0.0.40
codegen_flags: <defaults>
</compile_context>

<pallas_src>
import numpy as np
import jax
import jax.numpy as jnp
from jax.experimental import pallas as pl
from jax.experimental.pallas import tpu as pltpu

# ---------------- configuration (small, consistent with the module) ----------------
NUM_WORDS = 64
WORD_DIM = 32
HIDDEN_DIM = 32
ANNOTATION_DIM = 32      # dot attention requires hidden_dim == annotation_dim
NUM_LAYERS = 1
T = 8                    # target (decoder) length
B = 4                    # batch size
S = 8                    # max source length
HP = 128                 # per-gate / per-feature lane block (vreg lane width)
# dropout_prob = 0.0  -> dropout layers are identities (eval semantics)


# ====================== fused GRU + dot-attention + output kernel ======================
def _decoder_kernel(x_ref, h0_ref, ann_ref, mask_ref, gate_ref, epi_ref,
                    logits_ref, attw_ref, hfin_ref, q_scr):
    Bp, hp = h0_ref.shape            # padded batch (8), lane block (128)
    D = x_ref.shape[1]               # word_dim
    Tt = x_ref.shape[0] // Bp        # decoder length
    Ss = mask_ref.shape[1]           # max source length

    # ---- weights: static, sublane-aligned ref slices of the packed slabs ----
    wih = gate_ref[0:D, :]                                   # (D, 3*HP)
    whh = gate_ref[D:D + hp, :]                              # (HP, 3*HP), rows >= H zero
    b_gi = gate_ref[D + hp:D + hp + 1, :]                    # bih(all) + bhh(r,z) folded
    bhh_n = gate_ref[D + hp + 1:D + hp + 2, 2 * hp:3 * hp]   # (1, HP) n-gate hidden bias
    bhh_n_b = jnp.broadcast_to(bhh_n, (Bp, hp))              # hoisted once, not per step

    # ---- hoisted input-path gate matmul for ALL timesteps (one MXU pass) ----
    gi_all = (jnp.dot(x_ref[...], wih, preferred_element_type=jnp.float32)
              + b_gi)                                        # (T*Bp, 3*HP)

    # ---- GRU recurrence (PyTorch gate order r, z, n), statically unrolled ----
    # Every slice below starts at a multiple of 128 lanes / 8 sublanes, so the
    # serial chain has no cross-lane relayouts; padding lanes of h stay exactly 0.
    h = h0_ref[...]                                          # (Bp, HP) — one vreg
    for t in range(Tt):
        gi = gi_all[t * Bp:(t + 1) * Bp, :]                  # aligned (Bp, 3*HP) row group
        gh = jnp.dot(h, whh, preferred_element_type=jnp.float32)        # (Bp, 3*HP)
        rz = jax.nn.sigmoid(gi[:, :2 * hp] + gh[:, :2 * hp])            # r|z in one pass
        r = rz[:, :hp]
        z = rz[:, hp:2 * hp]
        n = jnp.tanh(gi[:, 2 * hp:] + r * (gh[:, 2 * hp:] + bhh_n_b))
        h = (1.0 - z) * n + z * h
        # lane-dense (128-wide) store, not on the h->h dependence chain
        q_scr[:, t:t + 1, :] = h[:, None, :]

    hfin_ref[...] = h                                        # written exactly once

    # ---- dot attention, batched over all T at once ----
    q = q_scr[...]                                           # (Bp, Tt, HP), pad lanes zero
    ann = ann_ref[...]                                       # (Bp, Ss, HP), pad lanes zero

    scores = jnp.einsum('bth,bsh->bts', q, ann,
                        preferred_element_type=jnp.float32)  # (Bp, Tt, Ss)
    scores = scores + mask_ref[...][:, None, :]              # source-length mask
    m = jnp.max(scores, axis=-1, keepdims=True)
    e = jnp.exp(scores - m)
    w = e / jnp.sum(e, axis=-1, keepdims=True)               # exact softmax
    attw_ref[...] = w                                        # (Bp, Tt, Ss)

    ctx = jnp.einsum('bts,bsh->bth', w, ann,
                     preferred_element_type=jnp.float32)     # (Bp, Tt, HP)

    # ---- fused Luong combine + vocab projection (lane-dense) ----
    cq = jnp.concatenate([ctx.reshape(Bp * Tt, hp),
                          q.reshape(Bp * Tt, hp)], axis=1)   # (B*T, 2*HP), aligned concat
    wc_cat = epi_ref[0:2 * hp, :]                            # (2*HP, HP)
    wout = epi_ref[2 * hp:3 * hp, :]                         # (HP, HP)
    bc = epi_ref[3 * hp:3 * hp + 1, :]                       # (1, HP)
    bout = epi_ref[3 * hp + 1:3 * hp + 2, :]                 # (1, HP)
    att = jnp.tanh(jnp.dot(cq, wc_cat, preferred_element_type=jnp.float32) + bc)
    logits_ref[...] = (jnp.dot(att, wout, preferred_element_type=jnp.float32)
                       + bout)                               # (B*T, HP), lane-dense


# ============================== parameters ==============================
def init_params(key):
    ks = jax.random.split(key, 5)
    emb = 0.01 * jax.random.normal(ks[0], (NUM_WORDS, WORD_DIM), jnp.float32)

    # GRU: kaiming-normal W_ih, orthogonal W_hh, zero biases (reset_parameters).
    # Gates (r, z, n) fused along the output dimension -> (in, 3H), stored (in, out).
    wih = jax.random.normal(ks[1], (WORD_DIM, 3 * HIDDEN_DIM), jnp.float32) * np.sqrt(2.0 / WORD_DIM)

    def ortho(k):
        a = jax.random.normal(k, (HIDDEN_DIM, HIDDEN_DIM), jnp.float32)
        q, _ = jnp.linalg.qr(a)
        return q
    whh = jnp.concatenate([ortho(k) for k in jax.random.split(ks[2], 3)], axis=1)  # (H, 3H)
    bih = jnp.zeros((1, 3 * HIDDEN_DIM), jnp.float32)
    bhh = jnp.zeros((1, 3 * HIDDEN_DIM), jnp.float32)

    # TODO(synk): attention.DotAttention source is not provided; standard Luong
    # dot attention with a tanh(Wc0*ctx + Wc1*q + bc) combine linear is implemented.
    wc = 0.1 * jax.random.normal(ks[3], (2, HIDDEN_DIM, HIDDEN_DIM), jnp.float32)
    bc = jnp.zeros((1, HIDDEN_DIM), jnp.float32)

    # output_linear: weight ~ N(0, 0.01), bias = 0 (stored transposed)
    wout = 0.01 * jax.random.normal(ks[4], (HIDDEN_DIM, NUM_WORDS), jnp.float32)
    bout = jnp.zeros((1, NUM_WORDS), jnp.float32)
    return dict(emb=emb, wih=wih, whh=whh, bih=bih, bhh=bhh,
                wc=wc, bc=bc, wout=wout, bout=bout)


def _per_gate_pad(w, H, hp):
    """(in, 3H) -> (in, 3*HP); gate g's real columns land at lanes [g*HP, g*HP+H)."""
    cols = []
    for g in range(3):
        blk = jnp.zeros((w.shape[0], hp), w.dtype).at[:, :H].set(w[:, g * H:(g + 1) * H])
        cols.append(blk)
    return jnp.concatenate(cols, axis=1)


def pack_params(params):
    """One-time weight packing (outside the per-call path): two VMEM-friendly
    slabs with per-gate 128-lane layout; removes per-call pads, 12 -> 6 inputs."""
    H, D, V = HIDDEN_DIM, WORD_DIM, NUM_WORDS

    wih_p = _per_gate_pad(params['wih'], H, HP)                        # (D, 3*HP)
    whh_p = jnp.zeros((HP, 3 * HP), jnp.float32).at[:H, :].set(
        _per_gate_pad(params['whh'], H, HP))                           # (HP, 3*HP)
    bih_p = _per_gate_pad(params['bih'], H, HP)                        # (1, 3*HP)
    bhh_p = _per_gate_pad(params['bhh'], H, HP)                        # (1, 3*HP)
    # h-independent bias fold: bih (all gates) + bhh (r,z gates only); the n-gate
    # bhh must stay inside r*(.) and is kept separately (row 1).
    b_gi = bih_p + bhh_p.at[:, 2 * HP:].set(0.0)
    bias_blk = jnp.zeros((8, 3 * HP), jnp.float32).at[0:1].set(b_gi).at[1:2].set(bhh_p)
    gate_slab = jnp.concatenate([wih_p, whh_p, bias_blk], axis=0)      # (D+HP+8, 3*HP)

    # epilogue slab: fused combine weight for [ctx | q], vocab projection, biases
    wc_cat = jnp.zeros((2 * HP, HP), jnp.float32)
    wc_cat = wc_cat.at[:H, :H].set(params['wc'][0]).at[HP:HP + H, :H].set(params['wc'][1])
    wout_p = jnp.zeros((HP, HP), jnp.float32).at[:H, :V].set(params['wout'])
    b_blk = jnp.zeros((8, HP), jnp.float32)
    b_blk = b_blk.at[0, :H].set(params['bc'][0]).at[1, :V].set(params['bout'][0])
    epi_slab = jnp.concatenate([wc_cat, wout_p, b_blk], axis=0)        # (3*HP+8, HP)

    return dict(emb=params['emb'], gate_slab=gate_slab, epi_slab=epi_slab)


# ============================== full forward ==============================
@jax.jit
def recurrent_decoder_forward(packed, annotations, annotations_length, words, rnn_state):
    """annotations: (S, B, A) f32, annotations_length: (B,) i32,
       words: (T, B) i32, rnn_state: (NUM_LAYERS, B, H) f32."""
    Tt, Bb = words.shape
    Ss = annotations.shape[0]
    Bp = ((Bb + 7) // 8) * 8                       # pad batch to the f32 sublane count

    # Embedding gather + dropout(p=0)=identity stay as cheap XLA glue.
    # TODO(synk): the lookup could be fused in-kernel (scalar-prefetched ids +
    # in-VMEM table); kept in XLA since the gain is marginal at this size.
    x = packed['emb'][words]                                            # (T, B, D)
    x = jnp.pad(x, ((0, 0), (0, Bp - Bb), (0, 0))).reshape(Tt * Bp, WORD_DIM)

    h0 = jnp.pad(rnn_state[0], ((0, Bp - Bb), (0, HP - HIDDEN_DIM)))    # (Bp, HP)
    ann = jnp.pad(jnp.transpose(annotations, (1, 0, 2)),
                  ((0, Bp - Bb), (0, 0), (0, HP - ANNOTATION_DIM)))     # (Bp, S, HP)

    src_pos = jnp.arange(Ss)[None, :]
    # Rows with annotations_length == 0 get uniform attention weights (all -1e9),
    # same behaviour as the pure-JAX reference.
    mask = jnp.where(src_pos < annotations_length[:, None], 0.0, -1e9).astype(jnp.float32)
    mask = jnp.pad(mask, ((0, Bp - Bb), (0, 0)))                        # (Bp, S)

    vspec = lambda: pl.BlockSpec(memory_space=pltpu.MemorySpace.VMEM)
    logits_p, attw_p, h_fin = pl.pallas_call(
        _decoder_kernel,
        out_shape=(jax.ShapeDtypeStruct((Bp * Tt, HP), jnp.float32),    # logits (lane-dense)
                   jax.ShapeDtypeStruct((Bp, Tt, Ss), jnp.float32),     # attention weights
                   jax.ShapeDtypeStruct((Bp, HP), jnp.float32)),        # final hidden
        in_specs=[vspec() for _ in range(6)],
        out_specs=(vspec(), vspec(), vspec()),
        scratch_shapes=[pltpu.VMEM((Bp, Tt, HP), jnp.float32)],         # decoder states
    )(x, h0, ann, mask, packed['gate_slab'], packed['epi_slab'])

    # kernel row order is b*T + t; undo padding / layout in cheap XLA glue
    logits = logits_p.reshape(Bp, Tt, HP)[:Bb, :, :NUM_WORDS].transpose(1, 0, 2)  # (T, B, V)
    attw = attw_p[:Bb, :, :Ss].transpose(1, 0, 2)                                 # (T, B, S)
    new_rnn_state = h_fin[:Bb, :HIDDEN_DIM][None]                                 # (1, B, H)
    return logits, new_rnn_state, attw


# ============================== pure-JAX reference ==============================
def _ref_forward(params, annotations, annotations_length, words, rnn_state):
    emb = params['emb'][words]                                          # (T, B, D)
    H = HIDDEN_DIM

    def step(h, x):
        gi = x @ params['wih'] + params['bih'][0]
        gh = h @ params['whh'] + params['bhh'][0]
        r = jax.nn.sigmoid(gi[:, :H] + gh[:, :H])
        z = jax.nn.sigmoid(gi[:, H:2 * H] + gh[:, H:2 * H])
        n = jnp.tanh(gi[:, 2 * H:] + r * gh[:, 2 * H:])
        hn = (1.0 - z) * n + z * h
        return hn, hn

    h_final, rnn_out = jax.lax.scan(step, rnn_state[0], emb)
    scores = jnp.einsum('tbh,sbh->tbs', rnn_out, annotations)
    mask = jnp.where(jnp.arange(annotations.shape[0])[None, :] < annotations_length[:, None],
                     0.0, -1e9)
    w = jax.nn.softmax(scores + mask[None], axis=-1)
    ctx = jnp.einsum('tbs,sbh->tbh', w, annotations)
    att = jnp.tanh(jnp.einsum('tbh,hj->tbj', ctx, params['wc'][0])
                   + jnp.einsum('tbh,hj->tbj', rnn_out, params['wc'][1]) + params['bc'][0])
    logits = jnp.einsum('tbh,hv->tbv', att, params['wout']) + params['bout'][0]
    return logits, h_final[None], w


# ==================================== main ====================================
if __name__ == "__main__":
    key = jax.random.PRNGKey(0)
    kp, ka, kw = jax.random.split(key, 3)
    params = init_params(kp)
    packed = pack_params(params)

    annotations = jax.random.normal(ka, (S, B, ANNOTATION_DIM), jnp.float32)
    annotations_length = jnp.array([S, 5, S, 3], dtype=jnp.int32)
    words = jax.random.randint(kw, (T, B), 0, NUM_WORDS, dtype=jnp.int32)
    rnn_state0 = jnp.zeros((NUM_LAYERS, B, HIDDEN_DIM), jnp.float32)

    logits, new_state, attw = recurrent_decoder_forward(
        packed, annotations, annotations_length, words, rnn_state0)
    jax.block_until_ready((logits, new_state, attw))

    # correctness check against the pure-JAX reference (exact softmax now; the
    # remaining tolerance covers f32 MXU matmul rounding)
    ref_logits, ref_state, ref_attw = _ref_forward(
        params, annotations, annotations_length, words, rnn_state0)
    np.testing.assert_allclose(np.asarray(new_state), np.asarray(ref_state), rtol=1e-3, atol=1e-3)
    np.testing.assert_allclose(np.asarray(attw), np.asarray(ref_attw), rtol=2e-3, atol=2e-3)
    np.testing.assert_allclose(np.asarray(logits), np.asarray(ref_logits), rtol=2e-3, atol=2e-3)

    assert logits.shape == (T, B, NUM_WORDS)
    assert new_state.shape == (NUM_LAYERS, B, HIDDEN_DIM)
    assert attw.shape == (T, B, S)
    print("KERNEL_OK")
</pallas_src>

<mosaic_0001>
module attributes {stable_mosaic.version = 11 : i64} {
  func.func @_decoder_kernel(%arg0: memref<64x32xf32, #tpu.memory_space<vmem>>, %arg1: memref<8x128xf32, #tpu.memory_space<vmem>>, %arg2: memref<8x8x128xf32, #tpu.memory_space<vmem>>, %arg3: memref<8x8xf32, #tpu.memory_space<vmem>>, %arg4: memref<168x384xf32, #tpu.memory_space<vmem>>, %arg5: memref<392x128xf32, #tpu.memory_space<vmem>>, %arg6: memref<64x128xf32, #tpu.memory_space<vmem>>, %arg7: memref<8x8x8xf32, #tpu.memory_space<vmem>>, %arg8: memref<8x128xf32, #tpu.memory_space<vmem>>, %arg9: memref<8x8x128xf32, #tpu.memory_space<vmem>>) attributes {dimension_semantics = [], scalar_prefetch = 0 : i64, scratch_operands = 1 : i64, tpu.core_type = #tpu.core_type<tc>} {
    %c0 = arith.constant 0 : index
    %c0_0 = arith.constant 0 : index
    %0 = vector.load %arg4[%c0, %c0_0] : memref<168x384xf32, #tpu.memory_space<vmem>>, vector<32x384xf32>
    %c32 = arith.constant 32 : index
    %c0_1 = arith.constant 0 : index
    %1 = vector.load %arg4[%c32, %c0_1] : memref<168x384xf32, #tpu.memory_space<vmem>>, vector<128x384xf32>
    %c160 = arith.constant 160 : index
    %c0_2 = arith.constant 0 : index
    %2 = vector.load %arg4[%c160, %c0_2] : memref<168x384xf32, #tpu.memory_space<vmem>>, vector<1x384xf32>
    %c161 = arith.constant 161 : index
    %c256 = arith.constant 256 : index
    %3 = vector.load %arg4[%c161, %c256] : memref<168x384xf32, #tpu.memory_space<vmem>>, vector<1x128xf32>
    %4 = vector.shape_cast %3 : vector<1x128xf32> to vector<1x128xf32>
    %5 = vector.broadcast %4 : vector<1x128xf32> to vector<8x128xf32>
    %c0_3 = arith.constant 0 : index
    %c0_4 = arith.constant 0 : index
    %6 = vector.load %arg0[%c0_3, %c0_4] : memref<64x32xf32, #tpu.memory_space<vmem>>, vector<64x32xf32>
    %cst = arith.constant dense<0.000000e+00> : vector<64x384xf32>
    %7 = tpu.matmul %6, %0, %cst {dimension_numbers = #tpu.dot_dimension_numbers<[1], [0], [0], [1], [0, 0, 1, 1], [], []>} : vector<64x32xf32>, vector<32x384xf32>, vector<64x384xf32> -> vector<64x384xf32>
    %8 = vector.broadcast %2 : vector<1x384xf32> to vector<64x384xf32>
    %9 = arith.addf %7, %8 : vector<64x384xf32>
    %c0_5 = arith.constant 0 : index
    %c0_6 = arith.constant 0 : index
    %10 = vector.load %arg1[%c0_5, %c0_6] : memref<8x128xf32, #tpu.memory_space<vmem>>, vector<8x128xf32>
    %11 = vector.extract_strided_slice %9 {offsets = [0, 0], sizes = [8, 384], strides = [1, 1]} : vector<64x384xf32> to vector<8x384xf32>
    %cst_7 = arith.constant dense<0.000000e+00> : vector<8x384xf32>
    %12 = tpu.matmul %10, %1, %cst_7 {dimension_numbers = #tpu.dot_dimension_numbers<[1], [0], [0], [1], [0, 0, 1, 1], [], []>} : vector<8x128xf32>, vector<128x384xf32>, vector<8x384xf32> -> vector<8x384xf32>
    %13 = vector.extract_strided_slice %11 {offsets = [0, 0], sizes = [8, 256], strides = [1, 1]} : vector<8x384xf32> to vector<8x256xf32>
    %14 = vector.extract_strided_slice %12 {offsets = [0, 0], sizes = [8, 256], strides = [1, 1]} : vector<8x384xf32> to vector<8x256xf32>
    %15 = arith.addf %13, %14 : vector<8x256xf32>
    %16 = arith.negf %15 : vector<8x256xf32>
    %17 = math.exp %16 : vector<8x256xf32>
    %cst_8 = arith.constant 1.000000e+00 : f32
    %18 = vector.broadcast %cst_8 : f32 to vector<8x256xf32>
    %19 = arith.addf %18, %17 : vector<8x256xf32>
    %20 = arith.divf %18, %19 : vector<8x256xf32>
    %21 = vector.extract_strided_slice %20 {offsets = [0, 0], sizes = [8, 128], strides = [1, 1]} : vector<8x256xf32> to vector<8x128xf32>
    %22 = vector.extract_strided_slice %20 {offsets = [0, 128], sizes = [8, 128], strides = [1, 1]} : vector<8x256xf32> to vector<8x128xf32>
    %23 = vector.extract_strided_slice %11 {offsets = [0, 256], sizes = [8, 128], strides = [1, 1]} : vector<8x384xf32> to vector<8x128xf32>
    %24 = vector.extract_strided_slice %12 {offsets = [0, 256], sizes = [8, 128], strides = [1, 1]} : vector<8x384xf32> to vector<8x128xf32>
    %25 = arith.addf %24, %5 : vector<8x128xf32>
    %26 = arith.mulf %21, %25 : vector<8x128xf32>
    %27 = arith.addf %23, %26 : vector<8x128xf32>
    %28 = math.tanh %27 : vector<8x128xf32>
    %cst_9 = arith.constant 1.000000e+00 : f32
    %29 = vector.broadcast %cst_9 : f32 to vector<8x128xf32>
    %30 = arith.subf %29, %22 : vector<8x128xf32>
    %31 = arith.mulf %30, %28 : vector<8x128xf32>
    %32 = arith.mulf %22, %10 : vector<8x128xf32>
    %33 = arith.addf %31, %32 : vector<8x128xf32>
    %34 = vector.shape_cast %33 : vector<8x128xf32> to vector<8x1x128xf32>
    %c0_10 = arith.constant 0 : index
    %c0_11 = arith.constant 0 : index
    %c0_12 = arith.constant 0 : index
    %35 = vector.load %arg9[%c0_10, %c0_11, %c0_12] : memref<8x8x128xf32, #tpu.memory_space<vmem>>, vector<8x1x128xf32>
    tpu.vector_store %arg9[%c0_10, %c0_11, %c0_12], %34 {strides = array<i32>} : memref<8x8x128xf32, #tpu.memory_space<vmem>>, vector<8x1x128xf32>,
    %36 = vector.extract_strided_slice %9 {offsets = [8, 0], sizes = [8, 384], strides = [1, 1]} : vector<64x384xf32> to vector<8x384xf32>
    %cst_13 = arith.constant dense<0.000000e+00> : vector<8x384xf32>
    %37 = tpu.matmul %33, %1, %cst_13 {dimension_numbers = #tpu.dot_dimension_numbers<[1], [0], [0], [1], [0, 0, 1, 1], [], []>} : vector<8x128xf32>, vector<128x384xf32>, vector<8x384xf32> -> vector<8x384xf32>
    %38 = vector.extract_strided_slice %36 {offsets = [0, 0], sizes = [8, 256], strides = [1, 1]} : vector<8x384xf32> to vector<8x256xf32>
    %39 = vector.extract_strided_slice %37 {offsets = [0, 0], sizes = [8, 256], strides = [1, 1]} : vector<8x384xf32> to vector<8x256xf32>
    %40 = arith.addf %38, %39 : vector<8x256xf32>
    %41 = arith.negf %40 : vector<8x256xf32>
    %42 = math.exp %41 : vector<8x256xf32>
    %cst_14 = arith.constant 1.000000e+00 : f32
    %43 = vector.broadcast %cst_14 : f32 to vector<8x256xf32>
    %44 = arith.addf %43, %42 : vector<8x256xf32>
    %45 = arith.divf %43, %44 : vector<8x256xf32>
    %46 = vector.extract_strided_slice %45 {offsets = [0, 0], sizes = [8, 128], strides = [1, 1]} : vector<8x256xf32> to vector<8x128xf32>
    %47 = vector.extract_strided_slice %45 {offsets = [0, 128], sizes = [8, 128], strides = [1, 1]} : vector<8x256xf32> to vector<8x128xf32>
    %48 = vector.extract_strided_slice %36 {offsets = [0, 256], sizes = [8, 128], strides = [1, 1]} : vector<8x384xf32> to vector<8x128xf32>
    %49 = vector.extract_strided_slice %37 {offsets = [0, 256], sizes = [8, 128], strides = [1, 1]} : vector<8x384xf32> to vector<8x128xf32>
    %50 = arith.addf %49, %5 : vector<8x128xf32>
    %51 = arith.mulf %46, %50 : vector<8x128xf32>
    %52 = arith.addf %48, %51 : vector<8x128xf32>
    %53 = math.tanh %52 : vector<8x128xf32>
    %cst_15 = arith.constant 1.000000e+00 : f32
    %54 = vector.broadcast %cst_15 : f32 to vector<8x128xf32>
    %55 = arith.subf %54, %47 : vector<8x128xf32>
    %56 = arith.mulf %55, %53 : vector<8x128xf32>
    %57 = arith.mulf %47, %33 : vector<8x128xf32>
    %58 = arith.addf %56, %57 : vector<8x128xf32>
    %59 = vector.shape_cast %58 : vector<8x128xf32> to vector<8x1x128xf32>
    %c0_16 = arith.constant 0 : index
    %c1 = arith.constant 1 : index
    %c0_17 = arith.constant 0 : index
    %60 = vector.load %arg9[%c0_16, %c1, %c0_17] : memref<8x8x128xf32, #tpu.memory_space<vmem>>, vector<8x1x128xf32>
    tpu.vector_store %arg9[%c0_16, %c1, %c0_17], %59 {strides = array<i32>} : memref<8x8x128xf32, #tpu.memory_space<vmem>>, vector<8x1x128xf32>,
    %61 = vector.extract_strided_slice %9 {offsets = [16, 0], sizes = [8, 384], strides = [1, 1]} : vector<64x384xf32> to vector<8x384xf32>
    %cst_18 = arith.constant dense<0.000000e+00> : vector<8x384xf32>
    %62 = tpu.matmul %58, %1, %cst_18 {dimension_numbers = #tpu.dot_dimension_numbers<[1], [0], [0], [1], [0, 0, 1, 1], [], []>} : vector<8x128xf32>, vector<128x384xf32>, vector<8x384xf32> -> vector<8x384xf32>
    %63 = vector.extract_strided_slice %61 {offsets = [0, 0], sizes = [8, 256], strides = [1, 1]} : vector<8x384xf32> to vector<8x256xf32>
    %64 = vector.extract_strided_slice %62 {offsets = [0, 0], sizes = [8, 256], strides = [1, 1]} : vector<8x384xf32> to vector<8x256xf32>
    %65 = arith.addf %63, %64 : vector<8x256xf32>
    %66 = arith.negf %65 : vector<8x256xf32>
    %67 = math.exp %66 : vector<8x256xf32>
    %cst_19 = arith.constant 1.000000e+00 : f32
    %68 = vector.broadcast %cst_19 : f32 to vector<8x256xf32>
    %69 = arith.addf %68, %67 : vector<8x256xf32>
    %70 = arith.divf %68, %69 : vector<8x256xf32>
    %71 = vector.extract_strided_slice %70 {offsets = [0, 0], sizes = [8, 128], strides = [1, 1]} : vector<8x256xf32> to vector<8x128xf32>
    %72 = vector.extract_strided_slice %70 {offsets = [0, 128], sizes = [8, 128], strides = [1, 1]} : vector<8x256xf32> to vector<8x128xf32>
    %73 = vector.extract_strided_slice %61 {offsets = [0, 256], sizes = [8, 128], strides = [1, 1]} : vector<8x384xf32> to vector<8x128xf32>
    %74 = vector.extract_strided_slice %62 {offsets = [0, 256], sizes = [8, 128], strides = [1, 1]} : vector<8x384xf32> to vector<8x128xf32>
    %75 = arith.addf %74, %5 : vector<8x128xf32>
    %76 = arith.mulf %71, %75 : vector<8x128xf32>
    %77 = arith.addf %73, %76 : vector<8x128xf32>
    %78 = math.tanh %77 : vector<8x128xf32>
    %cst_20 = arith.constant 1.000000e+00 : f32
    %79 = vector.broadcast %cst_20 : f32 to vector<8x128xf32>
    %80 = arith.subf %79, %72 : vector<8x128xf32>
    %81 = arith.mulf %80, %78 : vector<8x128xf32>
    %82 = arith.mulf %72, %58 : vector<8x128xf32>
    %83 = arith.addf %81, %82 : vector<8x128xf32>
    %84 = vector.shape_cast %83 : vector<8x128xf32> to vector<8x1x128xf32>
    %c0_21 = arith.constant 0 : index
    %c2 = arith.constant 2 : index
    %c0_22 = arith.constant 0 : index
    %85 = vector.load %arg9[%c0_21, %c2, %c0_22] : memref<8x8x128xf32, #tpu.memory_space<vmem>>, vector<8x1x128xf32>
    tpu.vector_store %arg9[%c0_21, %c2, %c0_22], %84 {strides = array<i32>} : memref<8x8x128xf32, #tpu.memory_space<vmem>>, vector<8x1x128xf32>,
    %86 = vector.extract_strided_slice %9 {offsets = [24, 0], sizes = [8, 384], strides = [1, 1]} : vector<64x384xf32> to vector<8x384xf32>
    %cst_23 = arith.constant dense<0.000000e+00> : vector<8x384xf32>
    %87 = tpu.matmul %83, %1, %cst_23 {dimension_numbers = #tpu.dot_dimension_numbers<[1], [0], [0], [1], [0, 0, 1, 1], [], []>} : vector<8x128xf32>, vector<128x384xf32>, vector<8x384xf32> -> vector<8x384xf32>
    %88 = vector.extract_strided_slice %86 {offsets = [0, 0], sizes = [8, 256], strides = [1, 1]} : vector<8x384xf32> to vector<8x256xf32>
    %89 = vector.extract_strided_slice %87 {offsets = [0, 0], sizes = [8, 256], strides = [1, 1]} : vector<8x384xf32> to vector<8x256xf32>
    %90 = arith.addf %88, %89 : vector<8x256xf32>
    %91 = arith.negf %90 : vector<8x256xf32>
    %92 = math.exp %91 : vector<8x256xf32>
    %cst_24 = arith.constant 1.000000e+00 : f32
    %93 = vector.broadcast %cst_24 : f32 to vector<8x256xf32>
    %94 = arith.addf %93, %92 : vector<8x256xf32>
    %95 = arith.divf %93, %94 : vector<8x256xf32>
    %96 = vector.extract_strided_slice %95 {offsets = [0, 0], sizes = [8, 128], strides = [1, 1]} : vector<8x256xf32> to vector<8x128xf32>
    %97 = vector.extract_strided_slice %95 {offsets = [0, 128], sizes = [8, 128], strides = [1, 1]} : vector<8x256xf32> to vector<8x128xf32>
    %98 = vector.extract_strided_slice %86 {offsets = [0, 256], sizes = [8, 128], strides = [1, 1]} : vector<8x384xf32> to vector<8x128xf32>
    %99 = vector.extract_strided_slice %87 {offsets = [0, 256], sizes = [8, 128], strides = [1, 1]} : vector<8x384xf32> to vector<8x128xf32>
    %100 = arith.addf %99, %5 : vector<8x128xf32>
    %101 = arith.mulf %96, %100 : vector<8x128xf32>
    %102 = arith.addf %98, %101 : vector<8x128xf32>
    %103 = math.tanh %102 : vector<8x128xf32>
    %cst_25 = arith.constant 1.000000e+00 : f32
    %104 = vector.broadcast %cst_25 : f32 to vector<8x128xf32>
    %105 = arith.subf %104, %97 : vector<8x128xf32>
    %106 = arith.mulf %105, %103 : vector<8x128xf32>
    %107 = arith.mulf %97, %83 : vector<8x128xf32>
    %108 = arith.addf %106, %107 : vector<8x128xf32>
    %109 = vector.shape_cast %108 : vector<8x128xf32> to vector<8x1x128xf32>
    %c0_26 = arith.constant 0 : index
    %c3 = arith.constant 3 : index
    %c0_27 = arith.constant 0 : index
    %110 = vector.load %arg9[%c0_26, %c3, %c0_27] : memref<8x8x128xf32, #tpu.memory_space<vmem>>, vector<8x1x128xf32>
    tpu.vector_store %arg9[%c0_26, %c3, %c0_27], %109 {strides = array<i32>} : memref<8x8x128xf32, #tpu.memory_space<vmem>>, vector<8x1x128xf32>,
    %111 = vector.extract_strided_slice %9 {offsets = [32, 0], sizes = [8, 384], strides = [1, 1]} : vector<64x384xf32> to vector<8x384xf32>
    %cst_28 = arith.constant dense<0.000000e+00> : vector<8x384xf32>
    %112 = tpu.matmul %108, %1, %cst_28 {dimension_numbers = #tpu.dot_dimension_numbers<[1], [0], [0], [1], [0, 0, 1, 1], [], []>} : vector<8x128xf32>, vector<128x384xf32>, vector<8x384xf32> -> vector<8x384xf32>
    %113 = vector.extract_strided_slice %111 {offsets = [0, 0], sizes = [8, 256], strides = [1, 1]} : vector<8x384xf32> to vector<8x256xf32>
    %114 = vector.extract_strided_slice %112 {offsets = [0, 0], sizes = [8, 256], strides = [1, 1]} : vector<8x384xf32> to vector<8x256xf32>
    %115 = arith.addf %113, %114 : vector<8x256xf32>
    %116 = arith.negf %115 : vector<8x256xf32>
    %117 = math.exp %116 : vector<8x256xf32>
    %cst_29 = arith.constant 1.000000e+00 : f32
    %118 = vector.broadcast %cst_29 : f32 to vector<8x256xf32>
    %119 = arith.addf %118, %117 : vector<8x256xf32>
    %120 = arith.divf %118, %119 : vector<8x256xf32>
    %121 = vector.extract_strided_slice %120 {offsets = [0, 0], sizes = [8, 128], strides = [1, 1]} : vector<8x256xf32> to vector<8x128xf32>
    %122 = vector.extract_strided_slice %120 {offsets = [0, 128], sizes = [8, 128], strides = [1, 1]} : vector<8x256xf32> to vector<8x128xf32>
    %123 = vector.extract_strided_slice %111 {offsets = [0, 256], sizes = [8, 128], strides = [1, 1]} : vector<8x384xf32> to vector<8x128xf32>
    %124 = vector.extract_strided_slice %112 {offsets = [0, 256], sizes = [8, 128], strides = [1, 1]} : vector<8x384xf32> to vector<8x128xf32>
    %125 = arith.addf %124, %5 : vector<8x128xf32>
    %126 = arith.mulf %121, %125 : vector<8x128xf32>
    %127 = arith.addf %123, %126 : vector<8x128xf32>
    %128 = math.tanh %127 : vector<8x128xf32>
    %cst_30 = arith.constant 1.000000e+00 : f32
    %129 = vector.broadcast %cst_30 : f32 to vector<8x128xf32>
    %130 = arith.subf %129, %122 : vector<8x128xf32>
    %131 = arith.mulf %130, %128 : vector<8x128xf32>
    %132 = arith.mulf %122, %108 : vector<8x128xf32>
    %133 = arith.addf %131, %132 : vector<8x128xf32>
    %134 = vector.shape_cast %133 : vector<8x128xf32> to vector<8x1x128xf32>
    %c0_31 = arith.constant 0 : index
    %c4 = arith.constant 4 : index
    %c0_32 = arith.constant 0 : index
    %135 = vector.load %arg9[%c0_31, %c4, %c0_32] : memref<8x8x128xf32, #tpu.memory_space<vmem>>, vector<8x1x128xf32>
    tpu.vector_store %arg9[%c0_31, %c4, %c0_32], %134 {strides = array<i32>} : memref<8x8x128xf32, #tpu.memory_space<vmem>>, vector<8x1x128xf32>,
    %136 = vector.extract_strided_slice %9 {offsets = [40, 0], sizes = [8, 384], strides = [1, 1]} : vector<64x384xf32> to vector<8x384xf32>
    %cst_33 = arith.constant dense<0.000000e+00> : vector<8x384xf32>
    %137 = tpu.matmul %133, %1, %cst_33 {dimension_numbers = #tpu.dot_dimension_numbers<[1], [0], [0], [1], [0, 0, 1, 1], [], []>} : vector<8x128xf32>, vector<128x384xf32>, vector<8x384xf32> -> vector<8x384xf32>
    %138 = vector.extract_strided_slice %136 {offsets = [0, 0], sizes = [8, 256], strides = [1, 1]} : vector<8x384xf32> to vector<8x256xf32>
    %139 = vector.extract_strided_slice %137 {offsets = [0, 0], sizes = [8, 256], strides = [1, 1]} : vector<8x384xf32> to vector<8x256xf32>
    %140 = arith.addf %138, %139 : vector<8x256xf32>
    %141 = arith.negf %140 : vector<8x256xf32>
    %142 = math.exp %141 : vector<8x256xf32>
    %cst_34 = arith.constant 1.000000e+00 : f32
    %143 = vector.broadcast %cst_34 : f32 to vector<8x256xf32>
    %144 = arith.addf %143, %142 : vector<8x256xf32>
    %145 = arith.divf %143, %144 : vector<8x256xf32>
    %146 = vector.extract_strided_slice %145 {offsets = [0, 0], sizes = [8, 128], strides = [1, 1]} : vector<8x256xf32> to vector<8x128xf32>
    %147 = vector.extract_strided_slice %145 {offsets = [0, 128], sizes = [8, 128], strides = [1, 1]} : vector<8x256xf32> to vector<8x128xf32>
    %148 = vector.extract_strided_slice %136 {offsets = [0, 256], sizes = [8, 128], strides = [1, 1]} : vector<8x384xf32> to vector<8x128xf32>
    %149 = vector.extract_strided_slice %137 {offsets = [0, 256], sizes = [8, 128], strides = [1, 1]} : vector<8x384xf32> to vector<8x128xf32>
    %150 = arith.addf %149, %5 : vector<8x128xf32>
    %151 = arith.mulf %146, %150 : vector<8x128xf32>
    %152 = arith.addf %148, %151 : vector<8x128xf32>
    %153 = math.tanh %152 : vector<8x128xf32>
    %cst_35 = arith.constant 1.000000e+00 : f32
    %154 = vector.broadcast %cst_35 : f32 to vector<8x128xf32>
    %155 = arith.subf %154, %147 : vector<8x128xf32>
    %156 = arith.mulf %155, %153 : vector<8x128xf32>
    %157 = arith.mulf %147, %133 : vector<8x128xf32>
    %158 = arith.addf %156, %157 : vector<8x128xf32>
    %159 = vector.shape_cast %158 : vector<8x128xf32> to vector<8x1x128xf32>
    %c0_36 = arith.constant 0 : index
    %c5 = arith.constant 5 : index
    %c0_37 = arith.constant 0 : index
    %160 = vector.load %arg9[%c0_36, %c5, %c0_37] : memref<8x8x128xf32, #tpu.memory_space<vmem>>, vector<8x1x128xf32>
    tpu.vector_store %arg9[%c0_36, %c5, %c0_37], %159 {strides = array<i32>} : memref<8x8x128xf32, #tpu.memory_space<vmem>>, vector<8x1x128xf32>,
    %161 = vector.extract_strided_slice %9 {offsets = [48, 0], sizes = [8, 384], strides = [1, 1]} : vector<64x384xf32> to vector<8x384xf32>
    %cst_38 = arith.constant dense<0.000000e+00> : vector<8x384xf32>
    %162 = tpu.matmul %158, %1, %cst_38 {dimension_numbers = #tpu.dot_dimension_numbers<[1], [0], [0], [1], [0, 0, 1, 1], [], []>} : vector<8x128xf32>, vector<128x384xf32>, vector<8x384xf32> -> vector<8x384xf32>
    %163 = vector.extract_strided_slice %161 {offsets = [0, 0], sizes = [8, 256], strides = [1, 1]} : vector<8x384xf32> to vector<8x256xf32>
    %164 = vector.extract_strided_slice %162 {offsets = [0, 0], sizes = [8, 256], strides = [1, 1]} : vector<8x384xf32> to vector<8x256xf32>
    %165 = arith.addf %163, %164 : vector<8x256xf32>
    %166 = arith.negf %165 : vector<8x256xf32>
    %167 = math.exp %166 : vector<8x256xf32>
    %cst_39 = arith.constant 1.000000e+00 : f32
    %168 = vector.broadcast %cst_39 : f32 to vector<8x256xf32>
    %169 = arith.addf %168, %167 : vector<8x256xf32>
    %170 = arith.divf %168, %169 : vector<8x256xf32>
    %171 = vector.extract_strided_slice %170 {offsets = [0, 0], sizes = [8, 128], strides = [1, 1]} : vector<8x256xf32> to vector<8x128xf32>
    %172 = vector.extract_strided_slice %170 {offsets = [0, 128], sizes = [8, 128], strides = [1, 1]} : vector<8x256xf32> to vector<8x128xf32>
    %173 = vector.extract_strided_slice %161 {offsets = [0, 256], sizes = [8, 128], strides = [1, 1]} : vector<8x384xf32> to vector<8x128xf32>
    %174 = vector.extract_strided_slice %162 {offsets = [0, 256], sizes = [8, 128], strides = [1, 1]} : vector<8x384xf32> to vector<8x128xf32>
    %175 = arith.addf %174, %5 : vector<8x128xf32>
    %176 = arith.mulf %171, %175 : vector<8x128xf32>
    %177 = arith.addf %173, %176 : vector<8x128xf32>
    %178 = math.tanh %177 : vector<8x128xf32>
    %cst_40 = arith.constant 1.000000e+00 : f32
    %179 = vector.broadcast %cst_40 : f32 to vector<8x128xf32>
    %180 = arith.subf %179, %172 : vector<8x128xf32>
    %181 = arith.mulf %180, %178 : vector<8x128xf32>
    %182 = arith.mulf %172, %158 : vector<8x128xf32>
    %183 = arith.addf %181, %182 : vector<8x128xf32>
    %184 = vector.shape_cast %183 : vector<8x128xf32> to vector<8x1x128xf32>
    %c0_41 = arith.constant 0 : index
    %c6 = arith.constant 6 : index
    %c0_42 = arith.constant 0 : index
    %185 = vector.load %arg9[%c0_41, %c6, %c0_42] : memref<8x8x128xf32, #tpu.memory_space<vmem>>, vector<8x1x128xf32>
    tpu.vector_store %arg9[%c0_41, %c6, %c0_42], %184 {strides = array<i32>} : memref<8x8x128xf32, #tpu.memory_space<vmem>>, vector<8x1x128xf32>,
    %186 = vector.extract_strided_slice %9 {offsets = [56, 0], sizes = [8, 384], strides = [1, 1]} : vector<64x384xf32> to vector<8x384xf32>
    %cst_43 = arith.constant dense<0.000000e+00> : vector<8x384xf32>
    %187 = tpu.matmul %183, %1, %cst_43 {dimension_numbers = #tpu.dot_dimension_numbers<[1], [0], [0], [1], [0, 0, 1, 1], [], []>} : vector<8x128xf32>, vector<128x384xf32>, vector<8x384xf32> -> vector<8x384xf32>
    %188 = vector.extract_strided_slice %186 {offsets = [0, 0], sizes = [8, 256], strides = [1, 1]} : vector<8x384xf32> to vector<8x256xf32>
    %189 = vector.extract_strided_slice %187 {offsets = [0, 0], sizes = [8, 256], strides = [1, 1]} : vector<8x384xf32> to vector<8x256xf32>
    %190 = arith.addf %188, %189 : vector<8x256xf32>
    %191 = arith.negf %190 : vector<8x256xf32>
    %192 = math.exp %191 : vector<8x256xf32>
    %cst_44 = arith.constant 1.000000e+00 : f32
    %193 = vector.broadcast %cst_44 : f32 to vector<8x256xf32>
    %194 = arith.addf %193, %192 : vector<8x256xf32>
    %195 = arith.divf %193, %194 : vector<8x256xf32>
    %196 = vector.extract_strided_slice %195 {offsets = [0, 0], sizes = [8, 128], strides = [1, 1]} : vector<8x256xf32> to vector<8x128xf32>
    %197 = vector.extract_strided_slice %195 {offsets = [0, 128], sizes = [8, 128], strides = [1, 1]} : vector<8x256xf32> to vector<8x128xf32>
    %198 = vector.extract_strided_slice %186 {offsets = [0, 256], sizes = [8, 128], strides = [1, 1]} : vector<8x384xf32> to vector<8x128xf32>
    %199 = vector.extract_strided_slice %187 {offsets = [0, 256], sizes = [8, 128], strides = [1, 1]} : vector<8x384xf32> to vector<8x128xf32>
    %200 = arith.addf %199, %5 : vector<8x128xf32>
    %201 = arith.mulf %196, %200 : vector<8x128xf32>
    %202 = arith.addf %198, %201 : vector<8x128xf32>
    %203 = math.tanh %202 : vector<8x128xf32>
    %cst_45 = arith.constant 1.000000e+00 : f32
    %204 = vector.broadcast %cst_45 : f32 to vector<8x128xf32>
    %205 = arith.subf %204, %197 : vector<8x128xf32>
    %206 = arith.mulf %205, %203 : vector<8x128xf32>
    %207 = arith.mulf %197, %183 : vector<8x128xf32>
    %208 = arith.addf %206, %207 : vector<8x128xf32>
    %209 = vector.shape_cast %208 : vector<8x128xf32> to vector<8x1x128xf32>
    %c0_46 = arith.constant 0 : index
    %c7 = arith.constant 7 : index
    %c0_47 = arith.constant 0 : index
    %210 = vector.load %arg9[%c0_46, %c7, %c0_47] : memref<8x8x128xf32, #tpu.memory_space<vmem>>, vector<8x1x128xf32>
    tpu.vector_store %arg9[%c0_46, %c7, %c0_47], %209 {strides = array<i32>} : memref<8x8x128xf32, #tpu.memory_space<vmem>>, vector<8x1x128xf32>,
    %c0_48 = arith.constant 0 : index
    %c0_49 = arith.constant 0 : index
    %211 = vector.load %arg8[%c0_48, %c0_49] : memref<8x128xf32, #tpu.memory_space<vmem>>, vector<8x128xf32>
    tpu.vector_store %arg8[%c0_48, %c0_49], %208 {strides = array<i32>} : memref<8x128xf32, #tpu.memory_space<vmem>>, vector<8x128xf32>,
    %c0_50 = arith.constant 0 : index
    %c0_51 = arith.constant 0 : index
    %c0_52 = arith.constant 0 : index
    %212 = vector.load %arg9[%c0_50, %c0_51, %c0_52] : memref<8x8x128xf32, #tpu.memory_space<vmem>>, vector<8x8x128xf32>
    %c0_53 = arith.constant 0 : index
    %c0_54 = arith.constant 0 : index
    %c0_55 = arith.constant 0 : index
    %213 = vector.load %arg2[%c0_53, %c0_54, %c0_55] : memref<8x8x128xf32, #tpu.memory_space<vmem>>, vector<8x8x128xf32>
    "tpu.trace_start"() <{level = 10 : i32, message = "bth,bsh->bts"}> : () -> ()
    %cst_56 = arith.constant dense<0.000000e+00> : vector<8x8x8xf32>
    %214 = tpu.matmul %212, %213, %cst_56 {dimension_numbers = #tpu.dot_dimension_numbers<[2], [2], [1], [1], [0, 0, 0, 1, 1, 1], [0], [0]>} : vector<8x8x128xf32>, vector<8x8x128xf32>, vector<8x8x8xf32> -> vector<8x8x8xf32>
    "tpu.trace_stop"() : () -> ()
    %c0_57 = arith.constant 0 : index
    %c0_58 = arith.constant 0 : index
    %215 = vector.load %arg3[%c0_57, %c0_58] : memref<8x8xf32, #tpu.memory_space<vmem>>, vector<8x8xf32>
    %216 = vector.shape_cast %215 : vector<8x8xf32> to vector<8x1x8xf32>
    %217 = vector.broadcast %216 : vector<8x1x8xf32> to vector<8x8x8xf32>
    %218 = arith.addf %214, %217 : vector<8x8x8xf32>
    %cst_59 = arith.constant dense<0xFF800000> : vector<8x8xf32>
    %219 = vector.multi_reduction <maximumf>, %218, %cst_59 [2] : vector<8x8x8xf32> to vector<8x8xf32>
    %220 = vector.shape_cast %219 : vector<8x8xf32> to vector<8x8x1xf32>
    %221 = vector.broadcast %220 : vector<8x8x1xf32> to vector<8x8x8xf32>
    %222 = arith.subf %218, %221 : vector<8x8x8xf32>
    %223 = math.exp %222 : vector<8x8x8xf32>
    %cst_60 = arith.constant dense<0.000000e+00> : vector<8x8xf32>
    %224 = vector.multi_reduction <add>, %223, %cst_60 [2] : vector<8x8x8xf32> to vector<8x8xf32>
    %225 = vector.shape_cast %224 : vector<8x8xf32> to vector<8x8x1xf32>
    %226 = vector.broadcast %225 : vector<8x8x1xf32> to vector<8x8x8xf32>
    %227 = arith.divf %223, %226 : vector<8x8x8xf32>
    %c0_61 = arith.constant 0 : index
    %c0_62 = arith.constant 0 : index
    %c0_63 = arith.constant 0 : index
    %228 = vector.load %arg7[%c0_61, %c0_62, %c0_63] : memref<8x8x8xf32, #tpu.memory_space<vmem>>, vector<8x8x8xf32>
    tpu.vector_store %arg7[%c0_61, %c0_62, %c0_63], %227 {strides = array<i32>} : memref<8x8x8xf32, #tpu.memory_space<vmem>>, vector<8x8x8xf32>,
    "tpu.trace_start"() <{level = 10 : i32, message = "bts,bsh->bth"}> : () -> ()
    %cst_64 = arith.constant dense<0.000000e+00> : vector<8x8x128xf32>
    %229 = tpu.matmul %227, %213, %cst_64 {dimension_numbers = #tpu.dot_dimension_numbers<[2], [1], [1], [2], [0, 0, 0, 1, 1, 2], [0], [0]>} : vector<8x8x8xf32>, vector<8x8x128xf32>, vector<8x8x128xf32> -> vector<8x8x128xf32>
    "tpu.trace_stop"() : () -> ()
    %230 = vector.shape_cast %229 : vector<8x8x128xf32> to vector<64x128xf32>
    %231 = vector.shape_cast %212 : vector<8x8x128xf32> to vector<64x128xf32>
    %232 = tpu.concatenate %230, %231 in 1 : vector<64x128xf32>, vector<64x128xf32> -> vector<64x256xf32>
    %c0_65 = arith.constant 0 : index
    %c0_66 = arith.constant 0 : index
    %233 = vector.load %arg5[%c0_65, %c0_66] : memref<392x128xf32, #tpu.memory_space<vmem>>, vector<256x128xf32>
    %c256_67 = arith.constant 256 : index
    %c0_68 = arith.constant 0 : index
    %234 = vector.load %arg5[%c256_67, %c0_68] : memref<392x128xf32, #tpu.memory_space<vmem>>, vector<128x128xf32>
    %c384 = arith.constant 384 : index
    %c0_69 = arith.constant 0 : index
    %235 = vector.load %arg5[%c384, %c0_69] : memref<392x128xf32, #tpu.memory_space<vmem>>, vector<1x128xf32>
    %c385 = arith.constant 385 : index
    %c0_70 = arith.constant 0 : index
    %236 = vector.load %arg5[%c385, %c0_70] : memref<392x128xf32, #tpu.memory_space<vmem>>, vector<1x128xf32>
    %cst_71 = arith.constant dense<0.000000e+00> : vector<64x128xf32>
    %237 = tpu.matmul %232, %233, %cst_71 {dimension_numbers = #tpu.dot_dimension_numbers<[1], [0], [0], [1], [0, 0, 1, 1], [], []>} : vector<64x256xf32>, vector<256x128xf32>, vector<64x128xf32> -> vector<64x128xf32>
    %238 = vector.broadcast %235 : vector<1x128xf32> to vector<64x128xf32>
    %239 = arith.addf %237, %238 : vector<64x128xf32>
    %240 = math.tanh %239 : vector<64x128xf32>
    %cst_72 = arith.constant dense<0.000000e+00> : vector<64x128xf32>
    %241 = tpu.matmul %240, %234, %cst_72 {dimension_numbers = #tpu.dot_dimension_numbers<[1], [0], [0], [1], [0, 0, 1, 1], [], []>} : vector<64x128xf32>, vector<128x128xf32>, vector<64x128xf32> -> vector<64x128xf32>
    %242 = vector.broadcast %236 : vector<1x128xf32> to vector<64x128xf32>
    %243 = arith.addf %241, %242 : vector<64x128xf32>
    %c0_73 = arith.constant 0 : index
    %c0_74 = arith.constant 0 : index
    %244 = vector.load %arg6[%c0_73, %c0_74] : memref<64x128xf32, #tpu.memory_space<vmem>>, vector<64x128xf32>
    tpu.vector_store %arg6[%c0_73, %c0_74], %243 {strides = array<i32>} : memref<64x128xf32, #tpu.memory_space<vmem>>, vector<64x128xf32>,
    return
  }
}

</mosaic_0001>

<llo_original>
// kernel: recurrent_decoder_forward.1
$region0: #{recurrent_decoder_forward.1}
  #allocation0 [shape = 'u32[]', space=smem, size = 0x4, offset = 0x4, fixed_abs, tag = 'smem constant byte address 0x4 - core index']
  #allocation1 [shape = 'u32[144,128]{1,0:T(1,128)}', space=vmem, size = 0x12000, scoped, tag = 'internal scratch']
  #allocation2 [shape = 'f32[8,8,128]{2,1,0:T(8,128)}', space=vmem, size = 0x8000, scoped, tag = 'scratch operand']
  %s0 = inlined_call_operand.vmem [shape: f32[64,32], index: 0, kind: input, shape index: {}]
  %s1 = inlined_call_operand.vmem [shape: f32[8,128], index: 1, kind: input, shape index: {}]
  %s2 = inlined_call_operand.vmem [shape: f32[8,8,128], index: 2, kind: input, shape index: {}]
  %s3 = inlined_call_operand.vmem [shape: f32[8,8], index: 3, kind: input, shape index: {}]
  %s4 = inlined_call_operand.vmem [shape: f32[168,384], index: 4, kind: input, shape index: {}]
  %s5 = inlined_call_operand.hbm [shape: f32[392,128], index: 5, kind: input, shape index: {}]
  %s6 = inlined_call_operand.vmem [shape: f32[64,128], index: 6, kind: output, shape index: {0}]
  %s7 = inlined_call_operand.vmem [shape: f32[8,8,8], index: 7, kind: output, shape index: {1}]
  %s8 = inlined_call_operand.vmem [shape: f32[8,128], index: 8, kind: output, shape index: {2}]
  %9 = xla_tuple %s6, %s7, %s8
  %s10 = sld [smem:[#allocation0]]
  $region54: #{recurrent_decoder_forward.1} parent=0
    _
  %s12 = ssub.s32 1, %s10
  %s13 = scalar_select 0, %s12, %s10
  $region1: #{recurrent_decoder_forward.1} parent=0
    #allocation3 [shape = 'u8[200704]{0}', space=vmem, size = 0x31000, scoped, tag = 'input window, operand 5, single buffered']
    #allocation4 [shape = 's32[1]{0}', space=sflag, size = 0x4, scoped, tag = 'scoped memory for recurrent_decoder_forward.1']
    %14 = vsyncpa [#allocation4], 0
    // Predicated region
    $region2: #{recurrent_decoder_forward.1} parent=1 // pred_check
      _
    $region3: #{recurrent_decoder_forward.1} parent=1 // pred_check_branch
      %16 = sbr.rel (0) target = $region5
    $region4: #{recurrent_decoder_forward.1} parent=1 // pred_region
      _
    $region5: #{recurrent_decoder_forward.1} parent=1 // pred_fallthru
      _
    // Predicated region
    $region6: #{recurrent_decoder_forward.1} parent=1 // pred_check
      _
    $region7: #{recurrent_decoder_forward.1} parent=1 // pred_check_branch
      %18 = sbr.rel (0) target = $region9
    $region8: #{recurrent_decoder_forward.1} parent=1 // pred_region
      _
    $region9: #{recurrent_decoder_forward.1} parent=1 // pred_fallthru
      _
    // Predicated region
    $region10: #{recurrent_decoder_forward.1} parent=1 // pred_check
      _
    $region11: #{recurrent_decoder_forward.1} parent=1 // pred_check_branch
      %20 = sbr.rel (0) target = $region13
    $region12: #{recurrent_decoder_forward.1} parent=1 // pred_region
      _
    $region13: #{recurrent_decoder_forward.1} parent=1 // pred_fallthru
      _
    // Predicated region
    $region14: #{recurrent_decoder_forward.1} parent=1 // pred_check
      _
    $region15: #{recurrent_decoder_forward.1} parent=1 // pred_check_branch
      %22 = sbr.rel (0) target = $region17
    $region16: #{recurrent_decoder_forward.1} parent=1 // pred_region
      _
    $region17: #{recurrent_decoder_forward.1} parent=1 // pred_fallthru
      _
    // Predicated region
    $region18: #{recurrent_decoder_forward.1} parent=1 // pred_check
      _
    $region19: #{recurrent_decoder_forward.1} parent=1 // pred_check_branch
      %24 = sbr.rel (0) target = $region21
    $region20: #{recurrent_decoder_forward.1} parent=1 // pred_region
      _
    $region21: #{recurrent_decoder_forward.1} parent=1 // pred_fallthru
      _
    // Predicated region
    $region22: #{recurrent_decoder_forward.1} parent=1 // pred_check
      _
    $region23: #{recurrent_decoder_forward.1} parent=1 // pred_check_branch
      %26 = sbr.rel (0) target = $region25
    $region24: #{recurrent_decoder_forward.1} parent=1 // pred_region
      %s28 = ssub.s32 6272, 6272
      %29 = vsyncadd [#allocation4], %s28
      %s30 = sshll.u32 [#allocation3], 4
      %s31 = int_to_ptr.vmem [resolvable:$true] %s30
      %36 = dma.hbm_to_vmem [thread:$0]  %s5, 6272, %s31, [#allocation4], 128, 128, 8
    $region25: #{recurrent_decoder_forward.1} parent=1 // pred_fallthru
      _
    // Predicated region
    $region26: #{recurrent_decoder_forward.1} parent=1 // pred_check
      _
    $region27: #{recurrent_decoder_forward.1} parent=1 // pred_check_branch
      %38 = sbr.rel (0) target = $region29
    $region28: #{recurrent_decoder_forward.1} parent=1 // pred_region
      %39 = dma.done [#allocation4], 6272
    $region29: #{recurrent_decoder_forward.1} parent=1 // pred_fallthru
      _
    %v40 = vld [vmem:[%s4] sm:$0xff]
    %v41 = vld [vmem:[%s4 + $0x8] sm:$0xff]
    %v42 = vld [vmem:[%s4 + $0x10] sm:$0xff]
    %v43 = vld [vmem:[%s4 + $0x18] sm:$0xff]
    %v44 = vld [vmem:[%s4 + $0x20] sm:$0xff]
    %v45 = vld [vmem:[%s4 + $0x28] sm:$0xff]
    %v46 = vld [vmem:[%s4 + $0x30] sm:$0xff]
    %v47 = vld [vmem:[%s4 + $0x38] sm:$0xff]
    %v48 = vld [vmem:[%s4 + $0x40] sm:$0xff]
    %v49 = vld [vmem:[%s4 + $0x48] sm:$0xff]
    %v50 = vld [vmem:[%s4 + $0x50] sm:$0xff]
    %v51 = vld [vmem:[%s4 + $0x58] sm:$0xff]
    %v52 = vld [vmem:[%s4 + $0x60] sm:$0xff]
    %v53 = vld [vmem:[%s4 + $0x68] sm:$0xff]
    %v54 = vld [vmem:[%s4 + $0x70] sm:$0xff]
    %v55 = vld [vmem:[%s4 + $0x78] sm:$0xff]
    %v56 = vld [vmem:[%s4 + $0x80] sm:$0xff]
    %v57 = vld [vmem:[%s4 + $0x88] sm:$0xff]
    %v58 = vld [vmem:[%s4 + $0x90] sm:$0xff]
    %v59 = vld [vmem:[%s4 + $0x98] sm:$0xff]
    %v60 = vld [vmem:[%s4 + $0xa0] sm:$0xff]
    %v61 = vld [vmem:[%s4 + $0xa8] sm:$0xff]
    %v62 = vld [vmem:[%s4 + $0xb0] sm:$0xff]
    %v63 = vld [vmem:[%s4 + $0xb8] sm:$0xff]
    %v64 = vld [vmem:[%s4 + $0xc0] sm:$0xff]
    %v65 = vld [vmem:[%s4 + $0xc8] sm:$0xff]
    %v66 = vld [vmem:[%s4 + $0xd0] sm:$0xff]
    %v67 = vld [vmem:[%s4 + $0xd8] sm:$0xff]
    %v68 = vld [vmem:[%s4 + $0xe0] sm:$0xff]
    %v69 = vld [vmem:[%s4 + $0xe8] sm:$0xff]
    %v70 = vld [vmem:[%s4 + $0xf0] sm:$0xff]
    %v71 = vld [vmem:[%s4 + $0xf8] sm:$0xff]
    %v72 = vld [vmem:[%s4 + $0x100] sm:$0xff]
    %v73 = vld [vmem:[%s4 + $0x108] sm:$0xff]
    %v74 = vld [vmem:[%s4 + $0x110] sm:$0xff]
    %v75 = vld [vmem:[%s4 + $0x118] sm:$0xff]
    %v76 = vld [vmem:[%s4 + $0x120] sm:$0xff]
    %v77 = vld [vmem:[%s4 + $0x128] sm:$0xff]
    %v78 = vld [vmem:[%s4 + $0x130] sm:$0xff]
    %v79 = vld [vmem:[%s4 + $0x138] sm:$0xff]
    %v80 = vld [vmem:[%s4 + $0x140] sm:$0xff]
    %v81 = vld [vmem:[%s4 + $0x148] sm:$0xff]
    %v82 = vld [vmem:[%s4 + $0x150] sm:$0xff]
    %v83 = vld [vmem:[%s4 + $0x158] sm:$0xff]
    %v84 = vld [vmem:[%s4 + $0x160] sm:$0xff]
    %v85 = vld [vmem:[%s4 + $0x168] sm:$0xff]
    %v86 = vld [vmem:[%s4 + $0x170] sm:$0xff]
    %v87 = vld [vmem:[%s4 + $0x178] sm:$0xff]
    %v88 = vld [vmem:[%s4 + $0x180] sm:$0xff]
    %v89 = vld [vmem:[%s4 + $0x188] sm:$0xff]
    %v90 = vld [vmem:[%s4 + $0x190] sm:$0xff]
    %v91 = vld [vmem:[%s4 + $0x198] sm:$0xff]
    %v92 = vld [vmem:[%s4 + $0x1a0] sm:$0xff]
    %v93 = vld [vmem:[%s4 + $0x1a8] sm:$0xff]
    %v94 = vld [vmem:[%s4 + $0x1b0] sm:$0xff]
    %v95 = vld [vmem:[%s4 + $0x1b8] sm:$0xff]
    %v96 = vld [vmem:[%s4 + $0x1c0] sm:$0xff]
    %v97 = vld [vmem:[%s4 + $0x1c8] sm:$0xff]
    %v98 = vld [vmem:[%s4 + $0x1d0] sm:$0xff]
    %v99 = vld [vmem:[%s4 + $0x1d8] sm:$0xff]
    %s100 = scalar_lea.vmem %s4, 480
    %v101 = vld [vmem:[%s100] ss:$8 sm:$0x7]
    %v102 = vld [vmem:[%s4 + $0x1f1] ss:$0 sm:$0xff]
    %v103 = vld [vmem:[%s0] sm:$0xff]
    %v104 = vld [vmem:[%s0 + $0x8] sm:$0xff]
    %v105 = vld [vmem:[%s0 + $0x10] sm:$0xff]
    %v106 = vld [vmem:[%s0 + $0x18] sm:$0xff]
    %v107 = vld [vmem:[%s0 + $0x20] sm:$0xff]
    %v108 = vld [vmem:[%s0 + $0x28] sm:$0xff]
    %v109 = vld [vmem:[%s0 + $0x30] sm:$0xff]
    %v110 = vld [vmem:[%s0 + $0x38] sm:$0xff]
    %v112 = vlaneseq
    %v113 = vshrl.u32 %v112, 7
    %v114 = vsub.s32 0, %v113
    %v115 = vrot.slane %v101, %v114
    %v116 = vlaneseq
    %v117 = vshrl.u32 %v116, 7
    %v118 = vsub.s32 1, %v117
    %v119 = vrot.slane %v101, %v118
    %v120 = vlaneseq
    %v121 = vshrl.u32 %v120, 7
    %v122 = vsub.s32 2, %v121
    %v123 = vrot.slane %v101, %v122
    %vm127 = vcmask 261120
    %v129 = vsel %vm127, %v103, 0
    %v132 = vsel %vm127, %v104, 0
    %v135 = vsel %vm127, %v105, 0
    %v138 = vsel %vm127, %v106, 0
    %v141 = vsel %vm127, %v107, 0
    %v144 = vsel %vm127, %v108, 0
    %v147 = vsel %vm127, %v109, 0
    %v150 = vsel %vm127, %v110, 0
    %152 = vmatprep.subr.mxu0 0.0
    %153 = vmatpush1.msra.mxu0 0.0
    %154 = vmatprep.subr.mxu0 0.0
    %155 = vmatpush1.msra.mxu0 0.0
    %156 = vmatprep.subr.mxu0 0.0
    %157 = vmatpush1.msra.mxu0 0.0
    %158 = vmatprep.subr.mxu0 0.0
    %159 = vmatpush1.msra.mxu0 0.0
    %160 = vmatprep.subr.mxu0 0.0
    %161 = vmatpush1.msra.mxu0 0.0
    %162 = vmatprep.subr.mxu0 0.0
    %163 = vmatpush1.msra.mxu0 0.0
    %164 = vmatprep.subr.mxu0 0.0
    %165 = vmatpush1.msra.mxu0 0.0
    %166 = vmatprep.subr.mxu0 0.0
    %167 = vmatpush1.msra.mxu0 0.0
    %168 = vmatprep.subr.mxu0 0.0
    %169 = vmatpush1.msra.mxu0 0.0
    %170 = vmatprep.subr.mxu0 0.0
    %171 = vmatpush1.msra.mxu0 0.0
    %172 = vmatprep.subr.mxu0 0.0
    %173 = vmatpush1.msra.mxu0 0.0
    %174 = vmatprep.subr.mxu0 0.0
    %175 = vmatpush1.msra.mxu0 0.0
    %176 = vmatprep.subr.mxu0 %v50
    %177 = vmatpush1.msra.mxu0 %v49
    %178 = vmatprep.subr.mxu0 %v47
    %179 = vmatpush1.msra.mxu0 %v46
    %180 = vmatprep.subr.mxu0 %v44
    %181 = vmatpush1.msra.mxu0 %v43
    %182 = vmatprep.subr.mxu0 %v41
    %183 = vmatpush1.msra.mxu0 %v40
    %184 = vmatprep.subr.mxu0 0.0
    %185 = vmatpush2.msra.mxu0 0.0
    %186 = vmatprep.subr.mxu0 0.0
    %187 = vmatpush2.msra.mxu0 0.0
    %188 = vmatprep.subr.mxu0 0.0
    %189 = vmatpush2.msra.mxu0 0.0
    %190 = vmatprep.subr.mxu0 0.0
    %191 = vmatpush2.msra.mxu0 0.0
    %192 = vmatprep.subr.mxu0 0.0
    %193 = vmatpush2.msra.mxu0 0.0
    %194 = vmatprep.subr.mxu0 0.0
    %195 = vmatpush2.msra.mxu0 0.0
    %196 = vmatprep.subr.mxu0 0.0
    %197 = vmatpush2.msra.mxu0 0.0
    %198 = vmatprep.subr.mxu0 0.0
    %199 = vmatpush2.msra.mxu0 0.0
    %200 = vmatprep.subr.mxu0 0.0
    %201 = vmatpush2.msra.mxu0 0.0
    %202 = vmatprep.subr.mxu0 0.0
    %203 = vmatpush2.msra.mxu0 0.0
    %204 = vmatprep.subr.mxu0 0.0
    %205 = vmatpush2.msra.mxu0 0.0
    %206 = vmatprep.subr.mxu0 0.0
    %207 = vmatpush2.msra.mxu0 0.0
    %208 = vmatprep.subr.mxu0 0.0
    %209 = vmatpush2.msra.mxu0 0.0
    %210 = vmatprep.subr.mxu0 0.0
    %211 = vmatpush2.msra.mxu0 0.0
    %212 = vmatprep.subr.mxu0 0.0
    %213 = vmatpush2.msra.mxu0 0.0
    %214 = vmatprep.subr.mxu0 0.0
    %215 = vmatpush2.msra.mxu0 0.0
    %216 = vmatprep.mubr.f32.mxu0 0.0
    %217 = vmatmul.mubr.f32.gmra.mxu0 %v129
    %v218 = vpop.f32.mrf.mxu0
    %v219 = vadd.f32 %v115, %v218
    %v220 = vpop.f32.mrf.mxu0
    %v221 = vadd.f32 %v119, %v220
    %222 = vmatprep.mubr.f32.mxu0 0.0
    %223 = vmatmul.mubr.f32.gmra.mxu0 %v132
    %v224 = vpop.f32.mrf.mxu0
    %v225 = vadd.f32 %v115, %v224
    %v226 = vpop.f32.mrf.mxu0
    %v227 = vadd.f32 %v119, %v226
    %228 = vmatprep.mubr.f32.mxu0 0.0
    %229 = vmatmul.mubr.f32.gmra.mxu0 %v135
    %v230 = vpop.f32.mrf.mxu0
    %v231 = vadd.f32 %v115, %v230
    %v232 = vpop.f32.mrf.mxu0
    %v233 = vadd.f32 %v119, %v232
    %234 = vmatprep.mubr.f32.mxu0 0.0
    %235 = vmatmul.mubr.f32.gmra.mxu0 %v138
    %v236 = vpop.f32.mrf.mxu0
    %v237 = vadd.f32 %v115, %v236
    %v238 = vpop.f32.mrf.mxu0
    %v239 = vadd.f32 %v119, %v238
    %240 = vmatprep.mubr.f32.mxu0 0.0
    %241 = vmatmul.mubr.f32.gmra.mxu0 %v141
    %v242 = vpop.f32.mrf.mxu0
    %v243 = vadd.f32 %v115, %v242
    %v244 = vpop.f32.mrf.mxu0
    %v245 = vadd.f32 %v119, %v244
    %246 = vmatprep.mubr.f32.mxu0 0.0
    %247 = vmatmul.mubr.f32.gmra.mxu0 %v144
    %v248 = vpop.f32.mrf.mxu0
    %v249 = vadd.f32 %v115, %v248
    %v250 = vpop.f32.mrf.mxu0
    %v251 = vadd.f32 %v119, %v250
    %252 = vmatprep.mubr.f32.mxu0 0.0
    %253 = vmatmul.mubr.f32.gmra.mxu0 %v147
    %v254 = vpop.f32.mrf.mxu0
    %v255 = vadd.f32 %v115, %v254
    %v256 = vpop.f32.mrf.mxu0
    %v257 = vadd.f32 %v119, %v256
    %258 = vmatprep.mubr.f32.mxu0 0.0
    %259 = vmatmul.mubr.f32.gmra.mxu0 %v150
    %v260 = vpop.f32.mrf.mxu0
    %v261 = vadd.f32 %v115, %v260
    %v262 = vpop.f32.mrf.mxu0
    %v263 = vadd.f32 %v119, %v262
    %264 = vdwg.mxu0
    %265 = vmatprep.subr.mxu0 0.0
    %266 = vmatpush1.msra.mxu0 0.0
    %267 = vmatprep.subr.mxu0 0.0
    %268 = vmatpush1.msra.mxu0 0.0
    %269 = vmatprep.subr.mxu0 0.0
    %270 = vmatpush1.msra.mxu0 0.0
    %271 = vmatprep.subr.mxu0 0.0
    %272 = vmatpush1.msra.mxu0 0.0
    %273 = vmatprep.subr.mxu0 0.0
    %274 = vmatpush1.msra.mxu0 0.0
    %275 = vmatprep.subr.mxu0 0.0
    %276 = vmatpush1.msra.mxu0 0.0
    %277 = vmatprep.subr.mxu0 0.0
    %278 = vmatpush1.msra.mxu0 0.0
    %279 = vmatprep.subr.mxu0 0.0
    %280 = vmatpush1.msra.mxu0 0.0
    %281 = vmatprep.subr.mxu0 0.0
    %282 = vmatpush1.msra.mxu0 0.0
    %283 = vmatprep.subr.mxu0 0.0
    %284 = vmatpush1.msra.mxu0 0.0
    %285 = vmatprep.subr.mxu0 0.0
    %286 = vmatpush1.msra.mxu0 0.0
    %287 = vmatprep.subr.mxu0 0.0
    %288 = vmatpush1.msra.mxu0 0.0
    %289 = vmatprep.subr.mxu0 0.0
    %290 = vmatpush1.msra.mxu0 %v51
    %291 = vmatprep.subr.mxu0 0.0
    %292 = vmatpush1.msra.mxu0 %v48
    %293 = vmatprep.subr.mxu0 0.0
    %294 = vmatpush1.msra.mxu0 %v45
    %295 = vmatprep.subr.mxu0 0.0
    %296 = vmatpush1.msra.mxu0 %v42
    %297 = vmatprep.subr.mxu0 0.0
    %298 = vmatpush2.msra.mxu0 0.0
    %299 = vmatprep.subr.mxu0 0.0
    %300 = vmatpush2.msra.mxu0 0.0
    %301 = vmatprep.subr.mxu0 0.0
    %302 = vmatpush2.msra.mxu0 0.0
    %303 = vmatprep.subr.mxu0 0.0
    %304 = vmatpush2.msra.mxu0 0.0
    %305 = vmatprep.subr.mxu0 0.0
    %306 = vmatpush2.msra.mxu0 0.0
    %307 = vmatprep.subr.mxu0 0.0
    %308 = vmatpush2.msra.mxu0 0.0
    %309 = vmatprep.subr.mxu0 0.0
    %310 = vmatpush2.msra.mxu0 0.0
    %311 = vmatprep.subr.mxu0 0.0
    %312 = vmatpush2.msra.mxu0 0.0
    %313 = vmatprep.subr.mxu0 0.0
    %314 = vmatpush2.msra.mxu0 0.0
    %315 = vmatprep.subr.mxu0 0.0
    %316 = vmatpush2.msra.mxu0 0.0
    %317 = vmatprep.subr.mxu0 0.0
    %318 = vmatpush2.msra.mxu0 0.0
    %319 = vmatprep.subr.mxu0 0.0
    %320 = vmatpush2.msra.mxu0 0.0
    %321 = vmatprep.subr.mxu0 0.0
    %322 = vmatpush2.msra.mxu0 0.0
    %323 = vmatprep.subr.mxu0 0.0
    %324 = vmatpush2.msra.mxu0 0.0
    %325 = vmatprep.subr.mxu0 0.0
    %326 = vmatpush2.msra.mxu0 0.0
    %327 = vmatprep.subr.mxu0 0.0
    %328 = vmatpush2.msra.mxu0 0.0
    %329 = vmatprep.mubr.f32.mxu0 0.0
    %330 = vmatmul.mubr.f32.gmra.mxu0 %v129
    %v331 = vpop.f32.mrf.mxu0
    %v332 = vadd.f32 %v123, %v331
    %v333 = vpop.f32.mrf.mxu0
    %334 = vmatprep.mubr.f32.mxu0 0.0
    %335 = vmatmul.mubr.f32.gmra.mxu0 %v132
    %v336 = vpop.f32.mrf.mxu0
    %v337 = vadd.f32 %v123, %v336
    %v338 = vpop.f32.mrf.mxu0
    %339 = vmatprep.mubr.f32.mxu0 0.0
    %340 = vmatmul.mubr.f32.gmra.mxu0 %v135
    %v341 = vpop.f32.mrf.mxu0
    %v342 = vadd.f32 %v123, %v341
    %v343 = vpop.f32.mrf.mxu0
    %344 = vmatprep.mubr.f32.mxu0 0.0
    %345 = vmatmul.mubr.f32.gmra.mxu0 %v138
    %v346 = vpop.f32.mrf.mxu0
    %v347 = vadd.f32 %v123, %v346
    %v348 = vpop.f32.mrf.mxu0
    %349 = vmatprep.mubr.f32.mxu0 0.0
    %350 = vmatmul.mubr.f32.gmra.mxu0 %v141
    %v351 = vpop.f32.mrf.mxu0
    %v352 = vadd.f32 %v123, %v351
    %v353 = vpop.f32.mrf.mxu0
    %354 = vmatprep.mubr.f32.mxu0 0.0
    %355 = vmatmul.mubr.f32.gmra.mxu0 %v144
    %v356 = vpop.f32.mrf.mxu0
    %v357 = vadd.f32 %v123, %v356
    %v358 = vpop.f32.mrf.mxu0
    %359 = vmatprep.mubr.f32.mxu0 0.0
    %360 = vmatmul.mubr.f32.gmra.mxu0 %v147
    %v361 = vpop.f32.mrf.mxu0
    %v362 = vadd.f32 %v123, %v361
    %v363 = vpop.f32.mrf.mxu0
    %364 = vmatprep.mubr.f32.mxu0 0.0
    %365 = vmatmul.mubr.f32.gmra.mxu0 %v150
    %v366 = vpop.f32.mrf.mxu0
    %v367 = vadd.f32 %v123, %v366
    %v368 = vpop.f32.mrf.mxu0
    %369 = vdwg.mxu0
    %v370 = vld [vmem:[%s1] sm:$0xff]
    %371 = vmatprep.subr.mxu0 %v98
    %372 = vmatpush1.msra.mxu0 %v97
    %373 = vmatprep.subr.mxu0 %v95
    %374 = vmatpush1.msra.mxu0 %v94
    %375 = vmatprep.subr.mxu0 %v92
    %376 = vmatpush1.msra.mxu0 %v91
    %377 = vmatprep.subr.mxu0 %v89
    %378 = vmatpush1.msra.mxu0 %v88
    %379 = vmatprep.subr.mxu0 %v86
    %380 = vmatpush1.msra.mxu0 %v85
    %381 = vmatprep.subr.mxu0 %v83
    %382 = vmatpush1.msra.mxu0 %v82
    %383 = vmatprep.subr.mxu0 %v80
    %384 = vmatpush1.msra.mxu0 %v79
    %385 = vmatprep.subr.mxu0 %v77
    %386 = vmatpush1.msra.mxu0 %v76
    %387 = vmatprep.subr.mxu0 %v74
    %388 = vmatpush1.msra.mxu0 %v73
    %389 = vmatprep.subr.mxu0 %v71
    %390 = vmatpush1.msra.mxu0 %v70
    %391 = vmatprep.subr.mxu0 %v68
    %392 = vmatpush1.msra.mxu0 %v67
    %393 = vmatprep.subr.mxu0 %v65
    %394 = vmatpush1.msra.mxu0 %v64
    %395 = vmatprep.subr.mxu0 %v62
    %396 = vmatpush1.msra.mxu0 %v61
    %397 = vmatprep.subr.mxu0 %v59
    %398 = vmatpush1.msra.mxu0 %v58
    %399 = vmatprep.subr.mxu0 %v56
    %400 = vmatpush1.msra.mxu0 %v55
    %401 = vmatprep.subr.mxu0 %v53
    %402 = vmatpush1.msra.mxu0 %v52
    %403 = vmatprep.subr.mxu0 0.0
    %404 = vmatpush2.msra.mxu0 0.0
    %405 = vmatprep.subr.mxu0 0.0
    %406 = vmatpush2.msra.mxu0 0.0
    %407 = vmatprep.subr.mxu0 0.0
    %408 = vmatpush2.msra.mxu0 0.0
    %409 = vmatprep.subr.mxu0 0.0
    %410 = vmatpush2.msra.mxu0 0.0
    %411 = vmatprep.subr.mxu0 0.0
    %412 = vmatpush2.msra.mxu0 0.0
    %413 = vmatprep.subr.mxu0 0.0
    %414 = vmatpush2.msra.mxu0 0.0
    %415 = vmatprep.subr.mxu0 0.0
    %416 = vmatpush2.msra.mxu0 0.0
    %417 = vmatprep.subr.mxu0 0.0
    %418 = vmatpush2.msra.mxu0 0.0
    %419 = vmatprep.subr.mxu0 0.0
    %420 = vmatpush2.msra.mxu0 0.0
    %421 = vmatprep.subr.mxu0 0.0
    %422 = vmatpush2.msra.mxu0 0.0
    %423 = vmatprep.subr.mxu0 0.0
    %424 = vmatpush2.msra.mxu0 0.0
    %425 = vmatprep.subr.mxu0 0.0
    %426 = vmatpush2.msra.mxu0 0.0
    %427 = vmatprep.subr.mxu0 0.0
    %428 = vmatpush2.msra.mxu0 0.0
    %429 = vmatprep.subr.mxu0 0.0
    %430 = vmatpush2.msra.mxu0 0.0
    %431 = vmatprep.subr.mxu0 0.0
    %432 = vmatpush2.msra.mxu0 0.0
    %433 = vmatprep.subr.mxu0 0.0
    %434 = vmatpush2.msra.mxu0 0.0
    %435 = vmatprep.mubr.f32.mxu0 0.0
    %436 = vmatmul.mubr.f32.gmra.mxu0 %v370
    %v437 = vpop.f32.mrf.mxu0
    %v438 = vadd.f32 0.0, %v437
    %v439 = vpop.f32.mrf.mxu0
    %v440 = vadd.f32 0.0, %v439
    %441 = vdwg.mxu0
    %442 = vmatprep.subr.mxu0 0.0
    %443 = vmatpush1.msra.mxu0 %v99
    %444 = vmatprep.subr.mxu0 0.0
    %445 = vmatpush1.msra.mxu0 %v96
    %446 = vmatprep.subr.mxu0 0.0
    %447 = vmatpush1.msra.mxu0 %v93
    %448 = vmatprep.subr.mxu0 0.0
    %449 = vmatpush1.msra.mxu0 %v90
    %450 = vmatprep.subr.mxu0 0.0
    %451 = vmatpush1.msra.mxu0 %v87
    %452 = vmatprep.subr.mxu0 0.0
    %453 = vmatpush1.msra.mxu0 %v84
    %454 = vmatprep.subr.mxu0 0.0
    %455 = vmatpush1.msra.mxu0 %v81
    %456 = vmatprep.subr.mxu0 0.0
    %457 = vmatpush1.msra.mxu0 %v78
    %458 = vmatprep.subr.mxu0 0.0
    %459 = vmatpush1.msra.mxu0 %v75
    %460 = vmatprep.subr.mxu0 0.0
    %461 = vmatpush1.msra.mxu0 %v72
    %462 = vmatprep.subr.mxu0 0.0
    %463 = vmatpush1.msra.mxu0 %v69
    %464 = vmatprep.subr.mxu0 0.0
    %465 = vmatpush1.msra.mxu0 %v66
    %466 = vmatprep.subr.mxu0 0.0
    %467 = vmatpush1.msra.mxu0 %v63
    %468 = vmatprep.subr.mxu0 0.0
    %469 = vmatpush1.msra.mxu0 %v60
    %470 = vmatprep.subr.mxu0 0.0
    %471 = vmatpush1.msra.mxu0 %v57
    %472 = vmatprep.subr.mxu0 0.0
    %473 = vmatpush1.msra.mxu0 %v54
    %474 = vmatprep.subr.mxu0 0.0
    %475 = vmatpush2.msra.mxu0 0.0
    %476 = vmatprep.subr.mxu0 0.0
    %477 = vmatpush2.msra.mxu0 0.0
    %478 = vmatprep.subr.mxu0 0.0
    %479 = vmatpush2.msra.mxu0 0.0
    %480 = vmatprep.subr.mxu0 0.0
    %481 = vmatpush2.msra.mxu0 0.0
    %482 = vmatprep.subr.mxu0 0.0
    %483 = vmatpush2.msra.mxu0 0.0
    %484 = vmatprep.subr.mxu0 0.0
    %485 = vmatpush2.msra.mxu0 0.0
    %486 = vmatprep.subr.mxu0 0.0
    %487 = vmatpush2.msra.mxu0 0.0
    %488 = vmatprep.subr.mxu0 0.0
    %489 = vmatpush2.msra.mxu0 0.0
    %490 = vmatprep.subr.mxu0 0.0
    %491 = vmatpush2.msra.mxu0 0.0
    %492 = vmatprep.subr.mxu0 0.0
    %493 = vmatpush2.msra.mxu0 0.0
    %494 = vmatprep.subr.mxu0 0.0
    %495 = vmatpush2.msra.mxu0 0.0
    %496 = vmatprep.subr.mxu0 0.0
    %497 = vmatpush2.msra.mxu0 0.0
    %498 = vmatprep.subr.mxu0 0.0
    %499 = vmatpush2.msra.mxu0 0.0
    %500 = vmatprep.subr.mxu0 0.0
    %501 = vmatpush2.msra.mxu0 0.0
    %502 = vmatprep.subr.mxu0 0.0
    %503 = vmatpush2.msra.mxu0 0.0
    %504 = vmatprep.subr.mxu0 0.0
    %505 = vmatpush2.msra.mxu0 0.0
    %506 = vmatprep.mubr.f32.mxu0 0.0
    %507 = vmatmul.mubr.f32.gmra.mxu0 %v370
    %v508 = vpop.f32.mrf.mxu0
    %v509 = vadd.f32 0.0, %v508
    %v510 = vpop.f32.mrf.mxu0
    %511 = vdwg.mxu0
    %v512 = vadd.f32 %v219, %v438
    %v513 = vadd.f32 %v221, %v440
    %v514 = vxor.u32 %v512, 2147483648
    %v515 = vxor.u32 %v513, 2147483648
    %v516 = vmul.f32 %v514, 1.442695
    %v517 = vpow.pop %v516
    %v518 = vmul.f32 %v515, 1.442695
    %v519 = vpow.pop %v518
    %v520 = vadd.f32 %v517, 1.0
    %v521 = vadd.f32 %v519, 1.0
    %v522 = vrcp.pop %v520
    %v523 = vmul.f32 1.0, %v522
    %v524 = vrcp.pop %v521
    %v525 = vmul.f32 1.0, %v524
    %v526 = vadd.f32 %v509, %v102
    %v527 = vmul.f32 %v523, %v526
    %v528 = vadd.f32 %v332, %v527
    %v529 = vtanh.pop %v528
    %v530 = vsub.f32 1.0, %v525
    %v531 = vmul.f32 %v530, %v529
    %v532 = vmul.f32 %v525, %v370
    %v533 = vadd.f32 %v531, %v532
    %v535 = vcombine.high %v533, %v533
    %v537 = vunpack.c.l.s4 1966171168
    %v538 = vunpack.c.0.s8 %v537
    %v539 = vlaneseq
    %v540 = vshrl.u32 %v539, 7
    %v541 = vsub.s32 %v538, %v540
    %v542 = vrot.slane %v533, %v541
    %v544 = vunpack.c.l.s4 1966171168
    %v545 = vunpack.c.0.s8 %v544
    %v546 = vlaneseq
    %v547 = vshrl.u32 %v546, 7
    %v548 = vsub.s32 %v545, %v547
    %v549 = vrot.slane %v535, %v548
    %v550 = vcombine.high %v542, %v542
    %v551 = vcombine.high %v549, %v549
    %v553 = vunpack.c.l.s4 1966171168
    %v554 = vunpack.c.0.s8 %v553
    %v555 = vlaneseq
    %v556 = vshrl.u32 %v555, 7
    %v557 = vsub.s32 %v554, %v556
    %v558 = vrot.slane %v542, %v557
    %v560 = vunpack.c.l.s4 1966171168
    %v561 = vunpack.c.0.s8 %v560
    %v562 = vlaneseq
    %v563 = vshrl.u32 %v562, 7
    %v564 = vsub.s32 %v561, %v563
    %v565 = vrot.slane %v549, %v564
    %v567 = vunpack.c.l.s4 1966171168
    %v568 = vunpack.c.0.s8 %v567
    %v569 = vlaneseq
    %v570 = vshrl.u32 %v569, 7
    %v571 = vsub.s32 %v568, %v570
    %v572 = vrot.slane %v550, %v571
    %v574 = vunpack.c.l.s4 1966171168
    %v575 = vunpack.c.0.s8 %v574
    %v576 = vlaneseq
    %v577 = vshrl.u32 %v576, 7
    %v578 = vsub.s32 %v575, %v577
    %v579 = vrot.slane %v551, %v578
    %v580 = vcombine.high %v558, %v558
    %v581 = vcombine.high %v565, %v565
    %v582 = vcombine.high %v572, %v572
    %v583 = vcombine.high %v579, %v579
    %592 = vst [vmem:[#allocation2] sm:$0x1] %v558
    %593 = vst [vmem:[#allocation2 + $0x8] sm:$0x1] %v572
    %594 = vst [vmem:[#allocation2 + $0x10] sm:$0x1] %v580
    %595 = vst [vmem:[#allocation2 + $0x18] sm:$0x1] %v582
    %596 = vst [vmem:[#allocation2 + $0x20] sm:$0x1] %v565
    %597 = vst [vmem:[#allocation2 + $0x28] sm:$0x1] %v579
    %598 = vst [vmem:[#allocation2 + $0x30] sm:$0x1] %v581
    %599 = vst [vmem:[#allocation2 + $0x38] sm:$0x1] %v583
    %600 = vmatprep.subr.mxu0 %v98
    %601 = vmatpush1.msra.mxu0 %v97
    %602 = vmatprep.subr.mxu0 %v95
    %603 = vmatpush1.msra.mxu0 %v94
    %604 = vmatprep.subr.mxu0 %v92
    %605 = vmatpush1.msra.mxu0 %v91
    %606 = vmatprep.subr.mxu0 %v89
    %607 = vmatpush1.msra.mxu0 %v88
    %608 = vmatprep.subr.mxu0 %v86
    %609 = vmatpush1.msra.mxu0 %v85
    %610 = vmatprep.subr.mxu0 %v83
    %611 = vmatpush1.msra.mxu0 %v82
    %612 = vmatprep.subr.mxu0 %v80
    %613 = vmatpush1.msra.mxu0 %v79
    %614 = vmatprep.subr.mxu0 %v77
    %615 = vmatpush1.msra.mxu0 %v76
    %616 = vmatprep.subr.mxu0 %v74
    %617 = vmatpush1.msra.mxu0 %v73
    %618 = vmatprep.subr.mxu0 %v71
    %619 = vmatpush1.msra.mxu0 %v70
    %620 = vmatprep.subr.mxu0 %v68
    %621 = vmatpush1.msra.mxu0 %v67
    %622 = vmatprep.subr.mxu0 %v65
    %623 = vmatpush1.msra.mxu0 %v64
    %624 = vmatprep.subr.mxu0 %v62
    %625 = vmatpush1.msra.mxu0 %v61
    %626 = vmatprep.subr.mxu0 %v59
    %627 = vmatpush1.msra.mxu0 %v58
    %628 = vmatprep.subr.mxu0 %v56
    %629 = vmatpush1.msra.mxu0 %v55
    %630 = vmatprep.subr.mxu0 %v53
    %631 = vmatpush1.msra.mxu0 %v52
    %632 = vmatprep.subr.mxu0 0.0
    %633 = vmatpush2.msra.mxu0 0.0
    %634 = vmatprep.subr.mxu0 0.0
    %635 = vmatpush2.msra.mxu0 0.0
    %636 = vmatprep.subr.mxu0 0.0
    %637 = vmatpush2.msra.mxu0 0.0
    %638 = vmatprep.subr.mxu0 0.0
    %639 = vmatpush2.msra.mxu0 0.0
    %640 = vmatprep.subr.mxu0 0.0
    %641 = vmatpush2.msra.mxu0 0.0
    %642 = vmatprep.subr.mxu0 0.0
    %643 = vmatpush2.msra.mxu0 0.0
    %644 = vmatprep.subr.mxu0 0.0
    %645 = vmatpush2.msra.mxu0 0.0
    %646 = vmatprep.subr.mxu0 0.0
    %647 = vmatpush2.msra.mxu0 0.0
    %648 = vmatprep.subr.mxu0 0.0
    %649 = vmatpush2.msra.mxu0 0.0
    %650 = vmatprep.subr.mxu0 0.0
    %651 = vmatpush2.msra.mxu0 0.0
    %652 = vmatprep.subr.mxu0 0.0
    %653 = vmatpush2.msra.mxu0 0.0
    %654 = vmatprep.subr.mxu0 0.0
    %655 = vmatpush2.msra.mxu0 0.0
    %656 = vmatprep.subr.mxu0 0.0
    %657 = vmatpush2.msra.mxu0 0.0
    %658 = vmatprep.subr.mxu0 0.0
    %659 = vmatpush2.msra.mxu0 0.0
    %660 = vmatprep.subr.mxu0 0.0
    %661 = vmatpush2.msra.mxu0 0.0
    %662 = vmatprep.subr.mxu0 0.0
    %663 = vmatpush2.msra.mxu0 0.0
    %664 = vmatprep.mubr.f32.mxu0 0.0
    %665 = vmatmul.mubr.f32.gmra.mxu0 %v533
    %v666 = vpop.f32.mrf.mxu0
    %v667 = vadd.f32 0.0, %v666
    %v668 = vpop.f32.mrf.mxu0
    %v669 = vadd.f32 0.0, %v668
    %670 = vdwg.mxu0
    %671 = vmatprep.subr.mxu0 0.0
    %672 = vmatpush1.msra.mxu0 %v99
    %673 = vmatprep.subr.mxu0 0.0
    %674 = vmatpush1.msra.mxu0 %v96
    %675 = vmatprep.subr.mxu0 0.0
    %676 = vmatpush1.msra.mxu0 %v93
    %677 = vmatprep.subr.mxu0 0.0
    %678 = vmatpush1.msra.mxu0 %v90
    %679 = vmatprep.subr.mxu0 0.0
    %680 = vmatpush1.msra.mxu0 %v87
    %681 = vmatprep.subr.mxu0 0.0
    %682 = vmatpush1.msra.mxu0 %v84
    %683 = vmatprep.subr.mxu0 0.0
    %684 = vmatpush1.msra.mxu0 %v81
    %685 = vmatprep.subr.mxu0 0.0
    %686 = vmatpush1.msra.mxu0 %v78
    %687 = vmatprep.subr.mxu0 0.0
    %688 = vmatpush1.msra.mxu0 %v75
    %689 = vmatprep.subr.mxu0 0.0
    %690 = vmatpush1.msra.mxu0 %v72
    %691 = vmatprep.subr.mxu0 0.0
    %692 = vmatpush1.msra.mxu0 %v69
    %693 = vmatprep.subr.mxu0 0.0
    %694 = vmatpush1.msra.mxu0 %v66
    %695 = vmatprep.subr.mxu0 0.0
    %696 = vmatpush1.msra.mxu0 %v63
    %697 = vmatprep.subr.mxu0 0.0
    %698 = vmatpush1.msra.mxu0 %v60
    %699 = vmatprep.subr.mxu0 0.0
    %700 = vmatpush1.msra.mxu0 %v57
    %701 = vmatprep.subr.mxu0 0.0
    %702 = vmatpush1.msra.mxu0 %v54
    %703 = vmatprep.subr.mxu0 0.0
    %704 = vmatpush2.msra.mxu0 0.0
    %705 = vmatprep.subr.mxu0 0.0
    %706 = vmatpush2.msra.mxu0 0.0
    %707 = vmatprep.subr.mxu0 0.0
    %708 = vmatpush2.msra.mxu0 0.0
    %709 = vmatprep.subr.mxu0 0.0
    %710 = vmatpush2.msra.mxu0 0.0
    %711 = vmatprep.subr.mxu0 0.0
    %712 = vmatpush2.msra.mxu0 0.0
    %713 = vmatprep.subr.mxu0 0.0
    %714 = vmatpush2.msra.mxu0 0.0
    %715 = vmatprep.subr.mxu0 0.0
    %716 = vmatpush2.msra.mxu0 0.0
    %717 = vmatprep.subr.mxu0 0.0
    %718 = vmatpush2.msra.mxu0 0.0
    %719 = vmatprep.subr.mxu0 0.0
    %720 = vmatpush2.msra.mxu0 0.0
    %721 = vmatprep.subr.mxu0 0.0
    %722 = vmatpush2.msra.mxu0 0.0
    %723 = vmatprep.subr.mxu0 0.0
    %724 = vmatpush2.msra.mxu0 0.0
    %725 = vmatprep.subr.mxu0 0.0
    %726 = vmatpush2.msra.mxu0 0.0
    %727 = vmatprep.subr.mxu0 0.0
    %728 = vmatpush2.msra.mxu0 0.0
    %729 = vmatprep.subr.mxu0 0.0
    %730 = vmatpush2.msra.mxu0 0.0
    %731 = vmatprep.subr.mxu0 0.0
    %732 = vmatpush2.msra.mxu0 0.0
    %733 = vmatprep.subr.mxu0 0.0
    %734 = vmatpush2.msra.mxu0 0.0
    %735 = vmatprep.mubr.f32.mxu0 0.0
    %736 = vmatmul.mubr.f32.gmra.mxu0 %v533
    %v737 = vpop.f32.mrf.mxu0
    %v738 = vadd.f32 0.0, %v737
    %v739 = vpop.f32.mrf.mxu0
    %740 = vdwg.mxu0
    %v741 = vadd.f32 %v225, %v667
    %v742 = vadd.f32 %v227, %v669
    %v743 = vxor.u32 %v741, 2147483648
    %v744 = vxor.u32 %v742, 2147483648
    %v745 = vmul.f32 %v743, 1.442695
    %v746 = vpow.pop %v745
    %v747 = vmul.f32 %v744, 1.442695
    %v748 = vpow.pop %v747
    %v749 = vadd.f32 %v746, 1.0
    %v750 = vadd.f32 %v748, 1.0
    %v751 = vrcp.pop %v749
    %v752 = vmul.f32 1.0, %v751
    %v753 = vrcp.pop %v750
    %v754 = vmul.f32 1.0, %v753
    %v755 = vadd.f32 %v738, %v102
    %v756 = vmul.f32 %v752, %v755
    %v757 = vadd.f32 %v337, %v756
    %v758 = vtanh.pop %v757
    %v759 = vsub.f32 1.0, %v754
    %v760 = vmul.f32 %v759, %v758
    %v761 = vmul.f32 %v754, %v533
    %v762 = vadd.f32 %v760, %v761
    %v764 = vcombine.high %v762, %v762
    %v766 = vunpack.c.l.s4 1966171168
    %v767 = vunpack.c.0.s8 %v766
    %v768 = vlaneseq
    %v769 = vshrl.u32 %v768, 7
    %v770 = vsub.s32 %v767, %v769
    %v771 = vrot.slane %v762, %v770
    %v773 = vunpack.c.l.s4 1966171168
    %v774 = vunpack.c.0.s8 %v773
    %v775 = vlaneseq
    %v776 = vshrl.u32 %v775, 7
    %v777 = vsub.s32 %v774, %v776
    %v778 = vrot.slane %v764, %v777
    %v779 = vcombine.high %v771, %v771
    %v780 = vcombine.high %v778, %v778
    %v782 = vunpack.c.l.s4 1966171168
    %v783 = vunpack.c.0.s8 %v782
    %v784 = vlaneseq
    %v785 = vshrl.u32 %v784, 7
    %v786 = vsub.s32 %v783, %v785
    %v787 = vrot.slane %v771, %v786
    %v789 = vunpack.c.l.s4 1966171168
    %v790 = vunpack.c.0.s8 %v789
    %v791 = vlaneseq
    %v792 = vshrl.u32 %v791, 7
    %v793 = vsub.s32 %v790, %v792
    %v794 = vrot.slane %v778, %v793
    %v796 = vunpack.c.l.s4 1966171168
    %v797 = vunpack.c.0.s8 %v796
    %v798 = vlaneseq
    %v799 = vshrl.u32 %v798, 7
    %v800 = vsub.s32 %v797, %v799
    %v801 = vrot.slane %v779, %v800
    %v803 = vunpack.c.l.s4 1966171168
    %v804 = vunpack.c.0.s8 %v803
    %v805 = vlaneseq
    %v806 = vshrl.u32 %v805, 7
    %v807 = vsub.s32 %v804, %v806
    %v808 = vrot.slane %v780, %v807
    %v809 = vcombine.high %v787, %v787
    %v810 = vcombine.high %v794, %v794
    %v811 = vcombine.high %v801, %v801
    %v812 = vcombine.high %v808, %v808
    %821 = vst [vmem:[#allocation2 + $0x1] sm:$0x1] %v787
    %822 = vst [vmem:[#allocation2 + $0x9] sm:$0x1] %v801
    %823 = vst [vmem:[#allocation2 + $0x11] sm:$0x1] %v809
    %824 = vst [vmem:[#allocation2 + $0x19] sm:$0x1] %v811
    %825 = vst [vmem:[#allocation2 + $0x21] sm:$0x1] %v794
    %826 = vst [vmem:[#allocation2 + $0x29] sm:$0x1] %v808
    %827 = vst [vmem:[#allocation2 + $0x31] sm:$0x1] %v810
    %828 = vst [vmem:[#allocation2 + $0x39] sm:$0x1] %v812
    %829 = vmatprep.subr.mxu0 %v98
    %830 = vmatpush1.msra.mxu0 %v97
    %831 = vmatprep.subr.mxu0 %v95
    %832 = vmatpush1.msra.mxu0 %v94
    %833 = vmatprep.subr.mxu0 %v92
    %834 = vmatpush1.msra.mxu0 %v91
    %835 = vmatprep.subr.mxu0 %v89
    %836 = vmatpush1.msra.mxu0 %v88
    %837 = vmatprep.subr.mxu0 %v86
    %838 = vmatpush1.msra.mxu0 %v85
    %839 = vmatprep.subr.mxu0 %v83
    %840 = vmatpush1.msra.mxu0 %v82
    %841 = vmatprep.subr.mxu0 %v80
    %842 = vmatpush1.msra.mxu0 %v79
    %843 = vmatprep.subr.mxu0 %v77
    %844 = vmatpush1.msra.mxu0 %v76
    %845 = vmatprep.subr.mxu0 %v74
    %846 = vmatpush1.msra.mxu0 %v73
    %847 = vmatprep.subr.mxu0 %v71
    %848 = vmatpush1.msra.mxu0 %v70
    %849 = vmatprep.subr.mxu0 %v68
    %850 = vmatpush1.msra.mxu0 %v67
    %851 = vmatprep.subr.mxu0 %v65
    %852 = vmatpush1.msra.mxu0 %v64
    %853 = vmatprep.subr.mxu0 %v62
    %854 = vmatpush1.msra.mxu0 %v61
    %855 = vmatprep.subr.mxu0 %v59
    %856 = vmatpush1.msra.mxu0 %v58
    %857 = vmatprep.subr.mxu0 %v56
    %858 = vmatpush1.msra.mxu0 %v55
    %859 = vmatprep.subr.mxu0 %v53
    %860 = vmatpush1.msra.mxu0 %v52
    %861 = vmatprep.subr.mxu0 0.0
    %862 = vmatpush2.msra.mxu0 0.0
    %863 = vmatprep.subr.mxu0 0.0
    %864 = vmatpush2.msra.mxu0 0.0
    %865 = vmatprep.subr.mxu0 0.0
    %866 = vmatpush2.msra.mxu0 0.0
    %867 = vmatprep.subr.mxu0 0.0
    %868 = vmatpush2.msra.mxu0 0.0
    %869 = vmatprep.subr.mxu0 0.0
    %870 = vmatpush2.msra.mxu0 0.0
    %871 = vmatprep.subr.mxu0 0.0
    %872 = vmatpush2.msra.mxu0 0.0
    %873 = vmatprep.subr.mxu0 0.0
    %874 = vmatpush2.msra.mxu0 0.0
    %875 = vmatprep.subr.mxu0 0.0
    %876 = vmatpush2.msra.mxu0 0.0
    %877 = vmatprep.subr.mxu0 0.0
    %878 = vmatpush2.msra.mxu0 0.0
    %879 = vmatprep.subr.mxu0 0.0
    %880 = vmatpush2.msra.mxu0 0.0
    %881 = vmatprep.subr.mxu0 0.0
    %882 = vmatpush2.msra.mxu0 0.0
    %883 = vmatprep.subr.mxu0 0.0
    %884 = vmatpush2.msra.mxu0 0.0
    %885 = vmatprep.subr.mxu0 0.0
    %886 = vmatpush2.msra.mxu0 0.0
    %887 = vmatprep.subr.mxu0 0.0
    %888 = vmatpush2.msra.mxu0 0.0
    %889 = vmatprep.subr.mxu0 0.0
    %890 = vmatpush2.msra.mxu0 0.0
    %891 = vmatprep.subr.mxu0 0.0
    %892 = vmatpush2.msra.mxu0 0.0
    %893 = vmatprep.mubr.f32.mxu0 0.0
    %894 = vmatmul.mubr.f32.gmra.mxu0 %v762
    %v895 = vpop.f32.mrf.mxu0
    %v896 = vadd.f32 0.0, %v895
    %v897 = vpop.f32.mrf.mxu0
    %v898 = vadd.f32 0.0, %v897
    %899 = vdwg.mxu0
    %900 = vmatprep.subr.mxu0 0.0
    %901 = vmatpush1.msra.mxu0 %v99
    %902 = vmatprep.subr.mxu0 0.0
    %903 = vmatpush1.msra.mxu0 %v96
    %904 = vmatprep.subr.mxu0 0.0
    %905 = vmatpush1.msra.mxu0 %v93
    %906 = vmatprep.subr.mxu0 0.0
    %907 = vmatpush1.msra.mxu0 %v90
    %908 = vmatprep.subr.mxu0 0.0
    %909 = vmatpush1.msra.mxu0 %v87
    %910 = vmatprep.subr.mxu0 0.0
    %911 = vmatpush1.msra.mxu0 %v84
    %912 = vmatprep.subr.mxu0 0.0
    %913 = vmatpush1.msra.mxu0 %v81
    %914 = vmatprep.subr.mxu0 0.0
    %915 = vmatpush1.msra.mxu0 %v78
    %916 = vmatprep.subr.mxu0 0.0
    %917 = vmatpush1.msra.mxu0 %v75
    %918 = vmatprep.subr.mxu0 0.0
    %919 = vmatpush1.msra.mxu0 %v72
    %920 = vmatprep.subr.mxu0 0.0
    %921 = vmatpush1.msra.mxu0 %v69
    %922 = vmatprep.subr.mxu0 0.0
    %923 = vmatpush1.msra.mxu0 %v66
    %924 = vmatprep.subr.mxu0 0.0
    %925 = vmatpush1.msra.mxu0 %v63
    %926 = vmatprep.subr.mxu0 0.0
    %927 = vmatpush1.msra.mxu0 %v60
    %928 = vmatprep.subr.mxu0 0.0
    %929 = vmatpush1.msra.mxu0 %v57
    %930 = vmatprep.subr.mxu0 0.0
    %931 = vmatpush1.msra.mxu0 %v54
    %932 = vmatprep.subr.mxu0 0.0
    %933 = vmatpush2.msra.mxu0 0.0
    %934 = vmatprep.subr.mxu0 0.0
    %935 = vmatpush2.msra.mxu0 0.0
    %936 = vmatprep.subr.mxu0 0.0
    %937 = vmatpush2.msra.mxu0 0.0
    %938 = vmatprep.subr.mxu0 0.0
    %939 = vmatpush2.msra.mxu0 0.0
    %940 = vmatprep.subr.mxu0 0.0
    %941 = vmatpush2.msra.mxu0 0.0
    %942 = vmatprep.subr.mxu0 0.0
    %943 = vmatpush2.msra.mxu0 0.0
    %944 = vmatprep.subr.mxu0 0.0
    %945 = vmatpush2.msra.mxu0 0.0
    %946 = vmatprep.subr.mxu0 0.0
    %947 = vmatpush2.msra.mxu0 0.0
    %948 = vmatprep.subr.mxu0 0.0
    %949 = vmatpush2.msra.mxu0 0.0
    %950 = vmatprep.subr.mxu0 0.0
    %951 = vmatpush2.msra.mxu0 0.0
    %952 = vmatprep.subr.mxu0 0.0
    %953 = vmatpush2.msra.mxu0 0.0
    %954 = vmatprep.subr.mxu0 0.0
    %955 = vmatpush2.msra.mxu0 0.0
    %956 = vmatprep.subr.mxu0 0.0
    %957 = vmatpush2.msra.mxu0 0.0
    %958 = vmatprep.subr.mxu0 0.0
    %959 = vmatpush2.msra.mxu0 0.0
    %960 = vmatprep.subr.mxu0 0.0
    %961 = vmatpush2.msra.mxu0 0.0
    %962 = vmatprep.subr.mxu0 0.0
    %963 = vmatpush2.msra.mxu0 0.0
    %964 = vmatprep.mubr.f32.mxu0 0.0
    %965 = vmatmul.mubr.f32.gmra.mxu0 %v762
    %v966 = vpop.f32.mrf.mxu0
    %v967 = vadd.f32 0.0, %v966
    %v968 = vpop.f32.mrf.mxu0
    %969 = vdwg.mxu0
    %v970 = vadd.f32 %v231, %v896
    %v971 = vadd.f32 %v233, %v898
    %v972 = vxor.u32 %v970, 2147483648
    %v973 = vxor.u32 %v971, 2147483648
    %v974 = vmul.f32 %v972, 1.442695
    %v975 = vpow.pop %v974
    %v976 = vmul.f32 %v973, 1.442695
    %v977 = vpow.pop %v976
    %v978 = vadd.f32 %v975, 1.0
    %v979 = vadd.f32 %v977, 1.0
    %v980 = vrcp.pop %v978
    %v981 = vmul.f32 1.0, %v980
    %v982 = vrcp.pop %v979
    %v983 = vmul.f32 1.0, %v982
    %v984 = vadd.f32 %v967, %v102
    %v985 = vmul.f32 %v981, %v984
    %v986 = vadd.f32 %v342, %v985
    %v987 = vtanh.pop %v986
    %v988 = vsub.f32 1.0, %v983
    %v989 = vmul.f32 %v988, %v987
    %v990 = vmul.f32 %v983, %v762
    %v991 = vadd.f32 %v989, %v990
    %v993 = vcombine.high %v991, %v991
    %v995 = vunpack.c.l.s4 1966171168
    %v996 = vunpack.c.0.s8 %v995
    %v997 = vlaneseq
    %v998 = vshrl.u32 %v997, 7
    %v999 = vsub.s32 %v996, %v998
    %v1000 = vrot.slane %v991, %v999
    %v1002 = vunpack.c.l.s4 1966171168
    %v1003 = vunpack.c.0.s8 %v1002
    %v1004 = vlaneseq
    %v1005 = vshrl.u32 %v1004, 7
    %v1006 = vsub.s32 %v1003, %v1005
    %v1007 = vrot.slane %v993, %v1006
    %v1008 = vcombine.high %v1000, %v1000
    %v1009 = vcombine.high %v1007, %v1007
    %v1011 = vunpack.c.l.s4 1966171168
    %v1012 = vunpack.c.0.s8 %v1011
    %v1013 = vlaneseq
    %v1014 = vshrl.u32 %v1013, 7
    %v1015 = vsub.s32 %v1012, %v1014
    %v1016 = vrot.slane %v1000, %v1015
    %v1018 = vunpack.c.l.s4 1966171168
    %v1019 = vunpack.c.0.s8 %v1018
    %v1020 = vlaneseq
    %v1021 = vshrl.u32 %v1020, 7
    %v1022 = vsub.s32 %v1019, %v1021
    %v1023 = vrot.slane %v1007, %v1022
    %v1025 = vunpack.c.l.s4 1966171168
    %v1026 = vunpack.c.0.s8 %v1025
    %v1027 = vlaneseq
    %v1028 = vshrl.u32 %v1027, 7
    %v1029 = vsub.s32 %v1026, %v1028
    %v1030 = vrot.slane %v1008, %v1029
    %v1032 = vunpack.c.l.s4 1966171168
    %v1033 = vunpack.c.0.s8 %v1032
    %v1034 = vlaneseq
    %v1035 = vshrl.u32 %v1034, 7
    %v1036 = vsub.s32 %v1033, %v1035
    %v1037 = vrot.slane %v1009, %v1036
    %v1038 = vcombine.high %v1016, %v1016
    %v1039 = vcombine.high %v1023, %v1023
    %v1040 = vcombine.high %v1030, %v1030
    %v1041 = vcombine.high %v1037, %v1037
    %1050 = vst [vmem:[#allocation2 + $0x2] sm:$0x1] %v1016
    %1051 = vst [vmem:[#allocation2 + $0xa] sm:$0x1] %v1030
    %1052 = vst [vmem:[#allocation2 + $0x12] sm:$0x1] %v1038
    %1053 = vst [vmem:[#allocation2 + $0x1a] sm:$0x1] %v1040
    %1054 = vst [vmem:[#allocation2 + $0x22] sm:$0x1] %v1023
    %1055 = vst [vmem:[#allocation2 + $0x2a] sm:$0x1] %v1037
    %1056 = vst [vmem:[#allocation2 + $0x32] sm:$0x1] %v1039
    %1057 = vst [vmem:[#allocation2 + $0x3a] sm:$0x1] %v1041
    %1058 = vmatprep.subr.mxu0 %v98
    %1059 = vmatpush1.msra.mxu0 %v97
    %1060 = vmatprep.subr.mxu0 %v95
    %1061 = vmatpush1.msra.mxu0 %v94
    %1062 = vmatprep.subr.mxu0 %v92
    %1063 = vmatpush1.msra.mxu0 %v91
    %1064 = vmatprep.subr.mxu0 %v89
    %1065 = vmatpush1.msra.mxu0 %v88
    %1066 = vmatprep.subr.mxu0 %v86
    %1067 = vmatpush1.msra.mxu0 %v85
    %1068 = vmatprep.subr.mxu0 %v83
    %1069 = vmatpush1.msra.mxu0 %v82
    %1070 = vmatprep.subr.mxu0 %v80
    %1071 = vmatpush1.msra.mxu0 %v79
    %1072 = vmatprep.subr.mxu0 %v77
    %1073 = vmatpush1.msra.mxu0 %v76
    %1074 = vmatprep.subr.mxu0 %v74
    %1075 = vmatpush1.msra.mxu0 %v73
    %1076 = vmatprep.subr.mxu0 %v71
    %1077 = vmatpush1.msra.mxu0 %v70
    %1078 = vmatprep.subr.mxu0 %v68
    %1079 = vmatpush1.msra.mxu0 %v67
    %1080 = vmatprep.subr.mxu0 %v65
    %1081 = vmatpush1.msra.mxu0 %v64
    %1082 = vmatprep.subr.mxu0 %v62
    %1083 = vmatpush1.msra.mxu0 %v61
    %1084 = vmatprep.subr.mxu0 %v59
    %1085 = vmatpush1.msra.mxu0 %v58
    %1086 = vmatprep.subr.mxu0 %v56
    %1087 = vmatpush1.msra.mxu0 %v55
    %1088 = vmatprep.subr.mxu0 %v53
    %1089 = vmatpush1.msra.mxu0 %v52
    %1090 = vmatprep.subr.mxu0 0.0
    %1091 = vmatpush2.msra.mxu0 0.0
    %1092 = vmatprep.subr.mxu0 0.0
    %1093 = vmatpush2.msra.mxu0 0.0
    %1094 = vmatprep.subr.mxu0 0.0
    %1095 = vmatpush2.msra.mxu0 0.0
    %1096 = vmatprep.subr.mxu0 0.0
    %1097 = vmatpush2.msra.mxu0 0.0
    %1098 = vmatprep.subr.mxu0 0.0
    %1099 = vmatpush2.msra.mxu0 0.0
    %1100 = vmatprep.subr.mxu0 0.0
    %1101 = vmatpush2.msra.mxu0 0.0
    %1102 = vmatprep.subr.mxu0 0.0
    %1103 = vmatpush2.msra.mxu0 0.0
    %1104 = vmatprep.subr.mxu0 0.0
    %1105 = vmatpush2.msra.mxu0 0.0
    %1106 = vmatprep.subr.mxu0 0.0
    %1107 = vmatpush2.msra.mxu0 0.0
    %1108 = vmatprep.subr.mxu0 0.0
    %1109 = vmatpush2.msra.mxu0 0.0
    %1110 = vmatprep.subr.mxu0 0.0
    %1111 = vmatpush2.msra.mxu0 0.0
    %1112 = vmatprep.subr.mxu0 0.0
    %1113 = vmatpush2.msra.mxu0 0.0
    %1114 = vmatprep.subr.mxu0 0.0
    %1115 = vmatpush2.msra.mxu0 0.0
    %1116 = vmatprep.subr.mxu0 0.0
    %1117 = vmatpush2.msra.mxu0 0.0
    %1118 = vmatprep.subr.mxu0 0.0
    %1119 = vmatpush2.msra.mxu0 0.0
    %1120 = vmatprep.subr.mxu0 0.0
    %1121 = vmatpush2.msra.mxu0 0.0
    %1122 = vmatprep.mubr.f32.mxu0 0.0
    %1123 = vmatmul.mubr.f32.gmra.mxu0 %v991
    %v1124 = vpop.f32.mrf.mxu0
    %v1125 = vadd.f32 0.0, %v1124
    %v1126 = vpop.f32.mrf.mxu0
    %v1127 = vadd.f32 0.0, %v1126
    %1128 = vdwg.mxu0
    %1129 = vmatprep.subr.mxu0 0.0
    %1130 = vmatpush1.msra.mxu0 %v99
    %1131 = vmatprep.subr.mxu0 0.0
    %1132 = vmatpush1.msra.mxu0 %v96
    %1133 = vmatprep.subr.mxu0 0.0
    %1134 = vmatpush1.msra.mxu0 %v93
    %1135 = vmatprep.subr.mxu0 0.0
    %1136 = vmatpush1.msra.mxu0 %v90
    %1137 = vmatprep.subr.mxu0 0.0
    %1138 = vmatpush1.msra.mxu0 %v87
    %1139 = vmatprep.subr.mxu0 0.0
    %1140 = vmatpush1.msra.mxu0 %v84
    %1141 = vmatprep.subr.mxu0 0.0
    %1142 = vmatpush1.msra.mxu0 %v81
    %1143 = vmatprep.subr.mxu0 0.0
    %1144 = vmatpush1.msra.mxu0 %v78
    %1145 = vmatprep.subr.mxu0 0.0
    %1146 = vmatpush1.msra.mxu0 %v75
    %1147 = vmatprep.subr.mxu0 0.0
    %1148 = vmatpush1.msra.mxu0 %v72
    %1149 = vmatprep.subr.mxu0 0.0
    %1150 = vmatpush1.msra.mxu0 %v69
    %1151 = vmatprep.subr.mxu0 0.0
    %1152 = vmatpush1.msra.mxu0 %v66
    %1153 = vmatprep.subr.mxu0 0.0
    %1154 = vmatpush1.msra.mxu0 %v63
    %1155 = vmatprep.subr.mxu0 0.0
    %1156 = vmatpush1.msra.mxu0 %v60
    %1157 = vmatprep.subr.mxu0 0.0
    %1158 = vmatpush1.msra.mxu0 %v57
    %1159 = vmatprep.subr.mxu0 0.0
    %1160 = vmatpush1.msra.mxu0 %v54
    %1161 = vmatprep.subr.mxu0 0.0
    %1162 = vmatpush2.msra.mxu0 0.0
    %1163 = vmatprep.subr.mxu0 0.0
    %1164 = vmatpush2.msra.mxu0 0.0
    %1165 = vmatprep.subr.mxu0 0.0
    %1166 = vmatpush2.msra.mxu0 0.0
    %1167 = vmatprep.subr.mxu0 0.0
    %1168 = vmatpush2.msra.mxu0 0.0
    %1169 = vmatprep.subr.mxu0 0.0
    %1170 = vmatpush2.msra.mxu0 0.0
    %1171 = vmatprep.subr.mxu0 0.0
    %1172 = vmatpush2.msra.mxu0 0.0
    %1173 = vmatprep.subr.mxu0 0.0
    %1174 = vmatpush2.msra.mxu0 0.0
    %1175 = vmatprep.subr.mxu0 0.0
    %1176 = vmatpush2.msra.mxu0 0.0
    %1177 = vmatprep.subr.mxu0 0.0
    %1178 = vmatpush2.msra.mxu0 0.0
    %1179 = vmatprep.subr.mxu0 0.0
    %1180 = vmatpush2.msra.mxu0 0.0
    %1181 = vmatprep.subr.mxu0 0.0
    %1182 = vmatpush2.msra.mxu0 0.0
    %1183 = vmatprep.subr.mxu0 0.0
    %1184 = vmatpush2.msra.mxu0 0.0
    %1185 = vmatprep.subr.mxu0 0.0
    %1186 = vmatpush2.msra.mxu0 0.0
    %1187 = vmatprep.subr.mxu0 0.0
    %1188 = vmatpush2.msra.mxu0 0.0
    %1189 = vmatprep.subr.mxu0 0.0
    %1190 = vmatpush2.msra.mxu0 0.0
    %1191 = vmatprep.subr.mxu0 0.0
    %1192 = vmatpush2.msra.mxu0 0.0
    %1193 = vmatprep.mubr.f32.mxu0 0.0
    %1194 = vmatmul.mubr.f32.gmra.mxu0 %v991
    %v1195 = vpop.f32.mrf.mxu0
    %v1196 = vadd.f32 0.0, %v1195
    %v1197 = vpop.f32.mrf.mxu0
    %1198 = vdwg.mxu0
    %v1199 = vadd.f32 %v237, %v1125
    %v1200 = vadd.f32 %v239, %v1127
    %v1201 = vxor.u32 %v1199, 2147483648
    %v1202 = vxor.u32 %v1200, 2147483648
    %v1203 = vmul.f32 %v1201, 1.442695
    %v1204 = vpow.pop %v1203
    %v1205 = vmul.f32 %v1202, 1.442695
    %v1206 = vpow.pop %v1205
    %v1207 = vadd.f32 %v1204, 1.0
    %v1208 = vadd.f32 %v1206, 1.0
    %v1209 = vrcp.pop %v1207
    %v1210 = vmul.f32 1.0, %v1209
    %v1211 = vrcp.pop %v1208
    %v1212 = vmul.f32 1.0, %v1211
    %v1213 = vadd.f32 %v1196, %v102
    %v1214 = vmul.f32 %v1210, %v1213
    %v1215 = vadd.f32 %v347, %v1214
    %v1216 = vtanh.pop %v1215
    %v1217 = vsub.f32 1.0, %v1212
    %v1218 = vmul.f32 %v1217, %v1216
    %v1219 = vmul.f32 %v1212, %v991
    %v1220 = vadd.f32 %v1218, %v1219
    %v1222 = vcombine.high %v1220, %v1220
    %v1224 = vunpack.c.l.s4 1966171168
    %v1225 = vunpack.c.0.s8 %v1224
    %v1226 = vlaneseq
    %v1227 = vshrl.u32 %v1226, 7
    %v1228 = vsub.s32 %v1225, %v1227
    %v1229 = vrot.slane %v1220, %v1228
    %v1231 = vunpack.c.l.s4 1966171168
    %v1232 = vunpack.c.0.s8 %v1231
    %v1233 = vlaneseq
    %v1234 = vshrl.u32 %v1233, 7
    %v1235 = vsub.s32 %v1232, %v1234
    %v1236 = vrot.slane %v1222, %v1235
    %v1237 = vcombine.high %v1229, %v1229
    %v1238 = vcombine.high %v1236, %v1236
    %v1240 = vunpack.c.l.s4 1966171168
    %v1241 = vunpack.c.0.s8 %v1240
    %v1242 = vlaneseq
    %v1243 = vshrl.u32 %v1242, 7
    %v1244 = vsub.s32 %v1241, %v1243
    %v1245 = vrot.slane %v1229, %v1244
    %v1247 = vunpack.c.l.s4 1966171168
    %v1248 = vunpack.c.0.s8 %v1247
    %v1249 = vlaneseq
    %v1250 = vshrl.u32 %v1249, 7
    %v1251 = vsub.s32 %v1248, %v1250
    %v1252 = vrot.slane %v1236, %v1251
    %v1254 = vunpack.c.l.s4 1966171168
    %v1255 = vunpack.c.0.s8 %v1254
    %v1256 = vlaneseq
    %v1257 = vshrl.u32 %v1256, 7
    %v1258 = vsub.s32 %v1255, %v1257
    %v1259 = vrot.slane %v1237, %v1258
    %v1261 = vunpack.c.l.s4 1966171168
    %v1262 = vunpack.c.0.s8 %v1261
    %v1263 = vlaneseq
    %v1264 = vshrl.u32 %v1263, 7
    %v1265 = vsub.s32 %v1262, %v1264
    %v1266 = vrot.slane %v1238, %v1265
    %v1267 = vcombine.high %v1245, %v1245
    %v1268 = vcombine.high %v1252, %v1252
    %v1269 = vcombine.high %v1259, %v1259
    %v1270 = vcombine.high %v1266, %v1266
    %1279 = vst [vmem:[#allocation2 + $0x3] sm:$0x1] %v1245
    %1280 = vst [vmem:[#allocation2 + $0xb] sm:$0x1] %v1259
    %1281 = vst [vmem:[#allocation2 + $0x13] sm:$0x1] %v1267
    %1282 = vst [vmem:[#allocation2 + $0x1b] sm:$0x1] %v1269
    %1283 = vst [vmem:[#allocation2 + $0x23] sm:$0x1] %v1252
    %1284 = vst [vmem:[#allocation2 + $0x2b] sm:$0x1] %v1266
    %1285 = vst [vmem:[#allocation2 + $0x33] sm:$0x1] %v1268
    %1286 = vst [vmem:[#allocation2 + $0x3b] sm:$0x1] %v1270
    %1287 = vmatprep.subr.mxu0 %v98
    %1288 = vmatpush1.msra.mxu0 %v97
    %1289 = vmatprep.subr.mxu0 %v95
    %1290 = vmatpush1.msra.mxu0 %v94
    %1291 = vmatprep.subr.mxu0 %v92
    %1292 = vmatpush1.msra.mxu0 %v91
    %1293 = vmatprep.subr.mxu0 %v89
    %1294 = vmatpush1.msra.mxu0 %v88
    %1295 = vmatprep.subr.mxu0 %v86
    %1296 = vmatpush1.msra.mxu0 %v85
    %1297 = vmatprep.subr.mxu0 %v83
    %1298 = vmatpush1.msra.mxu0 %v82
    %1299 = vmatprep.subr.mxu0 %v80
    %1300 = vmatpush1.msra.mxu0 %v79
    %1301 = vmatprep.subr.mxu0 %v77
    %1302 = vmatpush1.msra.mxu0 %v76
    %1303 = vmatprep.subr.mxu0 %v74
    %1304 = vmatpush1.msra.mxu0 %v73
    %1305 = vmatprep.subr.mxu0 %v71
    %1306 = vmatpush1.msra.mxu0 %v70
    %1307 = vmatprep.subr.mxu0 %v68
    %1308 = vmatpush1.msra.mxu0 %v67
    %1309 = vmatprep.subr.mxu0 %v65
    %1310 = vmatpush1.msra.mxu0 %v64
    %1311 = vmatprep.subr.mxu0 %v62
    %1312 = vmatpush1.msra.mxu0 %v61
    %1313 = vmatprep.subr.mxu0 %v59
    %1314 = vmatpush1.msra.mxu0 %v58
    %1315 = vmatprep.subr.mxu0 %v56
    %1316 = vmatpush1.msra.mxu0 %v55
    %1317 = vmatprep.subr.mxu0 %v53
    %1318 = vmatpush1.msra.mxu0 %v52
    %1319 = vmatprep.subr.mxu0 0.0
    %1320 = vmatpush2.msra.mxu0 0.0
    %1321 = vmatprep.subr.mxu0 0.0
    %1322 = vmatpush2.msra.mxu0 0.0
    %1323 = vmatprep.subr.mxu0 0.0
    %1324 = vmatpush2.msra.mxu0 0.0
    %1325 = vmatprep.subr.mxu0 0.0
    %1326 = vmatpush2.msra.mxu0 0.0
    %1327 = vmatprep.subr.mxu0 0.0
    %1328 = vmatpush2.msra.mxu0 0.0
    %1329 = vmatprep.subr.mxu0 0.0
    %1330 = vmatpush2.msra.mxu0 0.0
    %1331 = vmatprep.subr.mxu0 0.0
    %1332 = vmatpush2.msra.mxu0 0.0
    %1333 = vmatprep.subr.mxu0 0.0
    %1334 = vmatpush2.msra.mxu0 0.0
    %1335 = vmatprep.subr.mxu0 0.0
    %1336 = vmatpush2.msra.mxu0 0.0
    %1337 = vmatprep.subr.mxu0 0.0
    %1338 = vmatpush2.msra.mxu0 0.0
    %1339 = vmatprep.subr.mxu0 0.0
    %1340 = vmatpush2.msra.mxu0 0.0
    %1341 = vmatprep.subr.mxu0 0.0
    %1342 = vmatpush2.msra.mxu0 0.0
    %1343 = vmatprep.subr.mxu0 0.0
    %1344 = vmatpush2.msra.mxu0 0.0
    %1345 = vmatprep.subr.mxu0 0.0
    %1346 = vmatpush2.msra.mxu0 0.0
    %1347 = vmatprep.subr.mxu0 0.0
    %1348 = vmatpush2.msra.mxu0 0.0
    %1349 = vmatprep.subr.mxu0 0.0
    %1350 = vmatpush2.msra.mxu0 0.0
    %1351 = vmatprep.mubr.f32.mxu0 0.0
    %1352 = vmatmul.mubr.f32.gmra.mxu0 %v1220
    %v1353 = vpop.f32.mrf.mxu0
    %v1354 = vadd.f32 0.0, %v1353
    %v1355 = vpop.f32.mrf.mxu0
    %v1356 = vadd.f32 0.0, %v1355
    %1357 = vdwg.mxu0
    %1358 = vmatprep.subr.mxu0 0.0
    %1359 = vmatpush1.msra.mxu0 %v99
    %1360 = vmatprep.subr.mxu0 0.0
    %1361 = vmatpush1.msra.mxu0 %v96
    %1362 = vmatprep.subr.mxu0 0.0
    %1363 = vmatpush1.msra.mxu0 %v93
    %1364 = vmatprep.subr.mxu0 0.0
    %1365 = vmatpush1.msra.mxu0 %v90
    %1366 = vmatprep.subr.mxu0 0.0
    %1367 = vmatpush1.msra.mxu0 %v87
    %1368 = vmatprep.subr.mxu0 0.0
    %1369 = vmatpush1.msra.mxu0 %v84
    %1370 = vmatprep.subr.mxu0 0.0
    %1371 = vmatpush1.msra.mxu0 %v81
    %1372 = vmatprep.subr.mxu0 0.0
    %1373 = vmatpush1.msra.mxu0 %v78
    %1374 = vmatprep.subr.mxu0 0.0
    %1375 = vmatpush1.msra.mxu0 %v75
    %1376 = vmatprep.subr.mxu0 0.0
    %1377 = vmatpush1.msra.mxu0 %v72
    %1378 = vmatprep.subr.mxu0 0.0
    %1379 = vmatpush1.msra.mxu0 %v69
    %1380 = vmatprep.subr.mxu0 0.0
    %1381 = vmatpush1.msra.mxu0 %v66
    %1382 = vmatprep.subr.mxu0 0.0
    %1383 = vmatpush1.msra.mxu0 %v63
    %1384 = vmatprep.subr.mxu0 0.0
    %1385 = vmatpush1.msra.mxu0 %v60
    %1386 = vmatprep.subr.mxu0 0.0
    %1387 = vmatpush1.msra.mxu0 %v57
    %1388 = vmatprep.subr.mxu0 0.0
    %1389 = vmatpush1.msra.mxu0 %v54
    %1390 = vmatprep.subr.mxu0 0.0
    %1391 = vmatpush2.msra.mxu0 0.0
    %1392 = vmatprep.subr.mxu0 0.0
    %1393 = vmatpush2.msra.mxu0 0.0
    %1394 = vmatprep.subr.mxu0 0.0
    %1395 = vmatpush2.msra.mxu0 0.0
    %1396 = vmatprep.subr.mxu0 0.0
    %1397 = vmatpush2.msra.mxu0 0.0
    %1398 = vmatprep.subr.mxu0 0.0
    %1399 = vmatpush2.msra.mxu0 0.0
    %1400 = vmatprep.subr.mxu0 0.0
    %1401 = vmatpush2.msra.mxu0 0.0
    %1402 = vmatprep.subr.mxu0 0.0
    %1403 = vmatpush2.msra.mxu0 0.0
    %1404 = vmatprep.subr.mxu0 0.0
    %1405 = vmatpush2.msra.mxu0 0.0
    %1406 = vmatprep.subr.mxu0 0.0
    %1407 = vmatpush2.msra.mxu0 0.0
    %1408 = vmatprep.subr.mxu0 0.0
    %1409 = vmatpush2.msra.mxu0 0.0
    %1410 = vmatprep.subr.mxu0 0.0
    %1411 = vmatpush2.msra.mxu0 0.0
    %1412 = vmatprep.subr.mxu0 0.0
    %1413 = vmatpush2.msra.mxu0 0.0
    %1414 = vmatprep.subr.mxu0 0.0
    %1415 = vmatpush2.msra.mxu0 0.0
    %1416 = vmatprep.subr.mxu0 0.0
    %1417 = vmatpush2.msra.mxu0 0.0
    %1418 = vmatprep.subr.mxu0 0.0
    %1419 = vmatpush2.msra.mxu0 0.0
    %1420 = vmatprep.subr.mxu0 0.0
    %1421 = vmatpush2.msra.mxu0 0.0
    %1422 = vmatprep.mubr.f32.mxu0 0.0
    %1423 = vmatmul.mubr.f32.gmra.mxu0 %v1220
    %v1424 = vpop.f32.mrf.mxu0
    %v1425 = vadd.f32 0.0, %v1424
    %v1426 = vpop.f32.mrf.mxu0
    %1427 = vdwg.mxu0
    %v1428 = vadd.f32 %v243, %v1354
    %v1429 = vadd.f32 %v245, %v1356
    %v1430 = vxor.u32 %v1428, 2147483648
    %v1431 = vxor.u32 %v1429, 2147483648
    %v1432 = vmul.f32 %v1430, 1.442695
    %v1433 = vpow.pop %v1432
    %v1434 = vmul.f32 %v1431, 1.442695
    %v1435 = vpow.pop %v1434
    %v1436 = vadd.f32 %v1433, 1.0
    %v1437 = vadd.f32 %v1435, 1.0
    %v1438 = vrcp.pop %v1436
    %v1439 = vmul.f32 1.0, %v1438
    %v1440 = vrcp.pop %v1437
    %v1441 = vmul.f32 1.0, %v1440
    %v1442 = vadd.f32 %v1425, %v102
    %v1443 = vmul.f32 %v1439, %v1442
    %v1444 = vadd.f32 %v352, %v1443
    %v1445 = vtanh.pop %v1444
    %v1446 = vsub.f32 1.0, %v1441
    %v1447 = vmul.f32 %v1446, %v1445
    %v1448 = vmul.f32 %v1441, %v1220
    %v1449 = vadd.f32 %v1447, %v1448
    %v1451 = vcombine.high %v1449, %v1449
    %v1453 = vunpack.c.l.s4 1966171168
    %v1454 = vunpack.c.0.s8 %v1453
    %v1455 = vlaneseq
    %v1456 = vshrl.u32 %v1455, 7
    %v1457 = vsub.s32 %v1454, %v1456
    %v1458 = vrot.slane %v1449, %v1457
    %v1460 = vunpack.c.l.s4 1966171168
    %v1461 = vunpack.c.0.s8 %v1460
    %v1462 = vlaneseq
    %v1463 = vshrl.u32 %v1462, 7
    %v1464 = vsub.s32 %v1461, %v1463
    %v1465 = vrot.slane %v1451, %v1464
    %v1466 = vcombine.high %v1458, %v1458
    %v1467 = vcombine.high %v1465, %v1465
    %v1469 = vunpack.c.l.s4 1966171168
    %v1470 = vunpack.c.0.s8 %v1469
    %v1471 = vlaneseq
    %v1472 = vshrl.u32 %v1471, 7
    %v1473 = vsub.s32 %v1470, %v1472
    %v1474 = vrot.slane %v1458, %v1473
    %v1476 = vunpack.c.l.s4 1966171168
    %v1477 = vunpack.c.0.s8 %v1476
    %v1478 = vlaneseq
    %v1479 = vshrl.u32 %v1478, 7
    %v1480 = vsub.s32 %v1477, %v1479
    %v1481 = vrot.slane %v1465, %v1480
    %v1483 = vunpack.c.l.s4 1966171168
    %v1484 = vunpack.c.0.s8 %v1483
    %v1485 = vlaneseq
    %v1486 = vshrl.u32 %v1485, 7
    %v1487 = vsub.s32 %v1484, %v1486
    %v1488 = vrot.slane %v1466, %v1487
    %v1490 = vunpack.c.l.s4 1966171168
    %v1491 = vunpack.c.0.s8 %v1490
    %v1492 = vlaneseq
    %v1493 = vshrl.u32 %v1492, 7
    %v1494 = vsub.s32 %v1491, %v1493
    %v1495 = vrot.slane %v1467, %v1494
    %v1496 = vcombine.high %v1474, %v1474
    %v1497 = vcombine.high %v1481, %v1481
    %v1498 = vcombine.high %v1488, %v1488
    %v1499 = vcombine.high %v1495, %v1495
    %1508 = vst [vmem:[#allocation2 + $0x4] sm:$0x1] %v1474
    %1509 = vst [vmem:[#allocation2 + $0xc] sm:$0x1] %v1488
    %1510 = vst [vmem:[#allocation2 + $0x14] sm:$0x1] %v1496
    %1511 = vst [vmem:[#allocation2 + $0x1c] sm:$0x1] %v1498
    %1512 = vst [vmem:[#allocation2 + $0x24] sm:$0x1] %v1481
    %1513 = vst [vmem:[#allocation2 + $0x2c] sm:$0x1] %v1495
    %1514 = vst [vmem:[#allocation2 + $0x34] sm:$0x1] %v1497
    %1515 = vst [vmem:[#allocation2 + $0x3c] sm:$0x1] %v1499
    %1516 = vmatprep.subr.mxu0 %v98
    %1517 = vmatpush1.msra.mxu0 %v97
    %1518 = vmatprep.subr.mxu0 %v95
    %1519 = vmatpush1.msra.mxu0 %v94
    %1520 = vmatprep.subr.mxu0 %v92
    %1521 = vmatpush1.msra.mxu0 %v91
    %1522 = vmatprep.subr.mxu0 %v89
    %1523 = vmatpush1.msra.mxu0 %v88
    %1524 = vmatprep.subr.mxu0 %v86
    %1525 = vmatpush1.msra.mxu0 %v85
    %1526 = vmatprep.subr.mxu0 %v83
    %1527 = vmatpush1.msra.mxu0 %v82
    %1528 = vmatprep.subr.mxu0 %v80
    %1529 = vmatpush1.msra.mxu0 %v79
    %1530 = vmatprep.subr.mxu0 %v77
    %1531 = vmatpush1.msra.mxu0 %v76
    %1532 = vmatprep.subr.mxu0 %v74
    %1533 = vmatpush1.msra.mxu0 %v73
    %1534 = vmatprep.subr.mxu0 %v71
    %1535 = vmatpush1.msra.mxu0 %v70
    %1536 = vmatprep.subr.mxu0 %v68
    %1537 = vmatpush1.msra.mxu0 %v67
    %1538 = vmatprep.subr.mxu0 %v65
    %1539 = vmatpush1.msra.mxu0 %v64
    %1540 = vmatprep.subr.mxu0 %v62
    %1541 = vmatpush1.msra.mxu0 %v61
    %1542 = vmatprep.subr.mxu0 %v59
    %1543 = vmatpush1.msra.mxu0 %v58
    %1544 = vmatprep.subr.mxu0 %v56
    %1545 = vmatpush1.msra.mxu0 %v55
    %1546 = vmatprep.subr.mxu0 %v53
    %1547 = vmatpush1.msra.mxu0 %v52
    %1548 = vmatprep.subr.mxu0 0.0
    %1549 = vmatpush2.msra.mxu0 0.0
    %1550 = vmatprep.subr.mxu0 0.0
    %1551 = vmatpush2.msra.mxu0 0.0
    %1552 = vmatprep.subr.mxu0 0.0
    %1553 = vmatpush2.msra.mxu0 0.0
    %1554 = vmatprep.subr.mxu0 0.0
    %1555 = vmatpush2.msra.mxu0 0.0
    %1556 = vmatprep.subr.mxu0 0.0
    %1557 = vmatpush2.msra.mxu0 0.0
    %1558 = vmatprep.subr.mxu0 0.0
    %1559 = vmatpush2.msra.mxu0 0.0
    %1560 = vmatprep.subr.mxu0 0.0
    %1561 = vmatpush2.msra.mxu0 0.0
    %1562 = vmatprep.subr.mxu0 0.0
    %1563 = vmatpush2.msra.mxu0 0.0
    %1564 = vmatprep.subr.mxu0 0.0
    %1565 = vmatpush2.msra.mxu0 0.0
    %1566 = vmatprep.subr.mxu0 0.0
    %1567 = vmatpush2.msra.mxu0 0.0
    %1568 = vmatprep.subr.mxu0 0.0
    %1569 = vmatpush2.msra.mxu0 0.0
    %1570 = vmatprep.subr.mxu0 0.0
    %1571 = vmatpush2.msra.mxu0 0.0
    %1572 = vmatprep.subr.mxu0 0.0
    %1573 = vmatpush2.msra.mxu0 0.0
    %1574 = vmatprep.subr.mxu0 0.0
    %1575 = vmatpush2.msra.mxu0 0.0
    %1576 = vmatprep.subr.mxu0 0.0
    %1577 = vmatpush2.msra.mxu0 0.0
    %1578 = vmatprep.subr.mxu0 0.0
    %1579 = vmatpush2.msra.mxu0 0.0
    %1580 = vmatprep.mubr.f32.mxu0 0.0
    %1581 = vmatmul.mubr.f32.gmra.mxu0 %v1449
    %v1582 = vpop.f32.mrf.mxu0
    %v1583 = vadd.f32 0.0, %v1582
    %v1584 = vpop.f32.mrf.mxu0
    %v1585 = vadd.f32 0.0, %v1584
    %1586 = vdwg.mxu0
    %1587 = vmatprep.subr.mxu0 0.0
    %1588 = vmatpush1.msra.mxu0 %v99
    %1589 = vmatprep.subr.mxu0 0.0
    %1590 = vmatpush1.msra.mxu0 %v96
    %1591 = vmatprep.subr.mxu0 0.0
    %1592 = vmatpush1.msra.mxu0 %v93
    %1593 = vmatprep.subr.mxu0 0.0
    %1594 = vmatpush1.msra.mxu0 %v90
    %1595 = vmatprep.subr.mxu0 0.0
    %1596 = vmatpush1.msra.mxu0 %v87
    %1597 = vmatprep.subr.mxu0 0.0
    %1598 = vmatpush1.msra.mxu0 %v84
    %1599 = vmatprep.subr.mxu0 0.0
    %1600 = vmatpush1.msra.mxu0 %v81
    %1601 = vmatprep.subr.mxu0 0.0
    %1602 = vmatpush1.msra.mxu0 %v78
    %1603 = vmatprep.subr.mxu0 0.0
    %1604 = vmatpush1.msra.mxu0 %v75
    %1605 = vmatprep.subr.mxu0 0.0
    %1606 = vmatpush1.msra.mxu0 %v72
    %1607 = vmatprep.subr.mxu0 0.0
    %1608 = vmatpush1.msra.mxu0 %v69
    %1609 = vmatprep.subr.mxu0 0.0
    %1610 = vmatpush1.msra.mxu0 %v66
    %1611 = vmatprep.subr.mxu0 0.0
    %1612 = vmatpush1.msra.mxu0 %v63
    %1613 = vmatprep.subr.mxu0 0.0
    %1614 = vmatpush1.msra.mxu0 %v60
    %1615 = vmatprep.subr.mxu0 0.0
    %1616 = vmatpush1.msra.mxu0 %v57
    %1617 = vmatprep.subr.mxu0 0.0
    %1618 = vmatpush1.msra.mxu0 %v54
    %1619 = vmatprep.subr.mxu0 0.0
    %1620 = vmatpush2.msra.mxu0 0.0
    %1621 = vmatprep.subr.mxu0 0.0
    %1622 = vmatpush2.msra.mxu0 0.0
    %1623 = vmatprep.subr.mxu0 0.0
    %1624 = vmatpush2.msra.mxu0 0.0
    %1625 = vmatprep.subr.mxu0 0.0
    %1626 = vmatpush2.msra.mxu0 0.0
    %1627 = vmatprep.subr.mxu0 0.0
    %1628 = vmatpush2.msra.mxu0 0.0
    %1629 = vmatprep.subr.mxu0 0.0
    %1630 = vmatpush2.msra.mxu0 0.0
    %1631 = vmatprep.subr.mxu0 0.0
    %1632 = vmatpush2.msra.mxu0 0.0
    %1633 = vmatprep.subr.mxu0 0.0
    %1634 = vmatpush2.msra.mxu0 0.0
    %1635 = vmatprep.subr.mxu0 0.0
    %1636 = vmatpush2.msra.mxu0 0.0
    %1637 = vmatprep.subr.mxu0 0.0
    %1638 = vmatpush2.msra.mxu0 0.0
    %1639 = vmatprep.subr.mxu0 0.0
    %1640 = vmatpush2.msra.mxu0 0.0
    %1641 = vmatprep.subr.mxu0 0.0
    %1642 = vmatpush2.msra.mxu0 0.0
    %1643 = vmatprep.subr.mxu0 0.0
    %1644 = vmatpush2.msra.mxu0 0.0
    %1645 = vmatprep.subr.mxu0 0.0
    %1646 = vmatpush2.msra.mxu0 0.0
    %1647 = vmatprep.subr.mxu0 0.0
    %1648 = vmatpush2.msra.mxu0 0.0
    %1649 = vmatprep.subr.mxu0 0.0
    %1650 = vmatpush2.msra.mxu0 0.0
    %1651 = vmatprep.mubr.f32.mxu0 0.0
    %1652 = vmatmul.mubr.f32.gmra.mxu0 %v1449
    %v1653 = vpop.f32.mrf.mxu0
    %v1654 = vadd.f32 0.0, %v1653
    %v1655 = vpop.f32.mrf.mxu0
    %1656 = vdwg.mxu0
    %v1657 = vadd.f32 %v249, %v1583
    %v1658 = vadd.f32 %v251, %v1585
    %v1659 = vxor.u32 %v1657, 2147483648
    %v1660 = vxor.u32 %v1658, 2147483648
    %v1661 = vmul.f32 %v1659, 1.442695
    %v1662 = vpow.pop %v1661
    %v1663 = vmul.f32 %v1660, 1.442695
    %v1664 = vpow.pop %v1663
    %v1665 = vadd.f32 %v1662, 1.0
    %v1666 = vadd.f32 %v1664, 1.0
    %v1667 = vrcp.pop %v1665
    %v1668 = vmul.f32 1.0, %v1667
    %v1669 = vrcp.pop %v1666
    %v1670 = vmul.f32 1.0, %v1669
    %v1671 = vadd.f32 %v1654, %v102
    %v1672 = vmul.f32 %v1668, %v1671
    %v1673 = vadd.f32 %v357, %v1672
    %v1674 = vtanh.pop %v1673
    %v1675 = vsub.f32 1.0, %v1670
    %v1676 = vmul.f32 %v1675, %v1674
    %v1677 = vmul.f32 %v1670, %v1449
    %v1678 = vadd.f32 %v1676, %v1677
    %v1680 = vcombine.high %v1678, %v1678
    %v1682 = vunpack.c.l.s4 1966171168
    %v1683 = vunpack.c.0.s8 %v1682
    %v1684 = vlaneseq
    %v1685 = vshrl.u32 %v1684, 7
    %v1686 = vsub.s32 %v1683, %v1685
    %v1687 = vrot.slane %v1678, %v1686
    %v1689 = vunpack.c.l.s4 1966171168
    %v1690 = vunpack.c.0.s8 %v1689
    %v1691 = vlaneseq
    %v1692 = vshrl.u32 %v1691, 7
    %v1693 = vsub.s32 %v1690, %v1692
    %v1694 = vrot.slane %v1680, %v1693
    %v1695 = vcombine.high %v1687, %v1687
    %v1696 = vcombine.high %v1694, %v1694
    %v1698 = vunpack.c.l.s4 1966171168
    %v1699 = vunpack.c.0.s8 %v1698
    %v1700 = vlaneseq
    %v1701 = vshrl.u32 %v1700, 7
    %v1702 = vsub.s32 %v1699, %v1701
    %v1703 = vrot.slane %v1687, %v1702
    %v1705 = vunpack.c.l.s4 1966171168
    %v1706 = vunpack.c.0.s8 %v1705
    %v1707 = vlaneseq
    %v1708 = vshrl.u32 %v1707, 7
    %v1709 = vsub.s32 %v1706, %v1708
    %v1710 = vrot.slane %v1694, %v1709
    %v1712 = vunpack.c.l.s4 1966171168
    %v1713 = vunpack.c.0.s8 %v1712
    %v1714 = vlaneseq
    %v1715 = vshrl.u32 %v1714, 7
    %v1716 = vsub.s32 %v1713, %v1715
    %v1717 = vrot.slane %v1695, %v1716
    %v1719 = vunpack.c.l.s4 1966171168
    %v1720 = vunpack.c.0.s8 %v1719
    %v1721 = vlaneseq
    %v1722 = vshrl.u32 %v1721, 7
    %v1723 = vsub.s32 %v1720, %v1722
    %v1724 = vrot.slane %v1696, %v1723
    %v1725 = vcombine.high %v1703, %v1703
    %v1726 = vcombine.high %v1710, %v1710
    %v1727 = vcombine.high %v1717, %v1717
    %v1728 = vcombine.high %v1724, %v1724
    %1737 = vst [vmem:[#allocation2 + $0x5] sm:$0x1] %v1703
    %1738 = vst [vmem:[#allocation2 + $0xd] sm:$0x1] %v1717
    %1739 = vst [vmem:[#allocation2 + $0x15] sm:$0x1] %v1725
    %1740 = vst [vmem:[#allocation2 + $0x1d] sm:$0x1] %v1727
    %1741 = vst [vmem:[#allocation2 + $0x25] sm:$0x1] %v1710
    %1742 = vst [vmem:[#allocation2 + $0x2d] sm:$0x1] %v1724
    %1743 = vst [vmem:[#allocation2 + $0x35] sm:$0x1] %v1726
    %1744 = vst [vmem:[#allocation2 + $0x3d] sm:$0x1] %v1728
    %1745 = vmatprep.subr.mxu0 %v98
    %1746 = vmatpush1.msra.mxu0 %v97
    %1747 = vmatprep.subr.mxu0 %v95
    %1748 = vmatpush1.msra.mxu0 %v94
    %1749 = vmatprep.subr.mxu0 %v92
    %1750 = vmatpush1.msra.mxu0 %v91
    %1751 = vmatprep.subr.mxu0 %v89
    %1752 = vmatpush1.msra.mxu0 %v88
    %1753 = vmatprep.subr.mxu0 %v86
    %1754 = vmatpush1.msra.mxu0 %v85
    %1755 = vmatprep.subr.mxu0 %v83
    %1756 = vmatpush1.msra.mxu0 %v82
    %1757 = vmatprep.subr.mxu0 %v80
    %1758 = vmatpush1.msra.mxu0 %v79
    %1759 = vmatprep.subr.mxu0 %v77
    %1760 = vmatpush1.msra.mxu0 %v76
    %1761 = vmatprep.subr.mxu0 %v74
    %1762 = vmatpush1.msra.mxu0 %v73
    %1763 = vmatprep.subr.mxu0 %v71
    %1764 = vmatpush1.msra.mxu0 %v70
    %1765 = vmatprep.subr.mxu0 %v68
    %1766 = vmatpush1.msra.mxu0 %v67
    %1767 = vmatprep.subr.mxu0 %v65
    %1768 = vmatpush1.msra.mxu0 %v64
    %1769 = vmatprep.subr.mxu0 %v62
    %1770 = vmatpush1.msra.mxu0 %v61
    %1771 = vmatprep.subr.mxu0 %v59
    %1772 = vmatpush1.msra.mxu0 %v58
    %1773 = vmatprep.subr.mxu0 %v56
    %1774 = vmatpush1.msra.mxu0 %v55
    %1775 = vmatprep.subr.mxu0 %v53
    %1776 = vmatpush1.msra.mxu0 %v52
    %1777 = vmatprep.subr.mxu0 0.0
    %1778 = vmatpush2.msra.mxu0 0.0
    %1779 = vmatprep.subr.mxu0 0.0
    %1780 = vmatpush2.msra.mxu0 0.0
    %1781 = vmatprep.subr.mxu0 0.0
    %1782 = vmatpush2.msra.mxu0 0.0
    %1783 = vmatprep.subr.mxu0 0.0
    %1784 = vmatpush2.msra.mxu0 0.0
    %1785 = vmatprep.subr.mxu0 0.0
    %1786 = vmatpush2.msra.mxu0 0.0
    %1787 = vmatprep.subr.mxu0 0.0
    %1788 = vmatpush2.msra.mxu0 0.0
    %1789 = vmatprep.subr.mxu0 0.0
    %1790 = vmatpush2.msra.mxu0 0.0
    %1791 = vmatprep.subr.mxu0 0.0
    %1792 = vmatpush2.msra.mxu0 0.0
    %1793 = vmatprep.subr.mxu0 0.0
    %1794 = vmatpush2.msra.mxu0 0.0
    %1795 = vmatprep.subr.mxu0 0.0
    %1796 = vmatpush2.msra.mxu0 0.0
    %1797 = vmatprep.subr.mxu0 0.0
    %1798 = vmatpush2.msra.mxu0 0.0
    %1799 = vmatprep.subr.mxu0 0.0
    %1800 = vmatpush2.msra.mxu0 0.0
    %1801 = vmatprep.subr.mxu0 0.0
    %1802 = vmatpush2.msra.mxu0 0.0
    %1803 = vmatprep.subr.mxu0 0.0
    %1804 = vmatpush2.msra.mxu0 0.0
    %1805 = vmatprep.subr.mxu0 0.0
    %1806 = vmatpush2.msra.mxu0 0.0
    %1807 = vmatprep.subr.mxu0 0.0
    %1808 = vmatpush2.msra.mxu0 0.0
    %1809 = vmatprep.mubr.f32.mxu0 0.0
    %1810 = vmatmul.mubr.f32.gmra.mxu0 %v1678
    %v1811 = vpop.f32.mrf.mxu0
    %v1812 = vadd.f32 0.0, %v1811
    %v1813 = vpop.f32.mrf.mxu0
    %v1814 = vadd.f32 0.0, %v1813
    %1815 = vdwg.mxu0
    %1816 = vmatprep.subr.mxu0 0.0
    %1817 = vmatpush1.msra.mxu0 %v99
    %1818 = vmatprep.subr.mxu0 0.0
    %1819 = vmatpush1.msra.mxu0 %v96
    %1820 = vmatprep.subr.mxu0 0.0
    %1821 = vmatpush1.msra.mxu0 %v93
    %1822 = vmatprep.subr.mxu0 0.0
    %1823 = vmatpush1.msra.mxu0 %v90
    %1824 = vmatprep.subr.mxu0 0.0
    %1825 = vmatpush1.msra.mxu0 %v87
    %1826 = vmatprep.subr.mxu0 0.0
    %1827 = vmatpush1.msra.mxu0 %v84
    %1828 = vmatprep.subr.mxu0 0.0
    %1829 = vmatpush1.msra.mxu0 %v81
    %1830 = vmatprep.subr.mxu0 0.0
    %1831 = vmatpush1.msra.mxu0 %v78
    %1832 = vmatprep.subr.mxu0 0.0
    %1833 = vmatpush1.msra.mxu0 %v75
    %1834 = vmatprep.subr.mxu0 0.0
    %1835 = vmatpush1.msra.mxu0 %v72
    %1836 = vmatprep.subr.mxu0 0.0
    %1837 = vmatpush1.msra.mxu0 %v69
    %1838 = vmatprep.subr.mxu0 0.0
    %1839 = vmatpush1.msra.mxu0 %v66
    %1840 = vmatprep.subr.mxu0 0.0
    %1841 = vmatpush1.msra.mxu0 %v63
    %1842 = vmatprep.subr.mxu0 0.0
    %1843 = vmatpush1.msra.mxu0 %v60
    %1844 = vmatprep.subr.mxu0 0.0
    %1845 = vmatpush1.msra.mxu0 %v57
    %1846 = vmatprep.subr.mxu0 0.0
    %1847 = vmatpush1.msra.mxu0 %v54
    %1848 = vmatprep.subr.mxu0 0.0
    %1849 = vmatpush2.msra.mxu0 0.0
    %1850 = vmatprep.subr.mxu0 0.0
    %1851 = vmatpush2.msra.mxu0 0.0
    %1852 = vmatprep.subr.mxu0 0.0
    %1853 = vmatpush2.msra.mxu0 0.0
    %1854 = vmatprep.subr.mxu0 0.0
    %1855 = vmatpush2.msra.mxu0 0.0
    %1856 = vmatprep.subr.mxu0 0.0
    %1857 = vmatpush2.msra.mxu0 0.0
    %1858 = vmatprep.subr.mxu0 0.0
    %1859 = vmatpush2.msra.mxu0 0.0
    %1860 = vmatprep.subr.mxu0 0.0
    %1861 = vmatpush2.msra.mxu0 0.0
    %1862 = vmatprep.subr.mxu0 0.0
    %1863 = vmatpush2.msra.mxu0 0.0
    %1864 = vmatprep.subr.mxu0 0.0
    %1865 = vmatpush2.msra.mxu0 0.0
    %1866 = vmatprep.subr.mxu0 0.0
    %1867 = vmatpush2.msra.mxu0 0.0
    %1868 = vmatprep.subr.mxu0 0.0
    %1869 = vmatpush2.msra.mxu0 0.0
    %1870 = vmatprep.subr.mxu0 0.0
    %1871 = vmatpush2.msra.mxu0 0.0
    %1872 = vmatprep.subr.mxu0 0.0
    %1873 = vmatpush2.msra.mxu0 0.0
    %1874 = vmatprep.subr.mxu0 0.0
    %1875 = vmatpush2.msra.mxu0 0.0
    %1876 = vmatprep.subr.mxu0 0.0
    %1877 = vmatpush2.msra.mxu0 0.0
    %1878 = vmatprep.subr.mxu0 0.0
    %1879 = vmatpush2.msra.mxu0 0.0
    %1880 = vmatprep.mubr.f32.mxu0 0.0
    %1881 = vmatmul.mubr.f32.gmra.mxu0 %v1678
    %v1882 = vpop.f32.mrf.mxu0
    %v1883 = vadd.f32 0.0, %v1882
    %v1884 = vpop.f32.mrf.mxu0
    %1885 = vdwg.mxu0
    %v1886 = vadd.f32 %v255, %v1812
    %v1887 = vadd.f32 %v257, %v1814
    %v1888 = vxor.u32 %v1886, 2147483648
    %v1889 = vxor.u32 %v1887, 2147483648
    %v1890 = vmul.f32 %v1888, 1.442695
    %v1891 = vpow.pop %v1890
    %v1892 = vmul.f32 %v1889, 1.442695
    %v1893 = vpow.pop %v1892
    %v1894 = vadd.f32 %v1891, 1.0
    %v1895 = vadd.f32 %v1893, 1.0
    %v1896 = vrcp.pop %v1894
    %v1897 = vmul.f32 1.0, %v1896
    %v1898 = vrcp.pop %v1895
    %v1899 = vmul.f32 1.0, %v1898
    %v1900 = vadd.f32 %v1883, %v102
    %v1901 = vmul.f32 %v1897, %v1900
    %v1902 = vadd.f32 %v362, %v1901
    %v1903 = vtanh.pop %v1902
    %v1904 = vsub.f32 1.0, %v1899
    %v1905 = vmul.f32 %v1904, %v1903
    %v1906 = vmul.f32 %v1899, %v1678
    %v1907 = vadd.f32 %v1905, %v1906
    %v1909 = vcombine.high %v1907, %v1907
    %v1911 = vunpack.c.l.s4 1966171168
    %v1912 = vunpack.c.0.s8 %v1911
    %v1913 = vlaneseq
    %v1914 = vshrl.u32 %v1913, 7
    %v1915 = vsub.s32 %v1912, %v1914
    %v1916 = vrot.slane %v1907, %v1915
    %v1918 = vunpack.c.l.s4 1966171168
    %v1919 = vunpack.c.0.s8 %v1918
    %v1920 = vlaneseq
    %v1921 = vshrl.u32 %v1920, 7
    %v1922 = vsub.s32 %v1919, %v1921
    %v1923 = vrot.slane %v1909, %v1922
    %v1924 = vcombine.high %v1916, %v1916
    %v1925 = vcombine.high %v1923, %v1923
    %v1927 = vunpack.c.l.s4 1966171168
    %v1928 = vunpack.c.0.s8 %v1927
    %v1929 = vlaneseq
    %v1930 = vshrl.u32 %v1929, 7
    %v1931 = vsub.s32 %v1928, %v1930
    %v1932 = vrot.slane %v1916, %v1931
    %v1934 = vunpack.c.l.s4 1966171168
    %v1935 = vunpack.c.0.s8 %v1934
    %v1936 = vlaneseq
    %v1937 = vshrl.u32 %v1936, 7
    %v1938 = vsub.s32 %v1935, %v1937
    %v1939 = vrot.slane %v1923, %v1938
    %v1941 = vunpack.c.l.s4 1966171168
    %v1942 = vunpack.c.0.s8 %v1941
    %v1943 = vlaneseq
    %v1944 = vshrl.u32 %v1943, 7
    %v1945 = vsub.s32 %v1942, %v1944
    %v1946 = vrot.slane %v1924, %v1945
    %v1948 = vunpack.c.l.s4 1966171168
    %v1949 = vunpack.c.0.s8 %v1948
    %v1950 = vlaneseq
    %v1951 = vshrl.u32 %v1950, 7
    %v1952 = vsub.s32 %v1949, %v1951
    %v1953 = vrot.slane %v1925, %v1952
    %v1954 = vcombine.high %v1932, %v1932
    %v1955 = vcombine.high %v1939, %v1939
    %v1956 = vcombine.high %v1946, %v1946
    %v1957 = vcombine.high %v1953, %v1953
    %1966 = vst [vmem:[#allocation2 + $0x6] sm:$0x1] %v1932
    %1967 = vst [vmem:[#allocation2 + $0xe] sm:$0x1] %v1946
    %1968 = vst [vmem:[#allocation2 + $0x16] sm:$0x1] %v1954
    %1969 = vst [vmem:[#allocation2 + $0x1e] sm:$0x1] %v1956
    %1970 = vst [vmem:[#allocation2 + $0x26] sm:$0x1] %v1939
    %1971 = vst [vmem:[#allocation2 + $0x2e] sm:$0x1] %v1953
    %1972 = vst [vmem:[#allocation2 + $0x36] sm:$0x1] %v1955
    %1973 = vst [vmem:[#allocation2 + $0x3e] sm:$0x1] %v1957
    %1974 = vmatprep.subr.mxu0 %v98
    %1975 = vmatpush1.msra.mxu0 %v97
    %1976 = vmatprep.subr.mxu0 %v95
    %1977 = vmatpush1.msra.mxu0 %v94
    %1978 = vmatprep.subr.mxu0 %v92
    %1979 = vmatpush1.msra.mxu0 %v91
    %1980 = vmatprep.subr.mxu0 %v89
    %1981 = vmatpush1.msra.mxu0 %v88
    %1982 = vmatprep.subr.mxu0 %v86
    %1983 = vmatpush1.msra.mxu0 %v85
    %1984 = vmatprep.subr.mxu0 %v83
    %1985 = vmatpush1.msra.mxu0 %v82
    %1986 = vmatprep.subr.mxu0 %v80
    %1987 = vmatpush1.msra.mxu0 %v79
    %1988 = vmatprep.subr.mxu0 %v77
    %1989 = vmatpush1.msra.mxu0 %v76
    %1990 = vmatprep.subr.mxu0 %v74
    %1991 = vmatpush1.msra.mxu0 %v73
    %1992 = vmatprep.subr.mxu0 %v71
    %1993 = vmatpush1.msra.mxu0 %v70
    %1994 = vmatprep.subr.mxu0 %v68
    %1995 = vmatpush1.msra.mxu0 %v67
    %1996 = vmatprep.subr.mxu0 %v65
    %1997 = vmatpush1.msra.mxu0 %v64
    %1998 = vmatprep.subr.mxu0 %v62
    %1999 = vmatpush1.msra.mxu0 %v61
    %2000 = vmatprep.subr.mxu0 %v59
    %2001 = vmatpush1.msra.mxu0 %v58
    %2002 = vmatprep.subr.mxu0 %v56
    %2003 = vmatpush1.msra.mxu0 %v55
    %2004 = vmatprep.subr.mxu0 %v53
    %2005 = vmatpush1.msra.mxu0 %v52
    %2006 = vmatprep.subr.mxu0 0.0
    %2007 = vmatpush2.msra.mxu0 0.0
    %2008 = vmatprep.subr.mxu0 0.0
    %2009 = vmatpush2.msra.mxu0 0.0
    %2010 = vmatprep.subr.mxu0 0.0
    %2011 = vmatpush2.msra.mxu0 0.0
    %2012 = vmatprep.subr.mxu0 0.0
    %2013 = vmatpush2.msra.mxu0 0.0
    %2014 = vmatprep.subr.mxu0 0.0
    %2015 = vmatpush2.msra.mxu0 0.0
    %2016 = vmatprep.subr.mxu0 0.0
    %2017 = vmatpush2.msra.mxu0 0.0
    %2018 = vmatprep.subr.mxu0 0.0
    %2019 = vmatpush2.msra.mxu0 0.0
    %2020 = vmatprep.subr.mxu0 0.0
    %2021 = vmatpush2.msra.mxu0 0.0
    %2022 = vmatprep.subr.mxu0 0.0
    %2023 = vmatpush2.msra.mxu0 0.0
    %2024 = vmatprep.subr.mxu0 0.0
    %2025 = vmatpush2.msra.mxu0 0.0
    %2026 = vmatprep.subr.mxu0 0.0
    %2027 = vmatpush2.msra.mxu0 0.0
    %2028 = vmatprep.subr.mxu0 0.0
    %2029 = vmatpush2.msra.mxu0 0.0
    %2030 = vmatprep.subr.mxu0 0.0
    %2031 = vmatpush2.msra.mxu0 0.0
    %2032 = vmatprep.subr.mxu0 0.0
    %2033 = vmatpush2.msra.mxu0 0.0
    %2034 = vmatprep.subr.mxu0 0.0
    %2035 = vmatpush2.msra.mxu0 0.0
    %2036 = vmatprep.subr.mxu0 0.0
    %2037 = vmatpush2.msra.mxu0 0.0
    %2038 = vmatprep.mubr.f32.mxu0 0.0
    %2039 = vmatmul.mubr.f32.gmra.mxu0 %v1907
    %v2040 = vpop.f32.mrf.mxu0
    %v2041 = vadd.f32 0.0, %v2040
    %v2042 = vpop.f32.mrf.mxu0
    %v2043 = vadd.f32 0.0, %v2042
    %2044 = vdwg.mxu0
    %2045 = vmatprep.subr.mxu0 0.0
    %2046 = vmatpush1.msra.mxu0 %v99
    %2047 = vmatprep.subr.mxu0 0.0
    %2048 = vmatpush1.msra.mxu0 %v96
    %2049 = vmatprep.subr.mxu0 0.0
    %2050 = vmatpush1.msra.mxu0 %v93
    %2051 = vmatprep.subr.mxu0 0.0
    %2052 = vmatpush1.msra.mxu0 %v90
    %2053 = vmatprep.subr.mxu0 0.0
    %2054 = vmatpush1.msra.mxu0 %v87
    %2055 = vmatprep.subr.mxu0 0.0
    %2056 = vmatpush1.msra.mxu0 %v84
    %2057 = vmatprep.subr.mxu0 0.0
    %2058 = vmatpush1.msra.mxu0 %v81
    %2059 = vmatprep.subr.mxu0 0.0
    %2060 = vmatpush1.msra.mxu0 %v78
    %2061 = vmatprep.subr.mxu0 0.0
    %2062 = vmatpush1.msra.mxu0 %v75
    %2063 = vmatprep.subr.mxu0 0.0
    %2064 = vmatpush1.msra.mxu0 %v72
    %2065 = vmatprep.subr.mxu0 0.0
    %2066 = vmatpush1.msra.mxu0 %v69
    %2067 = vmatprep.subr.mxu0 0.0
    %2068 = vmatpush1.msra.mxu0 %v66
    %2069 = vmatprep.subr.mxu0 0.0
    %2070 = vmatpush1.msra.mxu0 %v63
    %2071 = vmatprep.subr.mxu0 0.0
    %2072 = vmatpush1.msra.mxu0 %v60
    %2073 = vmatprep.subr.mxu0 0.0
    %2074 = vmatpush1.msra.mxu0 %v57
    %2075 = vmatprep.subr.mxu0 0.0
    %2076 = vmatpush1.msra.mxu0 %v54
    %2077 = vmatprep.subr.mxu0 0.0
    %2078 = vmatpush2.msra.mxu0 0.0
    %2079 = vmatprep.subr.mxu0 0.0
    %2080 = vmatpush2.msra.mxu0 0.0
    %2081 = vmatprep.subr.mxu0 0.0
    %2082 = vmatpush2.msra.mxu0 0.0
    %2083 = vmatprep.subr.mxu0 0.0
    %2084 = vmatpush2.msra.mxu0 0.0
    %2085 = vmatprep.subr.mxu0 0.0
    %2086 = vmatpush2.msra.mxu0 0.0
    %2087 = vmatprep.subr.mxu0 0.0
    %2088 = vmatpush2.msra.mxu0 0.0
    %2089 = vmatprep.subr.mxu0 0.0
    %2090 = vmatpush2.msra.mxu0 0.0
    %2091 = vmatprep.subr.mxu0 0.0
    %2092 = vmatpush2.msra.mxu0 0.0
    %2093 = vmatprep.subr.mxu0 0.0
    %2094 = vmatpush2.msra.mxu0 0.0
    %2095 = vmatprep.subr.mxu0 0.0
    %2096 = vmatpush2.msra.mxu0 0.0
    %2097 = vmatprep.subr.mxu0 0.0
    %2098 = vmatpush2.msra.mxu0 0.0
    %2099 = vmatprep.subr.mxu0 0.0
    %2100 = vmatpush2.msra.mxu0 0.0
    %2101 = vmatprep.subr.mxu0 0.0
    %2102 = vmatpush2.msra.mxu0 0.0
    %2103 = vmatprep.subr.mxu0 0.0
    %2104 = vmatpush2.msra.mxu0 0.0
    %2105 = vmatprep.subr.mxu0 0.0
    %2106 = vmatpush2.msra.mxu0 0.0
    %2107 = vmatprep.subr.mxu0 0.0
    %2108 = vmatpush2.msra.mxu0 0.0
    %2109 = vmatprep.mubr.f32.mxu0 0.0
    %2110 = vmatmul.mubr.f32.gmra.mxu0 %v1907
    %v2111 = vpop.f32.mrf.mxu0
    %v2112 = vadd.f32 0.0, %v2111
    %v2113 = vpop.f32.mrf.mxu0
    %2114 = vdwg.mxu0
    %v2115 = vadd.f32 %v261, %v2041
    %v2116 = vadd.f32 %v263, %v2043
    %v2117 = vxor.u32 %v2115, 2147483648
    %v2118 = vxor.u32 %v2116, 2147483648
    %v2119 = vmul.f32 %v2117, 1.442695
    %v2120 = vpow.pop %v2119
    %v2121 = vmul.f32 %v2118, 1.442695
    %v2122 = vpow.pop %v2121
    %v2123 = vadd.f32 %v2120, 1.0
    %v2124 = vadd.f32 %v2122, 1.0
    %v2125 = vrcp.pop %v2123
    %v2126 = vmul.f32 1.0, %v2125
    %v2127 = vrcp.pop %v2124
    %v2128 = vmul.f32 1.0, %v2127
    %v2129 = vadd.f32 %v2112, %v102
    %v2130 = vmul.f32 %v2126, %v2129
    %v2131 = vadd.f32 %v367, %v2130
    %v2132 = vtanh.pop %v2131
    %v2133 = vsub.f32 1.0, %v2128
    %v2134 = vmul.f32 %v2133, %v2132
    %v2135 = vmul.f32 %v2128, %v1907
    %v2136 = vadd.f32 %v2134, %v2135
    %v2138 = vcombine.high %v2136, %v2136
    %v2140 = vunpack.c.l.s4 1966171168
    %v2141 = vunpack.c.0.s8 %v2140
    %v2142 = vlaneseq
    %v2143 = vshrl.u32 %v2142, 7
    %v2144 = vsub.s32 %v2141, %v2143
    %v2145 = vrot.slane %v2136, %v2144
    %v2147 = vunpack.c.l.s4 1966171168
    %v2148 = vunpack.c.0.s8 %v2147
    %v2149 = vlaneseq
    %v2150 = vshrl.u32 %v2149, 7
    %v2151 = vsub.s32 %v2148, %v2150
    %v2152 = vrot.slane %v2138, %v2151
    %v2153 = vcombine.high %v2145, %v2145
    %v2154 = vcombine.high %v2152, %v2152
    %v2156 = vunpack.c.l.s4 1966171168
    %v2157 = vunpack.c.0.s8 %v2156
    %v2158 = vlaneseq
    %v2159 = vshrl.u32 %v2158, 7
    %v2160 = vsub.s32 %v2157, %v2159
    %v2161 = vrot.slane %v2145, %v2160
    %v2163 = vunpack.c.l.s4 1966171168
    %v2164 = vunpack.c.0.s8 %v2163
    %v2165 = vlaneseq
    %v2166 = vshrl.u32 %v2165, 7
    %v2167 = vsub.s32 %v2164, %v2166
    %v2168 = vrot.slane %v2152, %v2167
    %v2170 = vunpack.c.l.s4 1966171168
    %v2171 = vunpack.c.0.s8 %v2170
    %v2172 = vlaneseq
    %v2173 = vshrl.u32 %v2172, 7
    %v2174 = vsub.s32 %v2171, %v2173
    %v2175 = vrot.slane %v2153, %v2174
    %v2177 = vunpack.c.l.s4 1966171168
    %v2178 = vunpack.c.0.s8 %v2177
    %v2179 = vlaneseq
    %v2180 = vshrl.u32 %v2179, 7
    %v2181 = vsub.s32 %v2178, %v2180
    %v2182 = vrot.slane %v2154, %v2181
    %v2183 = vcombine.high %v2161, %v2161
    %v2184 = vcombine.high %v2168, %v2168
    %v2185 = vcombine.high %v2175, %v2175
    %v2186 = vcombine.high %v2182, %v2182
    %2195 = vst [vmem:[#allocation2 + $0x7] sm:$0x1] %v2161
    %2196 = vst [vmem:[#allocation2 + $0xf] sm:$0x1] %v2175
    %2197 = vst [vmem:[#allocation2 + $0x17] sm:$0x1] %v2183
    %2198 = vst [vmem:[#allocation2 + $0x1f] sm:$0x1] %v2185
    %2199 = vst [vmem:[#allocation2 + $0x27] sm:$0x1] %v2168
    %2200 = vst [vmem:[#allocation2 + $0x2f] sm:$0x1] %v2182
    %2201 = vst [vmem:[#allocation2 + $0x37] sm:$0x1] %v2184
    %2202 = vst [vmem:[#allocation2 + $0x3f] sm:$0x1] %v2186
    %2203 = vst [vmem:[%s8] sm:$0xff] %v2136
    %v2204 = vld [vmem:[#allocation2] sm:$0xff]
    %v2205 = vld [vmem:[#allocation2 + $0x8] sm:$0xff]
    %v2206 = vld [vmem:[#allocation2 + $0x10] sm:$0xff]
    %v2207 = vld [vmem:[#allocation2 + $0x18] sm:$0xff]
    %v2208 = vld [vmem:[#allocation2 + $0x20] sm:$0xff]
    %v2209 = vld [vmem:[#allocation2 + $0x28] sm:$0xff]
    %v2210 = vld [vmem:[#allocation2 + $0x30] sm:$0xff]
    %v2211 = vld [vmem:[#allocation2 + $0x38] sm:$0xff]
    %v2212 = vld [vmem:[%s2] sm:$0xff]
    %v2213 = vld [vmem:[%s2 + $0x8] sm:$0xff]
    %v2214 = vld [vmem:[%s2 + $0x10] sm:$0xff]
    %v2215 = vld [vmem:[%s2 + $0x18] sm:$0xff]
    %v2216 = vld [vmem:[%s2 + $0x20] sm:$0xff]
    %v2217 = vld [vmem:[%s2 + $0x28] sm:$0xff]
    %v2218 = vld [vmem:[%s2 + $0x30] sm:$0xff]
    %v2219 = vld [vmem:[%s2 + $0x38] sm:$0xff]
    %v2220 = vld [vmem:[%s3] sm:$0xff]
    %v2222 = vcombine.high %v2220, %v2220
    %v2224 = vunpack.c.l.s4 1966171168
    %v2225 = vunpack.c.0.s8 %v2224
    %v2226 = vlaneseq
    %v2227 = vshrl.u32 %v2226, 7
    %v2228 = vsub.s32 %v2225, %v2227
    %v2229 = vrot.slane %v2220, %v2228
    %v2231 = vunpack.c.l.s4 1966171168
    %v2232 = vunpack.c.0.s8 %v2231
    %v2233 = vlaneseq
    %v2234 = vshrl.u32 %v2233, 7
    %v2235 = vsub.s32 %v2232, %v2234
    %v2236 = vrot.slane %v2222, %v2235
    %v2237 = vcombine.high %v2229, %v2229
    %v2238 = vcombine.high %v2236, %v2236
    %v2240 = vunpack.c.l.s4 1966171168
    %v2241 = vunpack.c.0.s8 %v2240
    %v2242 = vlaneseq
    %v2243 = vshrl.u32 %v2242, 7
    %v2244 = vsub.s32 %v2241, %v2243
    %v2245 = vrot.slane %v2229, %v2244
    %v2247 = vunpack.c.l.s4 1966171168
    %v2248 = vunpack.c.0.s8 %v2247
    %v2249 = vlaneseq
    %v2250 = vshrl.u32 %v2249, 7
    %v2251 = vsub.s32 %v2248, %v2250
    %v2252 = vrot.slane %v2236, %v2251
    %v2254 = vunpack.c.l.s4 1966171168
    %v2255 = vunpack.c.0.s8 %v2254
    %v2256 = vlaneseq
    %v2257 = vshrl.u32 %v2256, 7
    %v2258 = vsub.s32 %v2255, %v2257
    %v2259 = vrot.slane %v2237, %v2258
    %v2261 = vunpack.c.l.s4 1966171168
    %v2262 = vunpack.c.0.s8 %v2261
    %v2263 = vlaneseq
    %v2264 = vshrl.u32 %v2263, 7
    %v2265 = vsub.s32 %v2262, %v2264
    %v2266 = vrot.slane %v2238, %v2265
    %v2267 = vcombine.high %v2245, %v2245
    %v2268 = vcombine.high %v2252, %v2252
    %v2269 = vcombine.high %v2259, %v2259
    %v2270 = vcombine.high %v2266, %v2266
    %v2271 = vlaneseq
    %v2272 = vshrl.u32 %v2271, 7
    %v2273 = vsub.s32 0, %v2272
    %v2274 = vrot.slane %v2245, %v2273
    %v2275 = vlaneseq
    %v2276 = vshrl.u32 %v2275, 7
    %v2277 = vsub.s32 0, %v2276
    %v2278 = vrot.slane %v2259, %v2277
    %v2279 = vlaneseq
    %v2280 = vshrl.u32 %v2279, 7
    %v2281 = vsub.s32 0, %v2280
    %v2282 = vrot.slane %v2267, %v2281
    %v2283 = vlaneseq
    %v2284 = vshrl.u32 %v2283, 7
    %v2285 = vsub.s32 0, %v2284
    %v2286 = vrot.slane %v2269, %v2285
    %v2287 = vlaneseq
    %v2288 = vshrl.u32 %v2287, 7
    %v2289 = vsub.s32 0, %v2288
    %v2290 = vrot.slane %v2252, %v2289
    %v2291 = vlaneseq
    %v2292 = vshrl.u32 %v2291, 7
    %v2293 = vsub.s32 0, %v2292
    %v2294 = vrot.slane %v2266, %v2293
    %v2295 = vlaneseq
    %v2296 = vshrl.u32 %v2295, 7
    %v2297 = vsub.s32 0, %v2296
    %v2298 = vrot.slane %v2268, %v2297
    %v2299 = vlaneseq
    %v2300 = vshrl.u32 %v2299, 7
    %v2301 = vsub.s32 0, %v2300
    %v2302 = vrot.slane %v2270, %v2301
    %2311 = vmatprep.subr.mxu0 0.0
    %2312 = vmatpush1.xpose.msra.mxu0 0.0
    %2313 = vmatprep.subr.mxu0 0.0
    %2314 = vmatpush1.xpose.msra.mxu0 0.0
    %2315 = vmatprep.subr.mxu0 0.0
    %2316 = vmatpush1.xpose.msra.mxu0 0.0
    %2317 = vmatprep.subr.mxu0 0.0
    %2318 = vmatpush1.xpose.msra.mxu0 0.0
    %2319 = vmatprep.subr.mxu0 0.0
    %2320 = vmatpush1.xpose.msra.mxu0 0.0
    %2321 = vmatprep.subr.mxu0 0.0
    %2322 = vmatpush1.xpose.msra.mxu0 0.0
    %2323 = vmatprep.subr.mxu0 0.0
    %2324 = vmatpush1.xpose.msra.mxu0 0.0
    %2325 = vmatprep.subr.mxu0 0.0
    %2326 = vmatpush1.xpose.msra.mxu0 0.0
    %2327 = vmatprep.subr.mxu0 0.0
    %2328 = vmatpush1.xpose.msra.mxu0 0.0
    %2329 = vmatprep.subr.mxu0 0.0
    %2330 = vmatpush1.xpose.msra.mxu0 0.0
    %2331 = vmatprep.subr.mxu0 0.0
    %2332 = vmatpush1.xpose.msra.mxu0 0.0
    %2333 = vmatprep.subr.mxu0 0.0
    %2334 = vmatpush1.xpose.msra.mxu0 0.0
    %2335 = vmatprep.subr.mxu0 0.0
    %2336 = vmatpush1.xpose.msra.mxu0 0.0
    %2337 = vmatprep.subr.mxu0 0.0
    %2338 = vmatpush1.xpose.msra.mxu0 0.0
    %2339 = vmatprep.subr.mxu0 0.0
    %2340 = vmatpush1.xpose.msra.mxu0 0.0
    %2341 = vmatprep.subr.mxu0 0.0
    %2342 = vmatpush1.xpose.msra.mxu0 %v2212
    %2343 = vmatprep.subr.mxu0 0.0
    %2344 = vmatpush2.xpose.msra.mxu0 0.0
    %2345 = vmatprep.subr.mxu0 0.0
    %2346 = vmatpush2.xpose.msra.mxu0 0.0
    %2347 = vmatprep.subr.mxu0 0.0
    %2348 = vmatpush2.xpose.msra.mxu0 0.0
    %2349 = vmatprep.subr.mxu0 0.0
    %2350 = vmatpush2.xpose.msra.mxu0 0.0
    %2351 = vmatprep.subr.mxu0 0.0
    %2352 = vmatpush2.xpose.msra.mxu0 0.0
    %2353 = vmatprep.subr.mxu0 0.0
    %2354 = vmatpush2.xpose.msra.mxu0 0.0
    %2355 = vmatprep.subr.mxu0 0.0
    %2356 = vmatpush2.xpose.msra.mxu0 0.0
    %2357 = vmatprep.subr.mxu0 0.0
    %2358 = vmatpush2.xpose.msra.mxu0 0.0
    %2359 = vmatprep.subr.mxu0 0.0
    %2360 = vmatpush2.xpose.msra.mxu0 0.0
    %2361 = vmatprep.subr.mxu0 0.0
    %2362 = vmatpush2.xpose.msra.mxu0 0.0
    %2363 = vmatprep.subr.mxu0 0.0
    %2364 = vmatpush2.xpose.msra.mxu0 0.0
    %2365 = vmatprep.subr.mxu0 0.0
    %2366 = vmatpush2.xpose.msra.mxu0 0.0
    %2367 = vmatprep.subr.mxu0 0.0
    %2368 = vmatpush2.xpose.msra.mxu0 0.0
    %2369 = vmatprep.subr.mxu0 0.0
    %2370 = vmatpush2.xpose.msra.mxu0 0.0
    %2371 = vmatprep.subr.mxu0 0.0
    %2372 = vmatpush2.xpose.msra.mxu0 0.0
    %2373 = vmatprep.subr.mxu0 0.0
    %2374 = vmatpush2.xpose.msra.mxu0 0.0
    %2375 = vmatprep.mubr.f32.mxu0 0.0
    %2376 = vmatmul.mubr.f32.gmra.mxu0 %v2204
    %v2377 = vpop.f32.mrf.mxu0
    %v2378 = vadd.f32 %v2274, %v2377
    %v2379 = vpop.f32.mrf.mxu0
    %2380 = vdwg.mxu0
    %2381 = vmatprep.subr.mxu0 0.0
    %2382 = vmatpush1.xpose.msra.mxu0 0.0
    %2383 = vmatprep.subr.mxu0 0.0
    %2384 = vmatpush1.xpose.msra.mxu0 0.0
    %2385 = vmatprep.subr.mxu0 0.0
    %2386 = vmatpush1.xpose.msra.mxu0 0.0
    %2387 = vmatprep.subr.mxu0 0.0
    %2388 = vmatpush1.xpose.msra.mxu0 0.0
    %2389 = vmatprep.subr.mxu0 0.0
    %2390 = vmatpush1.xpose.msra.mxu0 0.0
    %2391 = vmatprep.subr.mxu0 0.0
    %2392 = vmatpush1.xpose.msra.mxu0 0.0
    %2393 = vmatprep.subr.mxu0 0.0
    %2394 = vmatpush1.xpose.msra.mxu0 0.0
    %2395 = vmatprep.subr.mxu0 0.0
    %2396 = vmatpush1.xpose.msra.mxu0 0.0
    %2397 = vmatprep.subr.mxu0 0.0
    %2398 = vmatpush1.xpose.msra.mxu0 0.0
    %2399 = vmatprep.subr.mxu0 0.0
    %2400 = vmatpush1.xpose.msra.mxu0 0.0
    %2401 = vmatprep.subr.mxu0 0.0
    %2402 = vmatpush1.xpose.msra.mxu0 0.0
    %2403 = vmatprep.subr.mxu0 0.0
    %2404 = vmatpush1.xpose.msra.mxu0 0.0
    %2405 = vmatprep.subr.mxu0 0.0
    %2406 = vmatpush1.xpose.msra.mxu0 0.0
    %2407 = vmatprep.subr.mxu0 0.0
    %2408 = vmatpush1.xpose.msra.mxu0 0.0
    %2409 = vmatprep.subr.mxu0 0.0
    %2410 = vmatpush1.xpose.msra.mxu0 0.0
    %2411 = vmatprep.subr.mxu0 0.0
    %2412 = vmatpush1.xpose.msra.mxu0 %v2213
    %2413 = vmatprep.subr.mxu0 0.0
    %2414 = vmatpush2.xpose.msra.mxu0 0.0
    %2415 = vmatprep.subr.mxu0 0.0
    %2416 = vmatpush2.xpose.msra.mxu0 0.0
    %2417 = vmatprep.subr.mxu0 0.0
    %2418 = vmatpush2.xpose.msra.mxu0 0.0
    %2419 = vmatprep.subr.mxu0 0.0
    %2420 = vmatpush2.xpose.msra.mxu0 0.0
    %2421 = vmatprep.subr.mxu0 0.0
    %2422 = vmatpush2.xpose.msra.mxu0 0.0
    %2423 = vmatprep.subr.mxu0 0.0
    %2424 = vmatpush2.xpose.msra.mxu0 0.0
    %2425 = vmatprep.subr.mxu0 0.0
    %2426 = vmatpush2.xpose.msra.mxu0 0.0
    %2427 = vmatprep.subr.mxu0 0.0
    %2428 = vmatpush2.xpose.msra.mxu0 0.0
    %2429 = vmatprep.subr.mxu0 0.0
    %2430 = vmatpush2.xpose.msra.mxu0 0.0
    %2431 = vmatprep.subr.mxu0 0.0
    %2432 = vmatpush2.xpose.msra.mxu0 0.0
    %2433 = vmatprep.subr.mxu0 0.0
    %2434 = vmatpush2.xpose.msra.mxu0 0.0
    %2435 = vmatprep.subr.mxu0 0.0
    %2436 = vmatpush2.xpose.msra.mxu0 0.0
    %2437 = vmatprep.subr.mxu0 0.0
    %2438 = vmatpush2.xpose.msra.mxu0 0.0
    %2439 = vmatprep.subr.mxu0 0.0
    %2440 = vmatpush2.xpose.msra.mxu0 0.0
    %2441 = vmatprep.subr.mxu0 0.0
    %2442 = vmatpush2.xpose.msra.mxu0 0.0
    %2443 = vmatprep.subr.mxu0 0.0
    %2444 = vmatpush2.xpose.msra.mxu0 0.0
    %2445 = vmatprep.mubr.f32.mxu0 0.0
    %2446 = vmatmul.mubr.f32.gmra.mxu0 %v2205
    %v2447 = vpop.f32.mrf.mxu0
    %v2448 = vadd.f32 %v2278, %v2447
    %v2449 = vpop.f32.mrf.mxu0
    %2450 = vdwg.mxu0
    %2451 = vmatprep.subr.mxu0 0.0
    %2452 = vmatpush1.xpose.msra.mxu0 0.0
    %2453 = vmatprep.subr.mxu0 0.0
    %2454 = vmatpush1.xpose.msra.mxu0 0.0
    %2455 = vmatprep.subr.mxu0 0.0
    %2456 = vmatpush1.xpose.msra.mxu0 0.0
    %2457 = vmatprep.subr.mxu0 0.0
    %2458 = vmatpush1.xpose.msra.mxu0 0.0
    %2459 = vmatprep.subr.mxu0 0.0
    %2460 = vmatpush1.xpose.msra.mxu0 0.0
    %2461 = vmatprep.subr.mxu0 0.0
    %2462 = vmatpush1.xpose.msra.mxu0 0.0
    %2463 = vmatprep.subr.mxu0 0.0
    %2464 = vmatpush1.xpose.msra.mxu0 0.0
    %2465 = vmatprep.subr.mxu0 0.0
    %2466 = vmatpush1.xpose.msra.mxu0 0.0
    %2467 = vmatprep.subr.mxu0 0.0
    %2468 = vmatpush1.xpose.msra.mxu0 0.0
    %2469 = vmatprep.subr.mxu0 0.0
    %2470 = vmatpush1.xpose.msra.mxu0 0.0
    %2471 = vmatprep.subr.mxu0 0.0
    %2472 = vmatpush1.xpose.msra.mxu0 0.0
    %2473 = vmatprep.subr.mxu0 0.0
    %2474 = vmatpush1.xpose.msra.mxu0 0.0
    %2475 = vmatprep.subr.mxu0 0.0
    %2476 = vmatpush1.xpose.msra.mxu0 0.0
    %2477 = vmatprep.subr.mxu0 0.0
    %2478 = vmatpush1.xpose.msra.mxu0 0.0
    %2479 = vmatprep.subr.mxu0 0.0
    %2480 = vmatpush1.xpose.msra.mxu0 0.0
    %2481 = vmatprep.subr.mxu0 0.0
    %2482 = vmatpush1.xpose.msra.mxu0 %v2214
    %2483 = vmatprep.subr.mxu0 0.0
    %2484 = vmatpush2.xpose.msra.mxu0 0.0
    %2485 = vmatprep.subr.mxu0 0.0
    %2486 = vmatpush2.xpose.msra.mxu0 0.0
    %2487 = vmatprep.subr.mxu0 0.0
    %2488 = vmatpush2.xpose.msra.mxu0 0.0
    %2489 = vmatprep.subr.mxu0 0.0
    %2490 = vmatpush2.xpose.msra.mxu0 0.0
    %2491 = vmatprep.subr.mxu0 0.0
    %2492 = vmatpush2.xpose.msra.mxu0 0.0
    %2493 = vmatprep.subr.mxu0 0.0
    %2494 = vmatpush2.xpose.msra.mxu0 0.0
    %2495 = vmatprep.subr.mxu0 0.0
    %2496 = vmatpush2.xpose.msra.mxu0 0.0
    %2497 = vmatprep.subr.mxu0 0.0
    %2498 = vmatpush2.xpose.msra.mxu0 0.0
    %2499 = vmatprep.subr.mxu0 0.0
    %2500 = vmatpush2.xpose.msra.mxu0 0.0
    %2501 = vmatprep.subr.mxu0 0.0
    %2502 = vmatpush2.xpose.msra.mxu0 0.0
    %2503 = vmatprep.subr.mxu0 0.0
    %2504 = vmatpush2.xpose.msra.mxu0 0.0
    %2505 = vmatprep.subr.mxu0 0.0
    %2506 = vmatpush2.xpose.msra.mxu0 0.0
    %2507 = vmatprep.subr.mxu0 0.0
    %2508 = vmatpush2.xpose.msra.mxu0 0.0
    %2509 = vmatprep.subr.mxu0 0.0
    %2510 = vmatpush2.xpose.msra.mxu0 0.0
    %2511 = vmatprep.subr.mxu0 0.0
    %2512 = vmatpush2.xpose.msra.mxu0 0.0
    %2513 = vmatprep.subr.mxu0 0.0
    %2514 = vmatpush2.xpose.msra.mxu0 0.0
    %2515 = vmatprep.mubr.f32.mxu0 0.0
    %2516 = vmatmul.mubr.f32.gmra.mxu0 %v2206
    %v2517 = vpop.f32.mrf.mxu0
    %v2518 = vadd.f32 %v2282, %v2517
    %v2519 = vpop.f32.mrf.mxu0
    %2520 = vdwg.mxu0
    %2521 = vmatprep.subr.mxu0 0.0
    %2522 = vmatpush1.xpose.msra.mxu0 0.0
    %2523 = vmatprep.subr.mxu0 0.0
    %2524 = vmatpush1.xpose.msra.mxu0 0.0
    %2525 = vmatprep.subr.mxu0 0.0
    %2526 = vmatpush1.xpose.msra.mxu0 0.0
    %2527 = vmatprep.subr.mxu0 0.0
    %2528 = vmatpush1.xpose.msra.mxu0 0.0
    %2529 = vmatprep.subr.mxu0 0.0
    %2530 = vmatpush1.xpose.msra.mxu0 0.0
    %2531 = vmatprep.subr.mxu0 0.0
    %2532 = vmatpush1.xpose.msra.mxu0 0.0
    %2533 = vmatprep.subr.mxu0 0.0
    %2534 = vmatpush1.xpose.msra.mxu0 0.0
    %2535 = vmatprep.subr.mxu0 0.0
    %2536 = vmatpush1.xpose.msra.mxu0 0.0
    %2537 = vmatprep.subr.mxu0 0.0
    %2538 = vmatpush1.xpose.msra.mxu0 0.0
    %2539 = vmatprep.subr.mxu0 0.0
    %2540 = vmatpush1.xpose.msra.mxu0 0.0
    %2541 = vmatprep.subr.mxu0 0.0
    %2542 = vmatpush1.xpose.msra.mxu0 0.0
    %2543 = vmatprep.subr.mxu0 0.0
    %2544 = vmatpush1.xpose.msra.mxu0 0.0
    %2545 = vmatprep.subr.mxu0 0.0
    %2546 = vmatpush1.xpose.msra.mxu0 0.0
    %2547 = vmatprep.subr.mxu0 0.0
    %2548 = vmatpush1.xpose.msra.mxu0 0.0
    %2549 = vmatprep.subr.mxu0 0.0
    %2550 = vmatpush1.xpose.msra.mxu0 0.0
    %2551 = vmatprep.subr.mxu0 0.0
    %2552 = vmatpush1.xpose.msra.mxu0 %v2215
    %2553 = vmatprep.subr.mxu0 0.0
    %2554 = vmatpush2.xpose.msra.mxu0 0.0
    %2555 = vmatprep.subr.mxu0 0.0
    %2556 = vmatpush2.xpose.msra.mxu0 0.0
    %2557 = vmatprep.subr.mxu0 0.0
    %2558 = vmatpush2.xpose.msra.mxu0 0.0
    %2559 = vmatprep.subr.mxu0 0.0
    %2560 = vmatpush2.xpose.msra.mxu0 0.0
    %2561 = vmatprep.subr.mxu0 0.0
    %2562 = vmatpush2.xpose.msra.mxu0 0.0
    %2563 = vmatprep.subr.mxu0 0.0
    %2564 = vmatpush2.xpose.msra.mxu0 0.0
    %2565 = vmatprep.subr.mxu0 0.0
    %2566 = vmatpush2.xpose.msra.mxu0 0.0
    %2567 = vmatprep.subr.mxu0 0.0
    %2568 = vmatpush2.xpose.msra.mxu0 0.0
    %2569 = vmatprep.subr.mxu0 0.0
    %2570 = vmatpush2.xpose.msra.mxu0 0.0
    %2571 = vmatprep.subr.mxu0 0.0
    %2572 = vmatpush2.xpose.msra.mxu0 0.0
    %2573 = vmatprep.subr.mxu0 0.0
    %2574 = vmatpush2.xpose.msra.mxu0 0.0
    %2575 = vmatprep.subr.mxu0 0.0
    %2576 = vmatpush2.xpose.msra.mxu0 0.0
    %2577 = vmatprep.subr.mxu0 0.0
    %2578 = vmatpush2.xpose.msra.mxu0 0.0
    %2579 = vmatprep.subr.mxu0 0.0
    %2580 = vmatpush2.xpose.msra.mxu0 0.0
    %2581 = vmatprep.subr.mxu0 0.0
    %2582 = vmatpush2.xpose.msra.mxu0 0.0
    %2583 = vmatprep.subr.mxu0 0.0
    %2584 = vmatpush2.xpose.msra.mxu0 0.0
    %2585 = vmatprep.mubr.f32.mxu0 0.0
    %2586 = vmatmul.mubr.f32.gmra.mxu0 %v2207
    %v2587 = vpop.f32.mrf.mxu0
    %v2588 = vadd.f32 %v2286, %v2587
    %v2589 = vpop.f32.mrf.mxu0
    %2590 = vdwg.mxu0
    %2591 = vmatprep.subr.mxu0 0.0
    %2592 = vmatpush1.xpose.msra.mxu0 0.0
    %2593 = vmatprep.subr.mxu0 0.0
    %2594 = vmatpush1.xpose.msra.mxu0 0.0
    %2595 = vmatprep.subr.mxu0 0.0
    %2596 = vmatpush1.xpose.msra.mxu0 0.0
    %2597 = vmatprep.subr.mxu0 0.0
    %2598 = vmatpush1.xpose.msra.mxu0 0.0
    %2599 = vmatprep.subr.mxu0 0.0
    %2600 = vmatpush1.xpose.msra.mxu0 0.0
    %2601 = vmatprep.subr.mxu0 0.0
    %2602 = vmatpush1.xpose.msra.mxu0 0.0
    %2603 = vmatprep.subr.mxu0 0.0
    %2604 = vmatpush1.xpose.msra.mxu0 0.0
    %2605 = vmatprep.subr.mxu0 0.0
    %2606 = vmatpush1.xpose.msra.mxu0 0.0
    %2607 = vmatprep.subr.mxu0 0.0
    %2608 = vmatpush1.xpose.msra.mxu0 0.0
    %2609 = vmatprep.subr.mxu0 0.0
    %2610 = vmatpush1.xpose.msra.mxu0 0.0
    %2611 = vmatprep.subr.mxu0 0.0
    %2612 = vmatpush1.xpose.msra.mxu0 0.0
    %2613 = vmatprep.subr.mxu0 0.0
    %2614 = vmatpush1.xpose.msra.mxu0 0.0
    %2615 = vmatprep.subr.mxu0 0.0
    %2616 = vmatpush1.xpose.msra.mxu0 0.0
    %2617 = vmatprep.subr.mxu0 0.0
    %2618 = vmatpush1.xpose.msra.mxu0 0.0
    %2619 = vmatprep.subr.mxu0 0.0
    %2620 = vmatpush1.xpose.msra.mxu0 0.0
    %2621 = vmatprep.subr.mxu0 0.0
    %2622 = vmatpush1.xpose.msra.mxu0 %v2216
    %2623 = vmatprep.subr.mxu0 0.0
    %2624 = vmatpush2.xpose.msra.mxu0 0.0
    %2625 = vmatprep.subr.mxu0 0.0
    %2626 = vmatpush2.xpose.msra.mxu0 0.0
    %2627 = vmatprep.subr.mxu0 0.0
    %2628 = vmatpush2.xpose.msra.mxu0 0.0
    %2629 = vmatprep.subr.mxu0 0.0
    %2630 = vmatpush2.xpose.msra.mxu0 0.0
    %2631 = vmatprep.subr.mxu0 0.0
    %2632 = vmatpush2.xpose.msra.mxu0 0.0
    %2633 = vmatprep.subr.mxu0 0.0
    %2634 = vmatpush2.xpose.msra.mxu0 0.0
    %2635 = vmatprep.subr.mxu0 0.0
    %2636 = vmatpush2.xpose.msra.mxu0 0.0
    %2637 = vmatprep.subr.mxu0 0.0
    %2638 = vmatpush2.xpose.msra.mxu0 0.0
    %2639 = vmatprep.subr.mxu0 0.0
    %2640 = vmatpush2.xpose.msra.mxu0 0.0
    %2641 = vmatprep.subr.mxu0 0.0
    %2642 = vmatpush2.xpose.msra.mxu0 0.0
    %2643 = vmatprep.subr.mxu0 0.0
    %2644 = vmatpush2.xpose.msra.mxu0 0.0
    %2645 = vmatprep.subr.mxu0 0.0
    %2646 = vmatpush2.xpose.msra.mxu0 0.0
    %2647 = vmatprep.subr.mxu0 0.0
    %2648 = vmatpush2.xpose.msra.mxu0 0.0
    %2649 = vmatprep.subr.mxu0 0.0
    %2650 = vmatpush2.xpose.msra.mxu0 0.0
    %2651 = vmatprep.subr.mxu0 0.0
    %2652 = vmatpush2.xpose.msra.mxu0 0.0
    %2653 = vmatprep.subr.mxu0 0.0
    %2654 = vmatpush2.xpose.msra.mxu0 0.0
    %2655 = vmatprep.mubr.f32.mxu0 0.0
    %2656 = vmatmul.mubr.f32.gmra.mxu0 %v2208
    %v2657 = vpop.f32.mrf.mxu0
    %v2658 = vadd.f32 %v2290, %v2657
    %v2659 = vpop.f32.mrf.mxu0
    %2660 = vdwg.mxu0
    %2661 = vmatprep.subr.mxu0 0.0
    %2662 = vmatpush1.xpose.msra.mxu0 0.0
    %2663 = vmatprep.subr.mxu0 0.0
    %2664 = vmatpush1.xpose.msra.mxu0 0.0
    %2665 = vmatprep.subr.mxu0 0.0
    %2666 = vmatpush1.xpose.msra.mxu0 0.0
    %2667 = vmatprep.subr.mxu0 0.0
    %2668 = vmatpush1.xpose.msra.mxu0 0.0
    %2669 = vmatprep.subr.mxu0 0.0
    %2670 = vmatpush1.xpose.msra.mxu0 0.0
    %2671 = vmatprep.subr.mxu0 0.0
    %2672 = vmatpush1.xpose.msra.mxu0 0.0
    %2673 = vmatprep.subr.mxu0 0.0
    %2674 = vmatpush1.xpose.msra.mxu0 0.0
    %2675 = vmatprep.subr.mxu0 0.0
    %2676 = vmatpush1.xpose.msra.mxu0 0.0
    %2677 = vmatprep.subr.mxu0 0.0
    %2678 = vmatpush1.xpose.msra.mxu0 0.0
    %2679 = vmatprep.subr.mxu0 0.0
    %2680 = vmatpush1.xpose.msra.mxu0 0.0
    %2681 = vmatprep.subr.mxu0 0.0
    %2682 = vmatpush1.xpose.msra.mxu0 0.0
    %2683 = vmatprep.subr.mxu0 0.0
    %2684 = vmatpush1.xpose.msra.mxu0 0.0
    %2685 = vmatprep.subr.mxu0 0.0
    %2686 = vmatpush1.xpose.msra.mxu0 0.0
    %2687 = vmatprep.subr.mxu0 0.0
    %2688 = vmatpush1.xpose.msra.mxu0 0.0
    %2689 = vmatprep.subr.mxu0 0.0
    %2690 = vmatpush1.xpose.msra.mxu0 0.0
    %2691 = vmatprep.subr.mxu0 0.0
    %2692 = vmatpush1.xpose.msra.mxu0 %v2217
    %2693 = vmatprep.subr.mxu0 0.0
    %2694 = vmatpush2.xpose.msra.mxu0 0.0
    %2695 = vmatprep.subr.mxu0 0.0
    %2696 = vmatpush2.xpose.msra.mxu0 0.0
    %2697 = vmatprep.subr.mxu0 0.0
    %2698 = vmatpush2.xpose.msra.mxu0 0.0
    %2699 = vmatprep.subr.mxu0 0.0
    %2700 = vmatpush2.xpose.msra.mxu0 0.0
    %2701 = vmatprep.subr.mxu0 0.0
    %2702 = vmatpush2.xpose.msra.mxu0 0.0
    %2703 = vmatprep.subr.mxu0 0.0
    %2704 = vmatpush2.xpose.msra.mxu0 0.0
    %2705 = vmatprep.subr.mxu0 0.0
    %2706 = vmatpush2.xpose.msra.mxu0 0.0
    %2707 = vmatprep.subr.mxu0 0.0
    %2708 = vmatpush2.xpose.msra.mxu0 0.0
    %2709 = vmatprep.subr.mxu0 0.0
    %2710 = vmatpush2.xpose.msra.mxu0 0.0
    %2711 = vmatprep.subr.mxu0 0.0
    %2712 = vmatpush2.xpose.msra.mxu0 0.0
    %2713 = vmatprep.subr.mxu0 0.0
    %2714 = vmatpush2.xpose.msra.mxu0 0.0
    %2715 = vmatprep.subr.mxu0 0.0
    %2716 = vmatpush2.xpose.msra.mxu0 0.0
    %2717 = vmatprep.subr.mxu0 0.0
    %2718 = vmatpush2.xpose.msra.mxu0 0.0
    %2719 = vmatprep.subr.mxu0 0.0
    %2720 = vmatpush2.xpose.msra.mxu0 0.0
    %2721 = vmatprep.subr.mxu0 0.0
    %2722 = vmatpush2.xpose.msra.mxu0 0.0
    %2723 = vmatprep.subr.mxu0 0.0
    %2724 = vmatpush2.xpose.msra.mxu0 0.0
    %2725 = vmatprep.mubr.f32.mxu0 0.0
    %2726 = vmatmul.mubr.f32.gmra.mxu0 %v2209
    %v2727 = vpop.f32.mrf.mxu0
    %v2728 = vadd.f32 %v2294, %v2727
    %v2729 = vpop.f32.mrf.mxu0
    %2730 = vdwg.mxu0
    %2731 = vmatprep.subr.mxu0 0.0
    %2732 = vmatpush1.xpose.msra.mxu0 0.0
    %2733 = vmatprep.subr.mxu0 0.0
    %2734 = vmatpush1.xpose.msra.mxu0 0.0
    %2735 = vmatprep.subr.mxu0 0.0
    %2736 = vmatpush1.xpose.msra.mxu0 0.0
    %2737 = vmatprep.subr.mxu0 0.0
    %2738 = vmatpush1.xpose.msra.mxu0 0.0
    %2739 = vmatprep.subr.mxu0 0.0
    %2740 = vmatpush1.xpose.msra.mxu0 0.0
    %2741 = vmatprep.subr.mxu0 0.0
    %2742 = vmatpush1.xpose.msra.mxu0 0.0
    %2743 = vmatprep.subr.mxu0 0.0
    %2744 = vmatpush1.xpose.msra.mxu0 0.0
    %2745 = vmatprep.subr.mxu0 0.0
    %2746 = vmatpush1.xpose.msra.mxu0 0.0
    %2747 = vmatprep.subr.mxu0 0.0
    %2748 = vmatpush1.xpose.msra.mxu0 0.0
    %2749 = vmatprep.subr.mxu0 0.0
    %2750 = vmatpush1.xpose.msra.mxu0 0.0
    %2751 = vmatprep.subr.mxu0 0.0
    %2752 = vmatpush1.xpose.msra.mxu0 0.0
    %2753 = vmatprep.subr.mxu0 0.0
    %2754 = vmatpush1.xpose.msra.mxu0 0.0
    %2755 = vmatprep.subr.mxu0 0.0
    %2756 = vmatpush1.xpose.msra.mxu0 0.0
    %2757 = vmatprep.subr.mxu0 0.0
    %2758 = vmatpush1.xpose.msra.mxu0 0.0
    %2759 = vmatprep.subr.mxu0 0.0
    %2760 = vmatpush1.xpose.msra.mxu0 0.0
    %2761 = vmatprep.subr.mxu0 0.0
    %2762 = vmatpush1.xpose.msra.mxu0 %v2218
    %2763 = vmatprep.subr.mxu0 0.0
    %2764 = vmatpush2.xpose.msra.mxu0 0.0
    %2765 = vmatprep.subr.mxu0 0.0
    %2766 = vmatpush2.xpose.msra.mxu0 0.0
    %2767 = vmatprep.subr.mxu0 0.0
    %2768 = vmatpush2.xpose.msra.mxu0 0.0
    %2769 = vmatprep.subr.mxu0 0.0
    %2770 = vmatpush2.xpose.msra.mxu0 0.0
    %2771 = vmatprep.subr.mxu0 0.0
    %2772 = vmatpush2.xpose.msra.mxu0 0.0
    %2773 = vmatprep.subr.mxu0 0.0
    %2774 = vmatpush2.xpose.msra.mxu0 0.0
    %2775 = vmatprep.subr.mxu0 0.0
    %2776 = vmatpush2.xpose.msra.mxu0 0.0
    %2777 = vmatprep.subr.mxu0 0.0
    %2778 = vmatpush2.xpose.msra.mxu0 0.0
    %2779 = vmatprep.subr.mxu0 0.0
    %2780 = vmatpush2.xpose.msra.mxu0 0.0
    %2781 = vmatprep.subr.mxu0 0.0
    %2782 = vmatpush2.xpose.msra.mxu0 0.0
    %2783 = vmatprep.subr.mxu0 0.0
    %2784 = vmatpush2.xpose.msra.mxu0 0.0
    %2785 = vmatprep.subr.mxu0 0.0
    %2786 = vmatpush2.xpose.msra.mxu0 0.0
    %2787 = vmatprep.subr.mxu0 0.0
    %2788 = vmatpush2.xpose.msra.mxu0 0.0
    %2789 = vmatprep.subr.mxu0 0.0
    %2790 = vmatpush2.xpose.msra.mxu0 0.0
    %2791 = vmatprep.subr.mxu0 0.0
    %2792 = vmatpush2.xpose.msra.mxu0 0.0
    %2793 = vmatprep.subr.mxu0 0.0
    %2794 = vmatpush2.xpose.msra.mxu0 0.0
    %2795 = vmatprep.mubr.f32.mxu0 0.0
    %2796 = vmatmul.mubr.f32.gmra.mxu0 %v2210
    %v2797 = vpop.f32.mrf.mxu0
    %v2798 = vadd.f32 %v2298, %v2797
    %v2799 = vpop.f32.mrf.mxu0
    %2800 = vdwg.mxu0
    %2801 = vmatprep.subr.mxu0 0.0
    %2802 = vmatpush1.xpose.msra.mxu0 0.0
    %2803 = vmatprep.subr.mxu0 0.0
    %2804 = vmatpush1.xpose.msra.mxu0 0.0
    %2805 = vmatprep.subr.mxu0 0.0
    %2806 = vmatpush1.xpose.msra.mxu0 0.0
    %2807 = vmatprep.subr.mxu0 0.0
    %2808 = vmatpush1.xpose.msra.mxu0 0.0
    %2809 = vmatprep.subr.mxu0 0.0
    %2810 = vmatpush1.xpose.msra.mxu0 0.0
    %2811 = vmatprep.subr.mxu0 0.0
    %2812 = vmatpush1.xpose.msra.mxu0 0.0
    %2813 = vmatprep.subr.mxu0 0.0
    %2814 = vmatpush1.xpose.msra.mxu0 0.0
    %2815 = vmatprep.subr.mxu0 0.0
    %2816 = vmatpush1.xpose.msra.mxu0 0.0
    %2817 = vmatprep.subr.mxu0 0.0
    %2818 = vmatpush1.xpose.msra.mxu0 0.0
    %2819 = vmatprep.subr.mxu0 0.0
    %2820 = vmatpush1.xpose.msra.mxu0 0.0
    %2821 = vmatprep.subr.mxu0 0.0
    %2822 = vmatpush1.xpose.msra.mxu0 0.0
    %2823 = vmatprep.subr.mxu0 0.0
    %2824 = vmatpush1.xpose.msra.mxu0 0.0
    %2825 = vmatprep.subr.mxu0 0.0
    %2826 = vmatpush1.xpose.msra.mxu0 0.0
    %2827 = vmatprep.subr.mxu0 0.0
    %2828 = vmatpush1.xpose.msra.mxu0 0.0
    %2829 = vmatprep.subr.mxu0 0.0
    %2830 = vmatpush1.xpose.msra.mxu0 0.0
    %2831 = vmatprep.subr.mxu0 0.0
    %2832 = vmatpush1.xpose.msra.mxu0 %v2219
    %2833 = vmatprep.subr.mxu0 0.0
    %2834 = vmatpush2.xpose.msra.mxu0 0.0
    %2835 = vmatprep.subr.mxu0 0.0
    %2836 = vmatpush2.xpose.msra.mxu0 0.0
    %2837 = vmatprep.subr.mxu0 0.0
    %2838 = vmatpush2.xpose.msra.mxu0 0.0
    %2839 = vmatprep.subr.mxu0 0.0
    %2840 = vmatpush2.xpose.msra.mxu0 0.0
    %2841 = vmatprep.subr.mxu0 0.0
    %2842 = vmatpush2.xpose.msra.mxu0 0.0
    %2843 = vmatprep.subr.mxu0 0.0
    %2844 = vmatpush2.xpose.msra.mxu0 0.0
    %2845 = vmatprep.subr.mxu0 0.0
    %2846 = vmatpush2.xpose.msra.mxu0 0.0
    %2847 = vmatprep.subr.mxu0 0.0
    %2848 = vmatpush2.xpose.msra.mxu0 0.0
    %2849 = vmatprep.subr.mxu0 0.0
    %2850 = vmatpush2.xpose.msra.mxu0 0.0
    %2851 = vmatprep.subr.mxu0 0.0
    %2852 = vmatpush2.xpose.msra.mxu0 0.0
    %2853 = vmatprep.subr.mxu0 0.0
    %2854 = vmatpush2.xpose.msra.mxu0 0.0
    %2855 = vmatprep.subr.mxu0 0.0
    %2856 = vmatpush2.xpose.msra.mxu0 0.0
    %2857 = vmatprep.subr.mxu0 0.0
    %2858 = vmatpush2.xpose.msra.mxu0 0.0
    %2859 = vmatprep.subr.mxu0 0.0
    %2860 = vmatpush2.xpose.msra.mxu0 0.0
    %2861 = vmatprep.subr.mxu0 0.0
    %2862 = vmatpush2.xpose.msra.mxu0 0.0
    %2863 = vmatprep.subr.mxu0 0.0
    %2864 = vmatpush2.xpose.msra.mxu0 0.0
    %2865 = vmatprep.mubr.f32.mxu0 0.0
    %2866 = vmatmul.mubr.f32.gmra.mxu0 %v2211
    %v2867 = vpop.f32.mrf.mxu0
    %v2868 = vadd.f32 %v2302, %v2867
    %v2869 = vpop.f32.mrf.mxu0
    %2870 = vdwg.mxu0
    %vm2871 = vcmask 64512
    %v2872 = vsel %vm2871, %v2378, -inf
    %2873 = vmax.xlane.f32.xlu0 %v2872
    %v2874 = vpop.xlane.xlu0 %2873
    %v2875 = vsel %vm2871, %v2448, -inf
    %2876 = vmax.xlane.f32.xlu0 %v2875
    %v2877 = vpop.xlane.xlu0 %2876
    %v2878 = vsel %vm2871, %v2518, -inf
    %2879 = vmax.xlane.f32.xlu0 %v2878
    %v2880 = vpop.xlane.xlu0 %2879
    %v2881 = vsel %vm2871, %v2588, -inf
    %2882 = vmax.xlane.f32.xlu0 %v2881
    %v2883 = vpop.xlane.xlu0 %2882
    %v2884 = vsel %vm2871, %v2658, -inf
    %2885 = vmax.xlane.f32.xlu0 %v2884
    %v2886 = vpop.xlane.xlu0 %2885
    %v2887 = vsel %vm2871, %v2728, -inf
    %2888 = vmax.xlane.f32.xlu0 %v2887
    %v2889 = vpop.xlane.xlu0 %2888
    %v2890 = vsel %vm2871, %v2798, -inf
    %2891 = vmax.xlane.f32.xlu0 %v2890
    %v2892 = vpop.xlane.xlu0 %2891
    %v2893 = vsel %vm2871, %v2868, -inf
    %2894 = vmax.xlane.f32.xlu0 %v2893
    %v2895 = vpop.xlane.xlu0 %2894
    %v2896 = vsub.f32 %v2378, %v2874
    %v2897 = vsub.f32 %v2448, %v2877
    %v2898 = vsub.f32 %v2518, %v2880
    %v2899 = vsub.f32 %v2588, %v2883
    %v2900 = vsub.f32 %v2658, %v2886
    %v2901 = vsub.f32 %v2728, %v2889
    %v2902 = vsub.f32 %v2798, %v2892
    %v2903 = vsub.f32 %v2868, %v2895
    %v2904 = vmul.f32 %v2896, 1.442695
    %v2905 = vpow.pop %v2904
    %v2906 = vmul.f32 %v2897, 1.442695
    %v2907 = vpow.pop %v2906
    %v2908 = vmul.f32 %v2898, 1.442695
    %v2909 = vpow.pop %v2908
    %v2910 = vmul.f32 %v2899, 1.442695
    %v2911 = vpow.pop %v2910
    %v2912 = vmul.f32 %v2900, 1.442695
    %v2913 = vpow.pop %v2912
    %v2914 = vmul.f32 %v2901, 1.442695
    %v2915 = vpow.pop %v2914
    %v2916 = vmul.f32 %v2902, 1.442695
    %v2917 = vpow.pop %v2916
    %v2918 = vmul.f32 %v2903, 1.442695
    %v2919 = vpow.pop %v2918
    %v2920 = vsel %vm2871, %v2905, 0.0
    %2921 = vadd.xlane.f32.xlu0 %v2920
    %v2922 = vpop.xlane.xlu0 %2921
    %v2923 = vsel %vm2871, %v2907, 0.0
    %2924 = vadd.xlane.f32.xlu0 %v2923
    %v2925 = vpop.xlane.xlu0 %2924
    %v2926 = vsel %vm2871, %v2909, 0.0
    %2927 = vadd.xlane.f32.xlu0 %v2926
    %v2928 = vpop.xlane.xlu0 %2927
    %v2929 = vsel %vm2871, %v2911, 0.0
    %2930 = vadd.xlane.f32.xlu0 %v2929
    %v2931 = vpop.xlane.xlu0 %2930
    %v2932 = vsel %vm2871, %v2913, 0.0
    %2933 = vadd.xlane.f32.xlu0 %v2932
    %v2934 = vpop.xlane.xlu0 %2933
    %v2935 = vsel %vm2871, %v2915, 0.0
    %2936 = vadd.xlane.f32.xlu0 %v2935
    %v2937 = vpop.xlane.xlu0 %2936
    %v2938 = vsel %vm2871, %v2917, 0.0
    %2939 = vadd.xlane.f32.xlu0 %v2938
    %v2940 = vpop.xlane.xlu0 %2939
    %v2941 = vsel %vm2871, %v2919, 0.0
    %2942 = vadd.xlane.f32.xlu0 %v2941
    %v2943 = vpop.xlane.xlu0 %2942
    %v2944 = vrcp.pop %v2922
    %v2945 = vmul.f32 %v2905, %v2944
    %v2946 = vrcp.pop %v2925
    %v2947 = vmul.f32 %v2907, %v2946
    %v2948 = vrcp.pop %v2928
    %v2949 = vmul.f32 %v2909, %v2948
    %v2950 = vrcp.pop %v2931
    %v2951 = vmul.f32 %v2911, %v2950
    %v2952 = vrcp.pop %v2934
    %v2953 = vmul.f32 %v2913, %v2952
    %v2954 = vrcp.pop %v2937
    %v2955 = vmul.f32 %v2915, %v2954
    %v2956 = vrcp.pop %v2940
    %v2957 = vmul.f32 %v2917, %v2956
    %v2958 = vrcp.pop %v2943
    %v2959 = vmul.f32 %v2919, %v2958
    %2960 = vst.msk [vmem:[%s7] sm:$0xff] %vm2871, %v2945
    %2961 = vst.msk [vmem:[%s7 + $0x8] sm:$0xff] %vm2871, %v2947
    %2962 = vst.msk [vmem:[%s7 + $0x10] sm:$0xff] %vm2871, %v2949
    %2963 = vst.msk [vmem:[%s7 + $0x18] sm:$0xff] %vm2871, %v2951
    %2964 = vst.msk [vmem:[%s7 + $0x20] sm:$0xff] %vm2871, %v2953
    %2965 = vst.msk [vmem:[%s7 + $0x28] sm:$0xff] %vm2871, %v2955
    %2966 = vst.msk [vmem:[%s7 + $0x30] sm:$0xff] %vm2871, %v2957
    %2967 = vst.msk [vmem:[%s7 + $0x38] sm:$0xff] %vm2871, %v2959
    %v2969 = vsel %vm2871, %v2945, 0
    %2971 = vmatprep.subr.mxu0 0.0
    %2972 = vmatpush1.msra.mxu0 0.0
    %2973 = vmatprep.subr.mxu0 0.0
    %2974 = vmatpush1.msra.mxu0 0.0
    %2975 = vmatprep.subr.mxu0 0.0
    %2976 = vmatpush1.msra.mxu0 0.0
    %2977 = vmatprep.subr.mxu0 0.0
    %2978 = vmatpush1.msra.mxu0 0.0
    %2979 = vmatprep.subr.mxu0 0.0
    %2980 = vmatpush1.msra.mxu0 0.0
    %2981 = vmatprep.subr.mxu0 0.0
    %2982 = vmatpush1.msra.mxu0 0.0
    %2983 = vmatprep.subr.mxu0 0.0
    %2984 = vmatpush1.msra.mxu0 0.0
    %2985 = vmatprep.subr.mxu0 0.0
    %2986 = vmatpush1.msra.mxu0 0.0
    %2987 = vmatprep.subr.mxu0 0.0
    %2988 = vmatpush1.msra.mxu0 0.0
    %2989 = vmatprep.subr.mxu0 0.0
    %2990 = vmatpush1.msra.mxu0 0.0
    %2991 = vmatprep.subr.mxu0 0.0
    %2992 = vmatpush1.msra.mxu0 0.0
    %2993 = vmatprep.subr.mxu0 0.0
    %2994 = vmatpush1.msra.mxu0 0.0
    %2995 = vmatprep.subr.mxu0 0.0
    %2996 = vmatpush1.msra.mxu0 0.0
    %2997 = vmatprep.subr.mxu0 0.0
    %2998 = vmatpush1.msra.mxu0 0.0
    %2999 = vmatprep.subr.mxu0 0.0
    %3000 = vmatpush1.msra.mxu0 0.0
    %3001 = vmatprep.subr.mxu0 0.0
    %3002 = vmatpush1.msra.mxu0 %v2212
    %3003 = vmatprep.subr.mxu0 0.0
    %3004 = vmatpush2.msra.mxu0 0.0
    %3005 = vmatprep.subr.mxu0 0.0
    %3006 = vmatpush2.msra.mxu0 0.0
    %3007 = vmatprep.subr.mxu0 0.0
    %3008 = vmatpush2.msra.mxu0 0.0
    %3009 = vmatprep.subr.mxu0 0.0
    %3010 = vmatpush2.msra.mxu0 0.0
    %3011 = vmatprep.subr.mxu0 0.0
    %3012 = vmatpush2.msra.mxu0 0.0
    %3013 = vmatprep.subr.mxu0 0.0
    %3014 = vmatpush2.msra.mxu0 0.0
    %3015 = vmatprep.subr.mxu0 0.0
    %3016 = vmatpush2.msra.mxu0 0.0
    %3017 = vmatprep.subr.mxu0 0.0
    %3018 = vmatpush2.msra.mxu0 0.0
    %3019 = vmatprep.subr.mxu0 0.0
    %3020 = vmatpush2.msra.mxu0 0.0
    %3021 = vmatprep.subr.mxu0 0.0
    %3022 = vmatpush2.msra.mxu0 0.0
    %3023 = vmatprep.subr.mxu0 0.0
    %3024 = vmatpush2.msra.mxu0 0.0
    %3025 = vmatprep.subr.mxu0 0.0
    %3026 = vmatpush2.msra.mxu0 0.0
    %3027 = vmatprep.subr.mxu0 0.0
    %3028 = vmatpush2.msra.mxu0 0.0
    %3029 = vmatprep.subr.mxu0 0.0
    %3030 = vmatpush2.msra.mxu0 0.0
    %3031 = vmatprep.subr.mxu0 0.0
    %3032 = vmatpush2.msra.mxu0 0.0
    %3033 = vmatprep.subr.mxu0 0.0
    %3034 = vmatpush2.msra.mxu0 0.0
    %3035 = vmatprep.mubr.f32.mxu0 0.0
    %3036 = vmatmul.mubr.f32.gmra.mxu0 %v2969
    %v3037 = vpop.f32.mrf.mxu0
    %v3038 = vadd.f32 0.0, %v3037
    %v3039 = vpop.f32.mrf.mxu0
    %3040 = vdwg.mxu0
    %v3042 = vsel %vm2871, %v2947, 0
    %3044 = vmatprep.subr.mxu0 0.0
    %3045 = vmatpush1.msra.mxu0 0.0
    %3046 = vmatprep.subr.mxu0 0.0
    %3047 = vmatpush1.msra.mxu0 0.0
    %3048 = vmatprep.subr.mxu0 0.0
    %3049 = vmatpush1.msra.mxu0 0.0
    %3050 = vmatprep.subr.mxu0 0.0
    %3051 = vmatpush1.msra.mxu0 0.0
    %3052 = vmatprep.subr.mxu0 0.0
    %3053 = vmatpush1.msra.mxu0 0.0
    %3054 = vmatprep.subr.mxu0 0.0
    %3055 = vmatpush1.msra.mxu0 0.0
    %3056 = vmatprep.subr.mxu0 0.0
    %3057 = vmatpush1.msra.mxu0 0.0
    %3058 = vmatprep.subr.mxu0 0.0
    %3059 = vmatpush1.msra.mxu0 0.0
    %3060 = vmatprep.subr.mxu0 0.0
    %3061 = vmatpush1.msra.mxu0 0.0
    %3062 = vmatprep.subr.mxu0 0.0
    %3063 = vmatpush1.msra.mxu0 0.0
    %3064 = vmatprep.subr.mxu0 0.0
    %3065 = vmatpush1.msra.mxu0 0.0
    %3066 = vmatprep.subr.mxu0 0.0
    %3067 = vmatpush1.msra.mxu0 0.0
    %3068 = vmatprep.subr.mxu0 0.0
    %3069 = vmatpush1.msra.mxu0 0.0
    %3070 = vmatprep.subr.mxu0 0.0
    %3071 = vmatpush1.msra.mxu0 0.0
    %3072 = vmatprep.subr.mxu0 0.0
    %3073 = vmatpush1.msra.mxu0 0.0
    %3074 = vmatprep.subr.mxu0 0.0
    %3075 = vmatpush1.msra.mxu0 %v2213
    %3076 = vmatprep.subr.mxu0 0.0
    %3077 = vmatpush2.msra.mxu0 0.0
    %3078 = vmatprep.subr.mxu0 0.0
    %3079 = vmatpush2.msra.mxu0 0.0
    %3080 = vmatprep.subr.mxu0 0.0
    %3081 = vmatpush2.msra.mxu0 0.0
    %3082 = vmatprep.subr.mxu0 0.0
    %3083 = vmatpush2.msra.mxu0 0.0
    %3084 = vmatprep.subr.mxu0 0.0
    %3085 = vmatpush2.msra.mxu0 0.0
    %3086 = vmatprep.subr.mxu0 0.0
    %3087 = vmatpush2.msra.mxu0 0.0
    %3088 = vmatprep.subr.mxu0 0.0
    %3089 = vmatpush2.msra.mxu0 0.0
    %3090 = vmatprep.subr.mxu0 0.0
    %3091 = vmatpush2.msra.mxu0 0.0
    %3092 = vmatprep.subr.mxu0 0.0
    %3093 = vmatpush2.msra.mxu0 0.0
    %3094 = vmatprep.subr.mxu0 0.0
    %3095 = vmatpush2.msra.mxu0 0.0
    %3096 = vmatprep.subr.mxu0 0.0
    %3097 = vmatpush2.msra.mxu0 0.0
    %3098 = vmatprep.subr.mxu0 0.0
    %3099 = vmatpush2.msra.mxu0 0.0
    %3100 = vmatprep.subr.mxu0 0.0
    %3101 = vmatpush2.msra.mxu0 0.0
    %3102 = vmatprep.subr.mxu0 0.0
    %3103 = vmatpush2.msra.mxu0 0.0
    %3104 = vmatprep.subr.mxu0 0.0
    %3105 = vmatpush2.msra.mxu0 0.0
    %3106 = vmatprep.subr.mxu0 0.0
    %3107 = vmatpush2.msra.mxu0 0.0
    %3108 = vmatprep.mubr.f32.mxu0 0.0
    %3109 = vmatmul.mubr.f32.gmra.mxu0 %v3042
    %v3110 = vpop.f32.mrf.mxu0
    %v3111 = vadd.f32 0.0, %v3110
    %v3112 = vpop.f32.mrf.mxu0
    %3113 = vdwg.mxu0
    %v3115 = vsel %vm2871, %v2949, 0
    %3117 = vmatprep.subr.mxu0 0.0
    %3118 = vmatpush1.msra.mxu0 0.0
    %3119 = vmatprep.subr.mxu0 0.0
    %3120 = vmatpush1.msra.mxu0 0.0
    %3121 = vmatprep.subr.mxu0 0.0
    %3122 = vmatpush1.msra.mxu0 0.0
    %3123 = vmatprep.subr.mxu0 0.0
    %3124 = vmatpush1.msra.mxu0 0.0
    %3125 = vmatprep.subr.mxu0 0.0
    %3126 = vmatpush1.msra.mxu0 0.0
    %3127 = vmatprep.subr.mxu0 0.0
    %3128 = vmatpush1.msra.mxu0 0.0
    %3129 = vmatprep.subr.mxu0 0.0
    %3130 = vmatpush1.msra.mxu0 0.0
    %3131 = vmatprep.subr.mxu0 0.0
    %3132 = vmatpush1.msra.mxu0 0.0
    %3133 = vmatprep.subr.mxu0 0.0
    %3134 = vmatpush1.msra.mxu0 0.0
    %3135 = vmatprep.subr.mxu0 0.0
    %3136 = vmatpush1.msra.mxu0 0.0
    %3137 = vmatprep.subr.mxu0 0.0
    %3138 = vmatpush1.msra.mxu0 0.0
    %3139 = vmatprep.subr.mxu0 0.0
    %3140 = vmatpush1.msra.mxu0 0.0
    %3141 = vmatprep.subr.mxu0 0.0
    %3142 = vmatpush1.msra.mxu0 0.0
    %3143 = vmatprep.subr.mxu0 0.0
    %3144 = vmatpush1.msra.mxu0 0.0
    %3145 = vmatprep.subr.mxu0 0.0
    %3146 = vmatpush1.msra.mxu0 0.0
    %3147 = vmatprep.subr.mxu0 0.0
    %3148 = vmatpush1.msra.mxu0 %v2214
    %3149 = vmatprep.subr.mxu0 0.0
    %3150 = vmatpush2.msra.mxu0 0.0
    %3151 = vmatprep.subr.mxu0 0.0
    %3152 = vmatpush2.msra.mxu0 0.0
    %3153 = vmatprep.subr.mxu0 0.0
    %3154 = vmatpush2.msra.mxu0 0.0
    %3155 = vmatprep.subr.mxu0 0.0
    %3156 = vmatpush2.msra.mxu0 0.0
    %3157 = vmatprep.subr.mxu0 0.0
    %3158 = vmatpush2.msra.mxu0 0.0
    %3159 = vmatprep.subr.mxu0 0.0
    %3160 = vmatpush2.msra.mxu0 0.0
    %3161 = vmatprep.subr.mxu0 0.0
    %3162 = vmatpush2.msra.mxu0 0.0
    %3163 = vmatprep.subr.mxu0 0.0
    %3164 = vmatpush2.msra.mxu0 0.0
    %3165 = vmatprep.subr.mxu0 0.0
    %3166 = vmatpush2.msra.mxu0 0.0
    %3167 = vmatprep.subr.mxu0 0.0
    %3168 = vmatpush2.msra.mxu0 0.0
    %3169 = vmatprep.subr.mxu0 0.0
    %3170 = vmatpush2.msra.mxu0 0.0
    %3171 = vmatprep.subr.mxu0 0.0
    %3172 = vmatpush2.msra.mxu0 0.0
    %3173 = vmatprep.subr.mxu0 0.0
    %3174 = vmatpush2.msra.mxu0 0.0
    %3175 = vmatprep.subr.mxu0 0.0
    %3176 = vmatpush2.msra.mxu0 0.0
    %3177 = vmatprep.subr.mxu0 0.0
    %3178 = vmatpush2.msra.mxu0 0.0
    %3179 = vmatprep.subr.mxu0 0.0
    %3180 = vmatpush2.msra.mxu0 0.0
    %3181 = vmatprep.mubr.f32.mxu0 0.0
    %3182 = vmatmul.mubr.f32.gmra.mxu0 %v3115
    %v3183 = vpop.f32.mrf.mxu0
    %v3184 = vadd.f32 0.0, %v3183
    %v3185 = vpop.f32.mrf.mxu0
    %3186 = vdwg.mxu0
    %v3188 = vsel %vm2871, %v2951, 0
    %3190 = vmatprep.subr.mxu0 0.0
    %3191 = vmatpush1.msra.mxu0 0.0
    %3192 = vmatprep.subr.mxu0 0.0
    %3193 = vmatpush1.msra.mxu0 0.0
    %3194 = vmatprep.subr.mxu0 0.0
    %3195 = vmatpush1.msra.mxu0 0.0
    %3196 = vmatprep.subr.mxu0 0.0
    %3197 = vmatpush1.msra.mxu0 0.0
    %3198 = vmatprep.subr.mxu0 0.0
    %3199 = vmatpush1.msra.mxu0 0.0
    %3200 = vmatprep.subr.mxu0 0.0
    %3201 = vmatpush1.msra.mxu0 0.0
    %3202 = vmatprep.subr.mxu0 0.0
    %3203 = vmatpush1.msra.mxu0 0.0
    %3204 = vmatprep.subr.mxu0 0.0
    %3205 = vmatpush1.msra.mxu0 0.0
    %3206 = vmatprep.subr.mxu0 0.0
    %3207 = vmatpush1.msra.mxu0 0.0
    %3208 = vmatprep.subr.mxu0 0.0
    %3209 = vmatpush1.msra.mxu0 0.0
    %3210 = vmatprep.subr.mxu0 0.0
    %3211 = vmatpush1.msra.mxu0 0.0
    %3212 = vmatprep.subr.mxu0 0.0
    %3213 = vmatpush1.msra.mxu0 0.0
    %3214 = vmatprep.subr.mxu0 0.0
    %3215 = vmatpush1.msra.mxu0 0.0
    %3216 = vmatprep.subr.mxu0 0.0
    %3217 = vmatpush1.msra.mxu0 0.0
    %3218 = vmatprep.subr.mxu0 0.0
    %3219 = vmatpush1.msra.mxu0 0.0
    %3220 = vmatprep.subr.mxu0 0.0
    %3221 = vmatpush1.msra.mxu0 %v2215
    %3222 = vmatprep.subr.mxu0 0.0
    %3223 = vmatpush2.msra.mxu0 0.0
    %3224 = vmatprep.subr.mxu0 0.0
    %3225 = vmatpush2.msra.mxu0 0.0
    %3226 = vmatprep.subr.mxu0 0.0
    %3227 = vmatpush2.msra.mxu0 0.0
    %3228 = vmatprep.subr.mxu0 0.0
    %3229 = vmatpush2.msra.mxu0 0.0
    %3230 = vmatprep.subr.mxu0 0.0
    %3231 = vmatpush2.msra.mxu0 0.0
    %3232 = vmatprep.subr.mxu0 0.0
    %3233 = vmatpush2.msra.mxu0 0.0
    %3234 = vmatprep.subr.mxu0 0.0
    %3235 = vmatpush2.msra.mxu0 0.0
    %3236 = vmatprep.subr.mxu0 0.0
    %3237 = vmatpush2.msra.mxu0 0.0
    %3238 = vmatprep.subr.mxu0 0.0
    %3239 = vmatpush2.msra.mxu0 0.0
    %3240 = vmatprep.subr.mxu0 0.0
    %3241 = vmatpush2.msra.mxu0 0.0
    %3242 = vmatprep.subr.mxu0 0.0
    %3243 = vmatpush2.msra.mxu0 0.0
    %3244 = vmatprep.subr.mxu0 0.0
    %3245 = vmatpush2.msra.mxu0 0.0
    %3246 = vmatprep.subr.mxu0 0.0
    %3247 = vmatpush2.msra.mxu0 0.0
    %3248 = vmatprep.subr.mxu0 0.0
    %3249 = vmatpush2.msra.mxu0 0.0
    %3250 = vmatprep.subr.mxu0 0.0
    %3251 = vmatpush2.msra.mxu0 0.0
    %3252 = vmatprep.subr.mxu0 0.0
    %3253 = vmatpush2.msra.mxu0 0.0
    %3254 = vmatprep.mubr.f32.mxu0 0.0
    %3255 = vmatmul.mubr.f32.gmra.mxu0 %v3188
    %v3256 = vpop.f32.mrf.mxu0
    %v3257 = vadd.f32 0.0, %v3256
    %v3258 = vpop.f32.mrf.mxu0
    %3259 = vdwg.mxu0
    %v3261 = vsel %vm2871, %v2953, 0
    %3263 = vmatprep.subr.mxu0 0.0
    %3264 = vmatpush1.msra.mxu0 0.0
    %3265 = vmatprep.subr.mxu0 0.0
    %3266 = vmatpush1.msra.mxu0 0.0
    %3267 = vmatprep.subr.mxu0 0.0
    %3268 = vmatpush1.msra.mxu0 0.0
    %3269 = vmatprep.subr.mxu0 0.0
    %3270 = vmatpush1.msra.mxu0 0.0
    %3271 = vmatprep.subr.mxu0 0.0
    %3272 = vmatpush1.msra.mxu0 0.0
    %3273 = vmatprep.subr.mxu0 0.0
    %3274 = vmatpush1.msra.mxu0 0.0
    %3275 = vmatprep.subr.mxu0 0.0
    %3276 = vmatpush1.msra.mxu0 0.0
    %3277 = vmatprep.subr.mxu0 0.0
    %3278 = vmatpush1.msra.mxu0 0.0
    %3279 = vmatprep.subr.mxu0 0.0
    %3280 = vmatpush1.msra.mxu0 0.0
    %3281 = vmatprep.subr.mxu0 0.0
    %3282 = vmatpush1.msra.mxu0 0.0
    %3283 = vmatprep.subr.mxu0 0.0
    %3284 = vmatpush1.msra.mxu0 0.0
    %3285 = vmatprep.subr.mxu0 0.0
    %3286 = vmatpush1.msra.mxu0 0.0
    %3287 = vmatprep.subr.mxu0 0.0
    %3288 = vmatpush1.msra.mxu0 0.0
    %3289 = vmatprep.subr.mxu0 0.0
    %3290 = vmatpush1.msra.mxu0 0.0
    %3291 = vmatprep.subr.mxu0 0.0
    %3292 = vmatpush1.msra.mxu0 0.0
    %3293 = vmatprep.subr.mxu0 0.0
    %3294 = vmatpush1.msra.mxu0 %v2216
    %3295 = vmatprep.subr.mxu0 0.0
    %3296 = vmatpush2.msra.mxu0 0.0
    %3297 = vmatprep.subr.mxu0 0.0
    %3298 = vmatpush2.msra.mxu0 0.0
    %3299 = vmatprep.subr.mxu0 0.0
    %3300 = vmatpush2.msra.mxu0 0.0
    %3301 = vmatprep.subr.mxu0 0.0
    %3302 = vmatpush2.msra.mxu0 0.0
    %3303 = vmatprep.subr.mxu0 0.0
    %3304 = vmatpush2.msra.mxu0 0.0
    %3305 = vmatprep.subr.mxu0 0.0
    %3306 = vmatpush2.msra.mxu0 0.0
    %3307 = vmatprep.subr.mxu0 0.0
    %3308 = vmatpush2.msra.mxu0 0.0
    %3309 = vmatprep.subr.mxu0 0.0
    %3310 = vmatpush2.msra.mxu0 0.0
    %3311 = vmatprep.subr.mxu0 0.0
    %3312 = vmatpush2.msra.mxu0 0.0
    %3313 = vmatprep.subr.mxu0 0.0
    %3314 = vmatpush2.msra.mxu0 0.0
    %3315 = vmatprep.subr.mxu0 0.0
    %3316 = vmatpush2.msra.mxu0 0.0
    %3317 = vmatprep.subr.mxu0 0.0
    %3318 = vmatpush2.msra.mxu0 0.0
    %3319 = vmatprep.subr.mxu0 0.0
    %3320 = vmatpush2.msra.mxu0 0.0
    %3321 = vmatprep.subr.mxu0 0.0
    %3322 = vmatpush2.msra.mxu0 0.0
    %3323 = vmatprep.subr.mxu0 0.0
    %3324 = vmatpush2.msra.mxu0 0.0
    %3325 = vmatprep.subr.mxu0 0.0
    %3326 = vmatpush2.msra.mxu0 0.0
    %3327 = vmatprep.mubr.f32.mxu0 0.0
    %3328 = vmatmul.mubr.f32.gmra.mxu0 %v3261
    %v3329 = vpop.f32.mrf.mxu0
    %v3330 = vadd.f32 0.0, %v3329
    %v3331 = vpop.f32.mrf.mxu0
    %3332 = vdwg.mxu0
    %v3334 = vsel %vm2871, %v2955, 0
    %3336 = vmatprep.subr.mxu0 0.0
    %3337 = vmatpush1.msra.mxu0 0.0
    %3338 = vmatprep.subr.mxu0 0.0
    %3339 = vmatpush1.msra.mxu0 0.0
    %3340 = vmatprep.subr.mxu0 0.0
    %3341 = vmatpush1.msra.mxu0 0.0
    %3342 = vmatprep.subr.mxu0 0.0
    %3343 = vmatpush1.msra.mxu0 0.0
    %3344 = vmatprep.subr.mxu0 0.0
    %3345 = vmatpush1.msra.mxu0 0.0
    %3346 = vmatprep.subr.mxu0 0.0
    %3347 = vmatpush1.msra.mxu0 0.0
    %3348 = vmatprep.subr.mxu0 0.0
    %3349 = vmatpush1.msra.mxu0 0.0
    %3350 = vmatprep.subr.mxu0 0.0
    %3351 = vmatpush1.msra.mxu0 0.0
    %3352 = vmatprep.subr.mxu0 0.0
    %3353 = vmatpush1.msra.mxu0 0.0
    %3354 = vmatprep.subr.mxu0 0.0
    %3355 = vmatpush1.msra.mxu0 0.0
    %3356 = vmatprep.subr.mxu0 0.0
    %3357 = vmatpush1.msra.mxu0 0.0
    %3358 = vmatprep.subr.mxu0 0.0
    %3359 = vmatpush1.msra.mxu0 0.0
    %3360 = vmatprep.subr.mxu0 0.0
    %3361 = vmatpush1.msra.mxu0 0.0
    %3362 = vmatprep.subr.mxu0 0.0
    %3363 = vmatpush1.msra.mxu0 0.0
    %3364 = vmatprep.subr.mxu0 0.0
    %3365 = vmatpush1.msra.mxu0 0.0
    %3366 = vmatprep.subr.mxu0 0.0
    %3367 = vmatpush1.msra.mxu0 %v2217
    %3368 = vmatprep.subr.mxu0 0.0
    %3369 = vmatpush2.msra.mxu0 0.0
    %3370 = vmatprep.subr.mxu0 0.0
    %3371 = vmatpush2.msra.mxu0 0.0
    %3372 = vmatprep.subr.mxu0 0.0
    %3373 = vmatpush2.msra.mxu0 0.0
    %3374 = vmatprep.subr.mxu0 0.0
    %3375 = vmatpush2.msra.mxu0 0.0
    %3376 = vmatprep.subr.mxu0 0.0
    %3377 = vmatpush2.msra.mxu0 0.0
    %3378 = vmatprep.subr.mxu0 0.0
    %3379 = vmatpush2.msra.mxu0 0.0
    %3380 = vmatprep.subr.mxu0 0.0
    %3381 = vmatpush2.msra.mxu0 0.0
    %3382 = vmatprep.subr.mxu0 0.0
    %3383 = vmatpush2.msra.mxu0 0.0
    %3384 = vmatprep.subr.mxu0 0.0
    %3385 = vmatpush2.msra.mxu0 0.0
    %3386 = vmatprep.subr.mxu0 0.0
    %3387 = vmatpush2.msra.mxu0 0.0
    %3388 = vmatprep.subr.mxu0 0.0
    %3389 = vmatpush2.msra.mxu0 0.0
    %3390 = vmatprep.subr.mxu0 0.0
    %3391 = vmatpush2.msra.mxu0 0.0
    %3392 = vmatprep.subr.mxu0 0.0
    %3393 = vmatpush2.msra.mxu0 0.0
    %3394 = vmatprep.subr.mxu0 0.0
    %3395 = vmatpush2.msra.mxu0 0.0
    %3396 = vmatprep.subr.mxu0 0.0
    %3397 = vmatpush2.msra.mxu0 0.0
    %3398 = vmatprep.subr.mxu0 0.0
    %3399 = vmatpush2.msra.mxu0 0.0
    %3400 = vmatprep.mubr.f32.mxu0 0.0
    %3401 = vmatmul.mubr.f32.gmra.mxu0 %v3334
    %v3402 = vpop.f32.mrf.mxu0
    %v3403 = vadd.f32 0.0, %v3402
    %v3404 = vpop.f32.mrf.mxu0
    %3405 = vdwg.mxu0
    %v3407 = vsel %vm2871, %v2957, 0
    %3409 = vmatprep.subr.mxu0 0.0
    %3410 = vmatpush1.msra.mxu0 0.0
    %3411 = vmatprep.subr.mxu0 0.0
    %3412 = vmatpush1.msra.mxu0 0.0
    %3413 = vmatprep.subr.mxu0 0.0
    %3414 = vmatpush1.msra.mxu0 0.0
    %3415 = vmatprep.subr.mxu0 0.0
    %3416 = vmatpush1.msra.mxu0 0.0
    %3417 = vmatprep.subr.mxu0 0.0
    %3418 = vmatpush1.msra.mxu0 0.0
    %3419 = vmatprep.subr.mxu0 0.0
    %3420 = vmatpush1.msra.mxu0 0.0
    %3421 = vmatprep.subr.mxu0 0.0
    %3422 = vmatpush1.msra.mxu0 0.0
    %3423 = vmatprep.subr.mxu0 0.0
    %3424 = vmatpush1.msra.mxu0 0.0
    %3425 = vmatprep.subr.mxu0 0.0
    %3426 = vmatpush1.msra.mxu0 0.0
    %3427 = vmatprep.subr.mxu0 0.0
    %3428 = vmatpush1.msra.mxu0 0.0
    %3429 = vmatprep.subr.mxu0 0.0
    %3430 = vmatpush1.msra.mxu0 0.0
    %3431 = vmatprep.subr.mxu0 0.0
    %3432 = vmatpush1.msra.mxu0 0.0
    %3433 = vmatprep.subr.mxu0 0.0
    %3434 = vmatpush1.msra.mxu0 0.0
    %3435 = vmatprep.subr.mxu0 0.0
    %3436 = vmatpush1.msra.mxu0 0.0
    %3437 = vmatprep.subr.mxu0 0.0
    %3438 = vmatpush1.msra.mxu0 0.0
    %3439 = vmatprep.subr.mxu0 0.0
    %3440 = vmatpush1.msra.mxu0 %v2218
    %3441 = vmatprep.subr.mxu0 0.0
    %3442 = vmatpush2.msra.mxu0 0.0
    %3443 = vmatprep.subr.mxu0 0.0
    %3444 = vmatpush2.msra.mxu0 0.0
    %3445 = vmatprep.subr.mxu0 0.0
    %3446 = vmatpush2.msra.mxu0 0.0
    %3447 = vmatprep.subr.mxu0 0.0
    %3448 = vmatpush2.msra.mxu0 0.0
    %3449 = vmatprep.subr.mxu0 0.0
    %3450 = vmatpush2.msra.mxu0 0.0
    %3451 = vmatprep.subr.mxu0 0.0
    %3452 = vmatpush2.msra.mxu0 0.0
    %3453 = vmatprep.subr.mxu0 0.0
    %3454 = vmatpush2.msra.mxu0 0.0
    %3455 = vmatprep.subr.mxu0 0.0
    %3456 = vmatpush2.msra.mxu0 0.0
    %3457 = vmatprep.subr.mxu0 0.0
    %3458 = vmatpush2.msra.mxu0 0.0
    %3459 = vmatprep.subr.mxu0 0.0
    %3460 = vmatpush2.msra.mxu0 0.0
    %3461 = vmatprep.subr.mxu0 0.0
    %3462 = vmatpush2.msra.mxu0 0.0
    %3463 = vmatprep.subr.mxu0 0.0
    %3464 = vmatpush2.msra.mxu0 0.0
    %3465 = vmatprep.subr.mxu0 0.0
    %3466 = vmatpush2.msra.mxu0 0.0
    %3467 = vmatprep.subr.mxu0 0.0
    %3468 = vmatpush2.msra.mxu0 0.0
    %3469 = vmatprep.subr.mxu0 0.0
    %3470 = vmatpush2.msra.mxu0 0.0
    %3471 = vmatprep.subr.mxu0 0.0
    %3472 = vmatpush2.msra.mxu0 0.0
    %3473 = vmatprep.mubr.f32.mxu0 0.0
    %3474 = vmatmul.mubr.f32.gmra.mxu0 %v3407
    %v3475 = vpop.f32.mrf.mxu0
    %v3476 = vadd.f32 0.0, %v3475
    %v3477 = vpop.f32.mrf.mxu0
    %3478 = vdwg.mxu0
    %v3480 = vsel %vm2871, %v2959, 0
    %3482 = vmatprep.subr.mxu0 0.0
    %3483 = vmatpush1.msra.mxu0 0.0
    %3484 = vmatprep.subr.mxu0 0.0
    %3485 = vmatpush1.msra.mxu0 0.0
    %3486 = vmatprep.subr.mxu0 0.0
    %3487 = vmatpush1.msra.mxu0 0.0
    %3488 = vmatprep.subr.mxu0 0.0
    %3489 = vmatpush1.msra.mxu0 0.0
    %3490 = vmatprep.subr.mxu0 0.0
    %3491 = vmatpush1.msra.mxu0 0.0
    %3492 = vmatprep.subr.mxu0 0.0
    %3493 = vmatpush1.msra.mxu0 0.0
    %3494 = vmatprep.subr.mxu0 0.0
    %3495 = vmatpush1.msra.mxu0 0.0
    %3496 = vmatprep.subr.mxu0 0.0
    %3497 = vmatpush1.msra.mxu0 0.0
    %3498 = vmatprep.subr.mxu0 0.0
    %3499 = vmatpush1.msra.mxu0 0.0
    %3500 = vmatprep.subr.mxu0 0.0
    %3501 = vmatpush1.msra.mxu0 0.0
    %3502 = vmatprep.subr.mxu0 0.0
    %3503 = vmatpush1.msra.mxu0 0.0
    %3504 = vmatprep.subr.mxu0 0.0
    %3505 = vmatpush1.msra.mxu0 0.0
    %3506 = vmatprep.subr.mxu0 0.0
    %3507 = vmatpush1.msra.mxu0 0.0
    %3508 = vmatprep.subr.mxu0 0.0
    %3509 = vmatpush1.msra.mxu0 0.0
    %3510 = vmatprep.subr.mxu0 0.0
    %3511 = vmatpush1.msra.mxu0 0.0
    %3512 = vmatprep.subr.mxu0 0.0
    %3513 = vmatpush1.msra.mxu0 %v2219
    %3514 = vmatprep.subr.mxu0 0.0
    %3515 = vmatpush2.msra.mxu0 0.0
    %3516 = vmatprep.subr.mxu0 0.0
    %3517 = vmatpush2.msra.mxu0 0.0
    %3518 = vmatprep.subr.mxu0 0.0
    %3519 = vmatpush2.msra.mxu0 0.0
    %3520 = vmatprep.subr.mxu0 0.0
    %3521 = vmatpush2.msra.mxu0 0.0
    %3522 = vmatprep.subr.mxu0 0.0
    %3523 = vmatpush2.msra.mxu0 0.0
    %3524 = vmatprep.subr.mxu0 0.0
    %3525 = vmatpush2.msra.mxu0 0.0
    %3526 = vmatprep.subr.mxu0 0.0
    %3527 = vmatpush2.msra.mxu0 0.0
    %3528 = vmatprep.subr.mxu0 0.0
    %3529 = vmatpush2.msra.mxu0 0.0
    %3530 = vmatprep.subr.mxu0 0.0
    %3531 = vmatpush2.msra.mxu0 0.0
    %3532 = vmatprep.subr.mxu0 0.0
    %3533 = vmatpush2.msra.mxu0 0.0
    %3534 = vmatprep.subr.mxu0 0.0
    %3535 = vmatpush2.msra.mxu0 0.0
    %3536 = vmatprep.subr.mxu0 0.0
    %3537 = vmatpush2.msra.mxu0 0.0
    %3538 = vmatprep.subr.mxu0 0.0
    %3539 = vmatpush2.msra.mxu0 0.0
    %3540 = vmatprep.subr.mxu0 0.0
    %3541 = vmatpush2.msra.mxu0 0.0
    %3542 = vmatprep.subr.mxu0 0.0
    %3543 = vmatpush2.msra.mxu0 0.0
    %3544 = vmatprep.subr.mxu0 0.0
    %3545 = vmatpush2.msra.mxu0 0.0
    %3546 = vmatprep.mubr.f32.mxu0 0.0
    %3547 = vmatmul.mubr.f32.gmra.mxu0 %v3480
    %v3548 = vpop.f32.mrf.mxu0
    %v3549 = vadd.f32 0.0, %v3548
    %v3550 = vpop.f32.mrf.mxu0
    %3551 = vdwg.mxu0
    %v3552 = vld [vmem:[#allocation3] sm:$0xff]
    %v3553 = vld [vmem:[#allocation3 + $0x8] sm:$0xff]
    %v3554 = vld [vmem:[#allocation3 + $0x10] sm:$0xff]
    %v3555 = vld [vmem:[#allocation3 + $0x18] sm:$0xff]
    %v3556 = vld [vmem:[#allocation3 + $0x20] sm:$0xff]
    %v3557 = vld [vmem:[#allocation3 + $0x28] sm:$0xff]
    %v3558 = vld [vmem:[#allocation3 + $0x30] sm:$0xff]
    %v3559 = vld [vmem:[#allocation3 + $0x38] sm:$0xff]
    %v3560 = vld [vmem:[#allocation3 + $0x40] sm:$0xff]
    %v3561 = vld [vmem:[#allocation3 + $0x48] sm:$0xff]
    %v3562 = vld [vmem:[#allocation3 + $0x50] sm:$0xff]
    %v3563 = vld [vmem:[#allocation3 + $0x58] sm:$0xff]
    %v3564 = vld [vmem:[#allocation3 + $0x60] sm:$0xff]
    %v3565 = vld [vmem:[#allocation3 + $0x68] sm:$0xff]
    %v3566 = vld [vmem:[#allocation3 + $0x70] sm:$0xff]
    %v3567 = vld [vmem:[#allocation3 + $0x78] sm:$0xff]
    %v3568 = vld [vmem:[#allocation3 + $0x80] sm:$0xff]
    %v3569 = vld [vmem:[#allocation3 + $0x88] sm:$0xff]
    %v3570 = vld [vmem:[#allocation3 + $0x90] sm:$0xff]
    %v3571 = vld [vmem:[#allocation3 + $0x98] sm:$0xff]
    %v3572 = vld [vmem:[#allocation3 + $0xa0] sm:$0xff]
    %v3573 = vld [vmem:[#allocation3 + $0xa8] sm:$0xff]
    %v3574 = vld [vmem:[#allocation3 + $0xb0] sm:$0xff]
    %v3575 = vld [vmem:[#allocation3 + $0xb8] sm:$0xff]
    %v3576 = vld [vmem:[#allocation3 + $0xc0] sm:$0xff]
    %v3577 = vld [vmem:[#allocation3 + $0xc8] sm:$0xff]
    %v3578 = vld [vmem:[#allocation3 + $0xd0] sm:$0xff]
    %v3579 = vld [vmem:[#allocation3 + $0xd8] sm:$0xff]
    %v3580 = vld [vmem:[#allocation3 + $0xe0] sm:$0xff]
    %v3581 = vld [vmem:[#allocation3 + $0xe8] sm:$0xff]
    %v3582 = vld [vmem:[#allocation3 + $0xf0] sm:$0xff]
    %v3583 = vld [vmem:[#allocation3 + $0xf8] sm:$0xff]
    %v3584 = vld [vmem:[#allocation3 + $0x100] sm:$0xff]
    %v3585 = vld [vmem:[#allocation3 + $0x108] sm:$0xff]
    %v3586 = vld [vmem:[#allocation3 + $0x110] sm:$0xff]
    %v3587 = vld [vmem:[#allocation3 + $0x118] sm:$0xff]
    %v3588 = vld [vmem:[#allocation3 + $0x120] sm:$0xff]
    %v3589 = vld [vmem:[#allocation3 + $0x128] sm:$0xff]
    %v3590 = vld [vmem:[#allocation3 + $0x130] sm:$0xff]
    %v3591 = vld [vmem:[#allocation3 + $0x138] sm:$0xff]
    %v3592 = vld [vmem:[#allocation3 + $0x140] sm:$0xff]
    %v3593 = vld [vmem:[#allocation3 + $0x148] sm:$0xff]
    %v3594 = vld [vmem:[#allocation3 + $0x150] sm:$0xff]
    %v3595 = vld [vmem:[#allocation3 + $0x158] sm:$0xff]
    %v3596 = vld [vmem:[#allocation3 + $0x160] sm:$0xff]
    %v3597 = vld [vmem:[#allocation3 + $0x168] sm:$0xff]
    %v3598 = vld [vmem:[#allocation3 + $0x170] sm:$0xff]
    %v3599 = vld [vmem:[#allocation3 + $0x178] sm:$0xff]
    %v3600 = vld [vmem:[#allocation3 + $0x180] sm:$0x1]
    %v3601 = vld [vmem:[#allocation3 + $0x181] sm:$0x1]
    %v3602 = vlaneseq
    %v3603 = vshrl.u32 %v3602, 7
    %v3604 = vsub.s32 0, %v3603
    %v3605 = vrot.slane %v3600, %v3604
    %3606 = vmatprep.subr.mxu0 0.0
    %3607 = vmatpush1.msra.mxu0 %v3567
    %3608 = vmatprep.subr.mxu0 0.0
    %3609 = vmatpush1.msra.mxu0 %v3566
    %3610 = vmatprep.subr.mxu0 0.0
    %3611 = vmatpush1.msra.mxu0 %v3565
    %3612 = vmatprep.subr.mxu0 0.0
    %3613 = vmatpush1.msra.mxu0 %v3564
    %3614 = vmatprep.subr.mxu0 0.0
    %3615 = vmatpush1.msra.mxu0 %v3563
    %3616 = vmatprep.subr.mxu0 0.0
    %3617 = vmatpush1.msra.mxu0 %v3562
    %3618 = vmatprep.subr.mxu0 0.0
    %3619 = vmatpush1.msra.mxu0 %v3561
    %3620 = vmatprep.subr.mxu0 0.0
    %3621 = vmatpush1.msra.mxu0 %v3560
    %3622 = vmatprep.subr.mxu0 0.0
    %3623 = vmatpush1.msra.mxu0 %v3559
    %3624 = vmatprep.subr.mxu0 0.0
    %3625 = vmatpush1.msra.mxu0 %v3558
    %3626 = vmatprep.subr.mxu0 0.0
    %3627 = vmatpush1.msra.mxu0 %v3557
    %3628 = vmatprep.subr.mxu0 0.0
    %3629 = vmatpush1.msra.mxu0 %v3556
    %3630 = vmatprep.subr.mxu0 0.0
    %3631 = vmatpush1.msra.mxu0 %v3555
    %3632 = vmatprep.subr.mxu0 0.0
    %3633 = vmatpush1.msra.mxu0 %v3554
    %3634 = vmatprep.subr.mxu0 0.0
    %3635 = vmatpush1.msra.mxu0 %v3553
    %3636 = vmatprep.subr.mxu0 0.0
    %3637 = vmatpush1.msra.mxu0 %v3552
    %3638 = vmatprep.subr.mxu0 0.0
    %3639 = vmatpush2.msra.mxu0 %v3583
    %3640 = vmatprep.subr.mxu0 0.0
    %3641 = vmatpush2.msra.mxu0 %v3582
    %3642 = vmatprep.subr.mxu0 0.0
    %3643 = vmatpush2.msra.mxu0 %v3581
    %3644 = vmatprep.subr.mxu0 0.0
    %3645 = vmatpush2.msra.mxu0 %v3580
    %3646 = vmatprep.subr.mxu0 0.0
    %3647 = vmatpush2.msra.mxu0 %v3579
    %3648 = vmatprep.subr.mxu0 0.0
    %3649 = vmatpush2.msra.mxu0 %v3578
    %3650 = vmatprep.subr.mxu0 0.0
    %3651 = vmatpush2.msra.mxu0 %v3577
    %3652 = vmatprep.subr.mxu0 0.0
    %3653 = vmatpush2.msra.mxu0 %v3576
    %3654 = vmatprep.subr.mxu0 0.0
    %3655 = vmatpush2.msra.mxu0 %v3575
    %3656 = vmatprep.subr.mxu0 0.0
    %3657 = vmatpush2.msra.mxu0 %v3574
    %3658 = vmatprep.subr.mxu0 0.0
    %3659 = vmatpush2.msra.mxu0 %v3573
    %3660 = vmatprep.subr.mxu0 0.0
    %3661 = vmatpush2.msra.mxu0 %v3572
    %3662 = vmatprep.subr.mxu0 0.0
    %3663 = vmatpush2.msra.mxu0 %v3571
    %3664 = vmatprep.subr.mxu0 0.0
    %3665 = vmatpush2.msra.mxu0 %v3570
    %3666 = vmatprep.subr.mxu0 0.0
    %3667 = vmatpush2.msra.mxu0 %v3569
    %3668 = vmatprep.subr.mxu0 0.0
    %3669 = vmatpush2.msra.mxu0 %v3568
    %3670 = vmatprep.mubr.f32.mxu0 %v2204
    %3671 = vmatmul.mubr.f32.gmra.mxu0 %v3038
    %v3672 = vpop.f32.mrf.mxu0
    %v3673 = vadd.f32 %v3605, %v3672
    %v3674 = vpop.f32.mrf.mxu0
    %3675 = vmatprep.mubr.f32.mxu0 %v2205
    %3676 = vmatmul.mubr.f32.gmra.mxu0 %v3111
    %v3677 = vpop.f32.mrf.mxu0
    %v3678 = vadd.f32 %v3605, %v3677
    %v3679 = vpop.f32.mrf.mxu0
    %3680 = vmatprep.mubr.f32.mxu0 %v2206
    %3681 = vmatmul.mubr.f32.gmra.mxu0 %v3184
    %v3682 = vpop.f32.mrf.mxu0
    %v3683 = vadd.f32 %v3605, %v3682
    %v3684 = vpop.f32.mrf.mxu0
    %3685 = vmatprep.mubr.f32.mxu0 %v2207
    %3686 = vmatmul.mubr.f32.gmra.mxu0 %v3257
    %v3687 = vpop.f32.mrf.mxu0
    %v3688 = vadd.f32 %v3605, %v3687
    %v3689 = vpop.f32.mrf.mxu0
    %3690 = vmatprep.mubr.f32.mxu0 %v2208
    %3691 = vmatmul.mubr.f32.gmra.mxu0 %v3330
    %v3692 = vpop.f32.mrf.mxu0
    %v3693 = vadd.f32 %v3605, %v3692
    %v3694 = vpop.f32.mrf.mxu0
    %3695 = vmatprep.mubr.f32.mxu0 %v2209
    %3696 = vmatmul.mubr.f32.gmra.mxu0 %v3403
    %v3697 = vpop.f32.mrf.mxu0
    %v3698 = vadd.f32 %v3605, %v3697
    %v3699 = vpop.f32.mrf.mxu0
    %3700 = vmatprep.mubr.f32.mxu0 %v2210
    %3701 = vmatmul.mubr.f32.gmra.mxu0 %v3476
    %v3702 = vpop.f32.mrf.mxu0
    %v3703 = vadd.f32 %v3605, %v3702
    %v3704 = vpop.f32.mrf.mxu0
    %3705 = vmatprep.mubr.f32.mxu0 %v2211
    %3706 = vmatmul.mubr.f32.gmra.mxu0 %v3549
    %v3707 = vpop.f32.mrf.mxu0
    %v3708 = vadd.f32 %v3605, %v3707
    %v3709 = vpop.f32.mrf.mxu0
    %3710 = vdwg.mxu0
    %v3711 = vtanh.pop %v3673
    %v3712 = vtanh.pop %v3678
    %v3713 = vtanh.pop %v3683
    %v3714 = vtanh.pop %v3688
    %v3715 = vtanh.pop %v3693
    %v3716 = vtanh.pop %v3698
    %v3717 = vtanh.pop %v3703
    %v3718 = vtanh.pop %v3708
    %v3719 = vlaneseq
    %v3720 = vshrl.u32 %v3719, 7
    %v3721 = vsub.s32 0, %v3720
    %v3722 = vrot.slane %v3601, %v3721
    %3723 = vmatprep.subr.mxu0 0.0
    %3724 = vmatpush1.msra.mxu0 %v3599
    %3725 = vmatprep.subr.mxu0 0.0
    %3726 = vmatpush1.msra.mxu0 %v3598
    %3727 = vmatprep.subr.mxu0 0.0
    %3728 = vmatpush1.msra.mxu0 %v3597
    %3729 = vmatprep.subr.mxu0 0.0
    %3730 = vmatpush1.msra.mxu0 %v3596
    %3731 = vmatprep.subr.mxu0 0.0
    %3732 = vmatpush1.msra.mxu0 %v3595
    %3733 = vmatprep.subr.mxu0 0.0
    %3734 = vmatpush1.msra.mxu0 %v3594
    %3735 = vmatprep.subr.mxu0 0.0
    %3736 = vmatpush1.msra.mxu0 %v3593
    %3737 = vmatprep.subr.mxu0 0.0
    %3738 = vmatpush1.msra.mxu0 %v3592
    %3739 = vmatprep.subr.mxu0 0.0
    %3740 = vmatpush1.msra.mxu0 %v3591
    %3741 = vmatprep.subr.mxu0 0.0
    %3742 = vmatpush1.msra.mxu0 %v3590
    %3743 = vmatprep.subr.mxu0 0.0
    %3744 = vmatpush1.msra.mxu0 %v3589
    %3745 = vmatprep.subr.mxu0 0.0
    %3746 = vmatpush1.msra.mxu0 %v3588
    %3747 = vmatprep.subr.mxu0 0.0
    %3748 = vmatpush1.msra.mxu0 %v3587
    %3749 = vmatprep.subr.mxu0 0.0
    %3750 = vmatpush1.msra.mxu0 %v3586
    %3751 = vmatprep.subr.mxu0 0.0
    %3752 = vmatpush1.msra.mxu0 %v3585
    %3753 = vmatprep.subr.mxu0 0.0
    %3754 = vmatpush1.msra.mxu0 %v3584
    %3755 = vmatprep.subr.mxu0 0.0
    %3756 = vmatpush2.msra.mxu0 0.0
    %3757 = vmatprep.subr.mxu0 0.0
    %3758 = vmatpush2.msra.mxu0 0.0
    %3759 = vmatprep.subr.mxu0 0.0
    %3760 = vmatpush2.msra.mxu0 0.0
    %3761 = vmatprep.subr.mxu0 0.0
    %3762 = vmatpush2.msra.mxu0 0.0
    %3763 = vmatprep.subr.mxu0 0.0
    %3764 = vmatpush2.msra.mxu0 0.0
    %3765 = vmatprep.subr.mxu0 0.0
    %3766 = vmatpush2.msra.mxu0 0.0
    %3767 = vmatprep.subr.mxu0 0.0
    %3768 = vmatpush2.msra.mxu0 0.0
    %3769 = vmatprep.subr.mxu0 0.0
    %3770 = vmatpush2.msra.mxu0 0.0
    %3771 = vmatprep.subr.mxu0 0.0
    %3772 = vmatpush2.msra.mxu0 0.0
    %3773 = vmatprep.subr.mxu0 0.0
    %3774 = vmatpush2.msra.mxu0 0.0
    %3775 = vmatprep.subr.mxu0 0.0
    %3776 = vmatpush2.msra.mxu0 0.0
    %3777 = vmatprep.subr.mxu0 0.0
    %3778 = vmatpush2.msra.mxu0 0.0
    %3779 = vmatprep.subr.mxu0 0.0
    %3780 = vmatpush2.msra.mxu0 0.0
    %3781 = vmatprep.subr.mxu0 0.0
    %3782 = vmatpush2.msra.mxu0 0.0
    %3783 = vmatprep.subr.mxu0 0.0
    %3784 = vmatpush2.msra.mxu0 0.0
    %3785 = vmatprep.subr.mxu0 0.0
    %3786 = vmatpush2.msra.mxu0 0.0
    %3787 = vmatprep.mubr.f32.mxu0 0.0
    %3788 = vmatmul.mubr.f32.gmra.mxu0 %v3711
    %v3789 = vpop.f32.mrf.mxu0
    %v3790 = vadd.f32 %v3722, %v3789
    %v3791 = vpop.f32.mrf.mxu0
    %3792 = vmatprep.mubr.f32.mxu0 0.0
    %3793 = vmatmul.mubr.f32.gmra.mxu0 %v3712
    %v3794 = vpop.f32.mrf.mxu0
    %v3795 = vadd.f32 %v3722, %v3794
    %v3796 = vpop.f32.mrf.mxu0
    %3797 = vmatprep.mubr.f32.mxu0 0.0
    %3798 = vmatmul.mubr.f32.gmra.mxu0 %v3713
    %v3799 = vpop.f32.mrf.mxu0
    %v3800 = vadd.f32 %v3722, %v3799
    %v3801 = vpop.f32.mrf.mxu0
    %3802 = vmatprep.mubr.f32.mxu0 0.0
    %3803 = vmatmul.mubr.f32.gmra.mxu0 %v3714
    %v3804 = vpop.f32.mrf.mxu0
    %v3805 = vadd.f32 %v3722, %v3804
    %v3806 = vpop.f32.mrf.mxu0
    %3807 = vmatprep.mubr.f32.mxu0 0.0
    %3808 = vmatmul.mubr.f32.gmra.mxu0 %v3715
    %v3809 = vpop.f32.mrf.mxu0
    %v3810 = vadd.f32 %v3722, %v3809
    %v3811 = vpop.f32.mrf.mxu0
    %3812 = vmatprep.mubr.f32.mxu0 0.0
    %3813 = vmatmul.mubr.f32.gmra.mxu0 %v3716
    %v3814 = vpop.f32.mrf.mxu0
    %v3815 = vadd.f32 %v3722, %v3814
    %v3816 = vpop.f32.mrf.mxu0
    %3817 = vmatprep.mubr.f32.mxu0 0.0
    %3818 = vmatmul.mubr.f32.gmra.mxu0 %v3717
    %v3819 = vpop.f32.mrf.mxu0
    %v3820 = vadd.f32 %v3722, %v3819
    %v3821 = vpop.f32.mrf.mxu0
    %3822 = vmatprep.mubr.f32.mxu0 0.0
    %3823 = vmatmul.mubr.f32.gmra.mxu0 %v3718
    %v3824 = vpop.f32.mrf.mxu0
    %v3825 = vadd.f32 %v3722, %v3824
    %v3826 = vpop.f32.mrf.mxu0
    %3827 = vdwg.mxu0
    %3828 = vst [vmem:[%s6] sm:$0xff] %v3790
    %3829 = vst [vmem:[%s6 + $0x8] sm:$0xff] %v3795
    %3830 = vst [vmem:[%s6 + $0x10] sm:$0xff] %v3800
    %3831 = vst [vmem:[%s6 + $0x18] sm:$0xff] %v3805
    %3832 = vst [vmem:[%s6 + $0x20] sm:$0xff] %v3810
    %3833 = vst [vmem:[%s6 + $0x28] sm:$0xff] %v3815
    %3834 = vst [vmem:[%s6 + $0x30] sm:$0xff] %v3820
    %3835 = vst [vmem:[%s6 + $0x38] sm:$0xff] %v3825
    // Predicated region
    $region30: #{recurrent_decoder_forward.1} parent=1 // pred_check
      _
    $region31: #{recurrent_decoder_forward.1} parent=1 // pred_check_branch
      %3837 = sbr.rel (0) target = $region33
    $region32: #{recurrent_decoder_forward.1} parent=1 // pred_region
      _
    $region33: #{recurrent_decoder_forward.1} parent=1 // pred_fallthru
      _
    // Predicated region
    $region34: #{recurrent_decoder_forward.1} parent=1 // pred_check
      _
    $region35: #{recurrent_decoder_forward.1} parent=1 // pred_check_branch
      %3839 = sbr.rel (0) target = $region37
    $region36: #{recurrent_decoder_forward.1} parent=1 // pred_region
      _
    $region37: #{recurrent_decoder_forward.1} parent=1 // pred_fallthru
      _
    // Predicated region
    $region38: #{recurrent_decoder_forward.1} parent=1 // pred_check
      _
    $region39: #{recurrent_decoder_forward.1} parent=1 // pred_check_branch
      %3841 = sbr.rel (0) target = $region41
    $region40: #{recurrent_decoder_forward.1} parent=1 // pred_region
      _
    $region41: #{recurrent_decoder_forward.1} parent=1 // pred_fallthru
      _
    // Predicated region
    $region42: #{recurrent_decoder_forward.1} parent=1 // pred_check
      _
    $region43: #{recurrent_decoder_forward.1} parent=1 // pred_check_branch
      %3843 = sbr.rel (0) target = $region45
    $region44: #{recurrent_decoder_forward.1} parent=1 // pred_region
      _
    $region45: #{recurrent_decoder_forward.1} parent=1 // pred_fallthru
      _
    // Predicated region
    $region46: #{recurrent_decoder_forward.1} parent=1 // pred_check
      _
    $region47: #{recurrent_decoder_forward.1} parent=1 // pred_check_branch
      %3845 = sbr.rel (0) target = $region49
    $region48: #{recurrent_decoder_forward.1} parent=1 // pred_region
      _
    $region49: #{recurrent_decoder_forward.1} parent=1 // pred_fallthru
      _
    // Predicated region
    $region50: #{recurrent_decoder_forward.1} parent=1 // pred_check
      _
    $region51: #{recurrent_decoder_forward.1} parent=1 // pred_check_branch
      %3847 = sbr.rel (0) target = $region53
    $region52: #{recurrent_decoder_forward.1} parent=1 // pred_region
      _
    $region53: #{recurrent_decoder_forward.1} parent=1 // pred_fallthru
      _
    %3848 = vsyncpa [#allocation4], 1

</llo_original>
